<compile_context>
chip_gen: v5e
topology: v5e:2x2
jax: 0.10.0
libtpu: 0.0.40
codegen_flags: <defaults>
</compile_context>

<pallas_src>
import functools

import numpy as np

import jax
import jax.numpy as jnp
from jax.experimental import pallas as pl
from jax.experimental.pallas import tpu as pltpu


# ----------------------------------------------------------------------------
# The fused Pallas kernel: stem conv -> mixed block -> GAP -> fc, per image.
# ----------------------------------------------------------------------------
def _inception_kernel(x_ref, masks_ref,
                      stem_w_ref, stem_b_ref,
                      mix_w_ref, mix_b_ref,
                      b2_w_ref, b2_b_ref,
                      b3a_w_ref, b3a_b_ref,
                      b3b_w_ref, b3b_b_ref,
                      b4_w_ref, b4_b_ref,
                      fc_w_ref, fc_b_ref,
                      o_ref, *, H, W):
    M = H * W
    taps = [(dy, dx) for dy in (-1, 0, 1) for dx in (-1, 0, 1)]

    # (1, M) 0/1 masks for zero 'same' padding of each 3x3 tap, precomputed on
    # the host; loaded once and reused by all three 3x3 convs and the avg-pool.
    tap_masks = [masks_ref[t] for t in range(9)]

    def shift_mask(x, t):
        # Output pixel m (row-major over H, W) reads input pixel m + dy*W + dx;
        # a single lane roll of the flat (C, H*W) slab realises both shifts.
        dy, dx = taps[t]
        s = (-(dy * W + dx)) % M
        rolled = x if s == 0 else pltpu.roll(x, s, axis=1)
        return rolled * tap_masks[t]

    def conv3x3(x, w_ref, b_ref):
        # x: (Cin, M) f32, w_ref: (9, Cout, Cin) bf16, b_ref: (Cout, 1) f32.
        cout = w_ref.shape[1]
        acc = jnp.zeros((cout, M), jnp.float32)
        for t in range(9):
            acc = acc + jnp.dot(w_ref[t],
                                shift_mask(x, t).astype(jnp.bfloat16),
                                preferred_element_type=jnp.float32)
        return jnp.maximum(acc + b_ref[...], 0.0)        # fused BN bias + ReLU

    def conv1x1(x, w_ref, b_ref):
        y = jnp.dot(w_ref[...], x.astype(jnp.bfloat16),
                    preferred_element_type=jnp.float32)
        return jnp.maximum(y + b_ref[...], 0.0)

    x = x_ref[0].astype(jnp.float32)                     # (Cin, M)

    # Stem BasicConv2d: 3x3 conv (bias=False) + folded BN + ReLU.
    stem = conv3x3(x, stem_w_ref, stem_b_ref)            # (16, M)

    # Mixed (Inception-A style) block.  The three branch 1x1 reducers that all
    # read `stem` are fused into one (24, 16) GEMM, then split on sublanes.
    y = conv1x1(stem, mix_w_ref, mix_b_ref)              # (24, M)
    b1 = y[0:8]                                          # branch1: 1x1
    b2 = conv3x3(y[8:16], b2_w_ref, b2_b_ref)            # branch2: 1x1 -> 3x3
    b3 = conv3x3(conv3x3(y[16:24], b3a_w_ref, b3a_b_ref),
                 b3b_w_ref, b3b_b_ref)                   # branch3: 1x1 -> 3x3 -> 3x3

    # Branch4: 3x3/s1/p1 avg-pool as 9 shifted adds on the VPU/XLU (no GEMM);
    # the 1/9 divisor is folded into the b4 1x1 weight at init time.
    pool = shift_mask(stem, 0)
    for t in range(1, 9):
        pool = pool + shift_mask(stem, t)
    b4 = conv1x1(pool, b4_w_ref, b4_b_ref)               # (8, M)

    feat = jnp.concatenate([b1, b2, b3, b4], axis=0)     # (32, M)

    # Global average pool folded into the classifier: fc(mean(x)).
    gap = jnp.sum(feat, axis=1, keepdims=True) * (1.0 / M)          # (32, 1)
    logits = jnp.sum(gap * fc_w_ref[...], axis=0, keepdims=True) + fc_b_ref[...]
    o_ref[0] = logits.astype(o_ref.dtype)                # (1, n_classes)


# ----------------------------------------------------------------------------
# Deterministic parameter construction (BN folded into conv weight / bias).
# Weights are stored tap-major as (taps, Cout, Cin) bf16 so the kernel's
# (Cout, Cin) @ (Cin, M) GEMMs need no reshuffling; biases are (Cout, 1) f32.
# ----------------------------------------------------------------------------
def make_conv_bn(key, k, cin, cout, eps=1e-3):
    k1, k2, k3, k4, k5 = jax.random.split(key, 5)
    w = jax.random.normal(k1, (k, k, cin, cout), jnp.float32)
    w = w * (1.0 / (k * k * cin) ** 0.5)
    gamma = 1.0 + 0.1 * jax.random.normal(k2, (cout,), jnp.float32)
    beta = 0.1 * jax.random.normal(k3, (cout,), jnp.float32)
    mean = 0.1 * jax.random.normal(k4, (cout,), jnp.float32)
    var = jnp.abs(jax.random.normal(k5, (cout,), jnp.float32)) + 0.5
    scale = gamma / jnp.sqrt(var + eps)
    w_fold = w * scale                                    # (k, k, cin, cout)
    b_fold = beta - mean * scale                          # (cout,)
    w_taps = jnp.transpose(w_fold.reshape(k * k, cin, cout), (0, 2, 1))
    return w_taps, b_fold                                 # (k*k, cout, cin)


def init_params(key, in_ch=4, n_classes=10):
    keys = jax.random.split(key, 10)
    stem_w, stem_b = make_conv_bn(keys[0], 3, in_ch, 16)
    b1_w, b1_b = make_conv_bn(keys[1], 1, 16, 8)
    b2r_w, b2r_b = make_conv_bn(keys[2], 1, 16, 8)
    b2_w, b2_b = make_conv_bn(keys[3], 3, 8, 8)
    b3r_w, b3r_b = make_conv_bn(keys[4], 1, 16, 8)
    b3a_w, b3a_b = make_conv_bn(keys[5], 3, 8, 8)
    b3b_w, b3b_b = make_conv_bn(keys[6], 3, 8, 8)
    b4_w, b4_b = make_conv_bn(keys[7], 1, 16, 8)
    fc_w = jax.random.normal(keys[8], (32, n_classes), jnp.float32) / 32 ** 0.5
    fc_b = 0.01 * jax.random.normal(keys[9], (n_classes,), jnp.float32)

    # Fuse the three 1x1 reducers that share the mixed-block input into a
    # single (24, 16) GEMM weight; fold the avg-pool 1/9 into the b4 weight.
    mix_w = jnp.concatenate([b1_w[0], b2r_w[0], b3r_w[0]], axis=0)   # (24, 16)
    mix_b = jnp.concatenate([b1_b, b2r_b, b3r_b], axis=0)            # (24,)

    def bias_col(b):
        return b.reshape(-1, 1).astype(jnp.float32)

    return {
        "stem_w": stem_w.astype(jnp.bfloat16),            # (9, 16, in_ch)
        "stem_b": bias_col(stem_b),
        "mix1x1_w": mix_w.astype(jnp.bfloat16),           # (24, 16)
        "mix1x1_b": bias_col(mix_b),
        "b2_w": b2_w.astype(jnp.bfloat16),                # (9, 8, 8)
        "b2_b": bias_col(b2_b),
        "b3a_w": b3a_w.astype(jnp.bfloat16),
        "b3a_b": bias_col(b3a_b),
        "b3b_w": b3b_w.astype(jnp.bfloat16),
        "b3b_b": bias_col(b3b_b),
        "b4_w": (b4_w[0] * (1.0 / 9.0)).astype(jnp.bfloat16),  # (8, 16), 1/9 folded
        "b4_b": bias_col(b4_b),
        "fc_w": fc_w,                                     # (32, n_classes) f32
        "fc_b": fc_b.reshape(1, -1).astype(jnp.float32),  # (1, n_classes)
    }


# ----------------------------------------------------------------------------
# Forward pass (mirrors Inception.forward: x -> model(x) -> logits).
# ----------------------------------------------------------------------------
def _rep_spec(arr):
    zeros = (0,) * arr.ndim
    return pl.BlockSpec(arr.shape, lambda i: zeros)


def inception_forward(x_nchw, params):
    N, C, H, W = x_nchw.shape
    M = H * W
    n_classes = params["fc_w"].shape[1]

    # NCHW already flattens into the kernel's (C, H*W) layout — no transpose.
    x = x_nchw.reshape(N, C, M).astype(jnp.bfloat16)

    # Host-built 0/1 padding masks for the 9 conv/pool taps (trace-time const).
    taps = [(dy, dx) for dy in (-1, 0, 1) for dx in (-1, 0, 1)]
    hh = np.arange(H).reshape(H, 1)
    ww = np.arange(W).reshape(1, W)
    mask_np = np.stack([
        ((hh + dy >= 0) & (hh + dy < H) & (ww + dx >= 0) & (ww + dx < W))
        .reshape(1, M) for dy, dx in taps
    ]).astype(np.float32)                                 # (9, 1, M)
    masks = jnp.asarray(mask_np)

    order = ["stem_w", "stem_b", "mix1x1_w", "mix1x1_b",
             "b2_w", "b2_b", "b3a_w", "b3a_b", "b3b_w", "b3b_b",
             "b4_w", "b4_b", "fc_w", "fc_b"]
    weights = [params[k] for k in order]

    # Advisory cost estimate for the XLA scheduler.
    macs = M * (9 * C * 16 + 16 * 24 + 3 * 9 * 8 * 8 + 16 * 8) + 32 * n_classes
    flops = N * (2 * macs + 9 * 16 * M + 32 * M)
    bytes_accessed = (int(x.size) * x.dtype.itemsize
                      + int(masks.size) * 4
                      + sum(int(w.size) * w.dtype.itemsize for w in weights)
                      + N * n_classes * 4)

    out = pl.pallas_call(
        functools.partial(_inception_kernel, H=H, W=W),
        out_shape=jax.ShapeDtypeStruct((N, 1, n_classes), jnp.float32),
        grid_spec=pltpu.PrefetchScalarGridSpec(
            num_scalar_prefetch=0,
            grid=(N,),
            in_specs=[pl.BlockSpec((1, C, M), lambda i: (i, 0, 0)),
                      _rep_spec(masks)] + [_rep_spec(w) for w in weights],
            out_specs=pl.BlockSpec((1, 1, n_classes), lambda i: (i, 0, 0)),
        ),
        compiler_params=pltpu.CompilerParams(
            dimension_semantics=("parallel",),            # feeds both v7x TCs
            vmem_limit_bytes=32 * 1024 * 1024),
        cost_estimate=pl.CostEstimate(flops=flops, transcendentals=0,
                                      bytes_accessed=bytes_accessed),
    )(x, masks, *weights)
    return out.reshape(N, n_classes)


if __name__ == "__main__":
    key = jax.random.PRNGKey(0)
    kx, kp = jax.random.split(key)

    # Small NCHW input consistent with the PyTorch module's image input.
    x = jax.random.normal(kx, (2, 4, 16, 16), jnp.float32)
    params = init_params(kp, in_ch=4, n_classes=10)

    logits = jax.jit(inception_forward)(x, params)
    jax.block_until_ready(logits)
    assert logits.shape == (2, 10) and logits.dtype == jnp.float32
    print("KERNEL_OK")
</pallas_src>

<mosaic_0001>
module attributes {stable_mosaic.version = 11 : i64} {
  func.func @_inception_kernel(%arg0: i32, %arg1: memref<1x4x256xbf16, #tpu.memory_space<vmem>>, %arg2: memref<9x1x256xf32, #tpu.memory_space<vmem>>, %arg3: memref<9x16x4xbf16, #tpu.memory_space<vmem>>, %arg4: memref<16x1xf32, #tpu.memory_space<vmem>>, %arg5: memref<24x16xbf16, #tpu.memory_space<vmem>>, %arg6: memref<24x1xf32, #tpu.memory_space<vmem>>, %arg7: memref<9x8x8xbf16, #tpu.memory_space<vmem>>, %arg8: memref<8x1xf32, #tpu.memory_space<vmem>>, %arg9: memref<9x8x8xbf16, #tpu.memory_space<vmem>>, %arg10: memref<8x1xf32, #tpu.memory_space<vmem>>, %arg11: memref<9x8x8xbf16, #tpu.memory_space<vmem>>, %arg12: memref<8x1xf32, #tpu.memory_space<vmem>>, %arg13: memref<8x16xbf16, #tpu.memory_space<vmem>>, %arg14: memref<8x1xf32, #tpu.memory_space<vmem>>, %arg15: memref<32x10xf32, #tpu.memory_space<vmem>>, %arg16: memref<1x10xf32, #tpu.memory_space<vmem>>, %arg17: memref<1x1x10xf32, #tpu.memory_space<vmem>>) attributes {dimension_semantics = [#tpu.dimension_semantics<parallel>], iteration_bounds = array<i64: 2>, scalar_prefetch = 0 : i64, scratch_operands = 0 : i64, tpu.core_type = #tpu.core_type<tc>, window_params = [{transform_indices = @transform_0, window_bounds = array<i64: 1, 4, 256>}, {pipeline_mode = #tpu.pipeline_mode<synchronous>, transform_indices = @transform_1, window_bounds = array<i64: 9, 1, 256>}, {pipeline_mode = #tpu.pipeline_mode<synchronous>, transform_indices = @transform_2, window_bounds = array<i64: 9, 16, 4>}, {pipeline_mode = #tpu.pipeline_mode<synchronous>, transform_indices = @transform_3, window_bounds = array<i64: 16, 1>}, {pipeline_mode = #tpu.pipeline_mode<synchronous>, transform_indices = @transform_4, window_bounds = array<i64: 24, 16>}, {pipeline_mode = #tpu.pipeline_mode<synchronous>, transform_indices = @transform_5, window_bounds = array<i64: 24, 1>}, {pipeline_mode = #tpu.pipeline_mode<synchronous>, transform_indices = @transform_6, window_bounds = array<i64: 9, 8, 8>}, {pipeline_mode = #tpu.pipeline_mode<synchronous>, transform_indices = @transform_7, window_bounds = array<i64: 8, 1>}, {pipeline_mode = #tpu.pipeline_mode<synchronous>, transform_indices = @transform_8, window_bounds = array<i64: 9, 8, 8>}, {pipeline_mode = #tpu.pipeline_mode<synchronous>, transform_indices = @transform_9, window_bounds = array<i64: 8, 1>}, {pipeline_mode = #tpu.pipeline_mode<synchronous>, transform_indices = @transform_10, window_bounds = array<i64: 9, 8, 8>}, {pipeline_mode = #tpu.pipeline_mode<synchronous>, transform_indices = @transform_11, window_bounds = array<i64: 8, 1>}, {pipeline_mode = #tpu.pipeline_mode<synchronous>, transform_indices = @transform_12, window_bounds = array<i64: 8, 16>}, {pipeline_mode = #tpu.pipeline_mode<synchronous>, transform_indices = @transform_13, window_bounds = array<i64: 8, 1>}, {pipeline_mode = #tpu.pipeline_mode<synchronous>, transform_indices = @transform_14, window_bounds = array<i64: 32, 10>}, {pipeline_mode = #tpu.pipeline_mode<synchronous>, transform_indices = @transform_15, window_bounds = array<i64: 1, 10>}, {transform_indices = @transform_16, window_bounds = array<i64: 1, 1, 10>}]} {
    %c0 = arith.constant 0 : index
    %c0_0 = arith.constant 0 : index
    %c0_1 = arith.constant 0 : index
    %0 = vector.load %arg2[%c0, %c0_0, %c0_1] : memref<9x1x256xf32, #tpu.memory_space<vmem>>, vector<1x1x256xf32>
    %1 = vector.shape_cast %0 : vector<1x1x256xf32> to vector<1x256xf32>
    %c1 = arith.constant 1 : index
    %c0_2 = arith.constant 0 : index
    %c0_3 = arith.constant 0 : index
    %2 = vector.load %arg2[%c1, %c0_2, %c0_3] : memref<9x1x256xf32, #tpu.memory_space<vmem>>, vector<1x1x256xf32>
    %3 = vector.shape_cast %2 : vector<1x1x256xf32> to vector<1x256xf32>
    %c2 = arith.constant 2 : index
    %c0_4 = arith.constant 0 : index
    %c0_5 = arith.constant 0 : index
    %4 = vector.load %arg2[%c2, %c0_4, %c0_5] : memref<9x1x256xf32, #tpu.memory_space<vmem>>, vector<1x1x256xf32>
    %5 = vector.shape_cast %4 : vector<1x1x256xf32> to vector<1x256xf32>
    %c3 = arith.constant 3 : index
    %c0_6 = arith.constant 0 : index
    %c0_7 = arith.constant 0 : index
    %6 = vector.load %arg2[%c3, %c0_6, %c0_7] : memref<9x1x256xf32, #tpu.memory_space<vmem>>, vector<1x1x256xf32>
    %7 = vector.shape_cast %6 : vector<1x1x256xf32> to vector<1x256xf32>
    %c4 = arith.constant 4 : index
    %c0_8 = arith.constant 0 : index
    %c0_9 = arith.constant 0 : index
    %8 = vector.load %arg2[%c4, %c0_8, %c0_9] : memref<9x1x256xf32, #tpu.memory_space<vmem>>, vector<1x1x256xf32>
    %9 = vector.shape_cast %8 : vector<1x1x256xf32> to vector<1x256xf32>
    %c5 = arith.constant 5 : index
    %c0_10 = arith.constant 0 : index
    %c0_11 = arith.constant 0 : index
    %10 = vector.load %arg2[%c5, %c0_10, %c0_11] : memref<9x1x256xf32, #tpu.memory_space<vmem>>, vector<1x1x256xf32>
    %11 = vector.shape_cast %10 : vector<1x1x256xf32> to vector<1x256xf32>
    %c6 = arith.constant 6 : index
    %c0_12 = arith.constant 0 : index
    %c0_13 = arith.constant 0 : index
    %12 = vector.load %arg2[%c6, %c0_12, %c0_13] : memref<9x1x256xf32, #tpu.memory_space<vmem>>, vector<1x1x256xf32>
    %13 = vector.shape_cast %12 : vector<1x1x256xf32> to vector<1x256xf32>
    %c7 = arith.constant 7 : index
    %c0_14 = arith.constant 0 : index
    %c0_15 = arith.constant 0 : index
    %14 = vector.load %arg2[%c7, %c0_14, %c0_15] : memref<9x1x256xf32, #tpu.memory_space<vmem>>, vector<1x1x256xf32>
    %15 = vector.shape_cast %14 : vector<1x1x256xf32> to vector<1x256xf32>
    %c8 = arith.constant 8 : index
    %c0_16 = arith.constant 0 : index
    %c0_17 = arith.constant 0 : index
    %16 = vector.load %arg2[%c8, %c0_16, %c0_17] : memref<9x1x256xf32, #tpu.memory_space<vmem>>, vector<1x1x256xf32>
    %17 = vector.shape_cast %16 : vector<1x1x256xf32> to vector<1x256xf32>
    %c0_18 = arith.constant 0 : index
    %c0_19 = arith.constant 0 : index
    %c0_20 = arith.constant 0 : index
    %18 = vector.load %arg1[%c0_18, %c0_19, %c0_20] : memref<1x4x256xbf16, #tpu.memory_space<vmem>>, vector<1x4x256xbf16>
    %19 = vector.shape_cast %18 : vector<1x4x256xbf16> to vector<4x256xbf16>
    %20 = arith.extf %19 : vector<4x256xbf16> to vector<4x256xf32>
    %cst = arith.constant 0.000000e+00 : f32
    %21 = vector.broadcast %cst : f32 to vector<16x256xf32>
    %c0_21 = arith.constant 0 : index
    %c0_22 = arith.constant 0 : index
    %c0_23 = arith.constant 0 : index
    %22 = vector.load %arg3[%c0_21, %c0_22, %c0_23] : memref<9x16x4xbf16, #tpu.memory_space<vmem>>, vector<1x16x4xbf16>
    %23 = vector.shape_cast %22 : vector<1x16x4xbf16> to vector<16x4xbf16>
    %c17_i32 = arith.constant 17 : i32
    %24 = tpu.dynamic_rotate %20 by %c17_i32 dim 1 : vector<4x256xf32>, i32 -> vector<4x256xf32>
    %25 = vector.broadcast %1 : vector<1x256xf32> to vector<4x256xf32>
    %26 = arith.mulf %24, %25 : vector<4x256xf32>
    %27 = arith.truncf %26 : vector<4x256xf32> to vector<4x256xbf16>
    %cst_24 = arith.constant dense<0.000000e+00> : vector<16x256xf32>
    %28 = tpu.matmul %23, %27, %cst_24 {dimension_numbers = #tpu.dot_dimension_numbers<[1], [0], [0], [1], [0, 0, 1, 1], [], []>} : vector<16x4xbf16>, vector<4x256xbf16>, vector<16x256xf32> -> vector<16x256xf32>
    %29 = arith.addf %21, %28 : vector<16x256xf32>
    %c1_25 = arith.constant 1 : index
    %c0_26 = arith.constant 0 : index
    %c0_27 = arith.constant 0 : index
    %30 = vector.load %arg3[%c1_25, %c0_26, %c0_27] : memref<9x16x4xbf16, #tpu.memory_space<vmem>>, vector<1x16x4xbf16>
    %31 = vector.shape_cast %30 : vector<1x16x4xbf16> to vector<16x4xbf16>
    %c16_i32 = arith.constant 16 : i32
    %32 = tpu.dynamic_rotate %20 by %c16_i32 dim 1 : vector<4x256xf32>, i32 -> vector<4x256xf32>
    %33 = vector.broadcast %3 : vector<1x256xf32> to vector<4x256xf32>
    %34 = arith.mulf %32, %33 : vector<4x256xf32>
    %35 = arith.truncf %34 : vector<4x256xf32> to vector<4x256xbf16>
    %cst_28 = arith.constant dense<0.000000e+00> : vector<16x256xf32>
    %36 = tpu.matmul %31, %35, %cst_28 {dimension_numbers = #tpu.dot_dimension_numbers<[1], [0], [0], [1], [0, 0, 1, 1], [], []>} : vector<16x4xbf16>, vector<4x256xbf16>, vector<16x256xf32> -> vector<16x256xf32>
    %37 = arith.addf %29, %36 : vector<16x256xf32>
    %c2_29 = arith.constant 2 : index
    %c0_30 = arith.constant 0 : index
    %c0_31 = arith.constant 0 : index
    %38 = vector.load %arg3[%c2_29, %c0_30, %c0_31] : memref<9x16x4xbf16, #tpu.memory_space<vmem>>, vector<1x16x4xbf16>
    %39 = vector.shape_cast %38 : vector<1x16x4xbf16> to vector<16x4xbf16>
    %c15_i32 = arith.constant 15 : i32
    %40 = tpu.dynamic_rotate %20 by %c15_i32 dim 1 : vector<4x256xf32>, i32 -> vector<4x256xf32>
    %41 = vector.broadcast %5 : vector<1x256xf32> to vector<4x256xf32>
    %42 = arith.mulf %40, %41 : vector<4x256xf32>
    %43 = arith.truncf %42 : vector<4x256xf32> to vector<4x256xbf16>
    %cst_32 = arith.constant dense<0.000000e+00> : vector<16x256xf32>
    %44 = tpu.matmul %39, %43, %cst_32 {dimension_numbers = #tpu.dot_dimension_numbers<[1], [0], [0], [1], [0, 0, 1, 1], [], []>} : vector<16x4xbf16>, vector<4x256xbf16>, vector<16x256xf32> -> vector<16x256xf32>
    %45 = arith.addf %37, %44 : vector<16x256xf32>
    %c3_33 = arith.constant 3 : index
    %c0_34 = arith.constant 0 : index
    %c0_35 = arith.constant 0 : index
    %46 = vector.load %arg3[%c3_33, %c0_34, %c0_35] : memref<9x16x4xbf16, #tpu.memory_space<vmem>>, vector<1x16x4xbf16>
    %47 = vector.shape_cast %46 : vector<1x16x4xbf16> to vector<16x4xbf16>
    %c1_i32 = arith.constant 1 : i32
    %48 = tpu.dynamic_rotate %20 by %c1_i32 dim 1 : vector<4x256xf32>, i32 -> vector<4x256xf32>
    %49 = vector.broadcast %7 : vector<1x256xf32> to vector<4x256xf32>
    %50 = arith.mulf %48, %49 : vector<4x256xf32>
    %51 = arith.truncf %50 : vector<4x256xf32> to vector<4x256xbf16>
    %cst_36 = arith.constant dense<0.000000e+00> : vector<16x256xf32>
    %52 = tpu.matmul %47, %51, %cst_36 {dimension_numbers = #tpu.dot_dimension_numbers<[1], [0], [0], [1], [0, 0, 1, 1], [], []>} : vector<16x4xbf16>, vector<4x256xbf16>, vector<16x256xf32> -> vector<16x256xf32>
    %53 = arith.addf %45, %52 : vector<16x256xf32>
    %c4_37 = arith.constant 4 : index
    %c0_38 = arith.constant 0 : index
    %c0_39 = arith.constant 0 : index
    %54 = vector.load %arg3[%c4_37, %c0_38, %c0_39] : memref<9x16x4xbf16, #tpu.memory_space<vmem>>, vector<1x16x4xbf16>
    %55 = vector.shape_cast %54 : vector<1x16x4xbf16> to vector<16x4xbf16>
    %56 = vector.broadcast %9 : vector<1x256xf32> to vector<4x256xf32>
    %57 = arith.mulf %20, %56 : vector<4x256xf32>
    %58 = arith.truncf %57 : vector<4x256xf32> to vector<4x256xbf16>
    %cst_40 = arith.constant dense<0.000000e+00> : vector<16x256xf32>
    %59 = tpu.matmul %55, %58, %cst_40 {dimension_numbers = #tpu.dot_dimension_numbers<[1], [0], [0], [1], [0, 0, 1, 1], [], []>} : vector<16x4xbf16>, vector<4x256xbf16>, vector<16x256xf32> -> vector<16x256xf32>
    %60 = arith.addf %53, %59 : vector<16x256xf32>
    %c5_41 = arith.constant 5 : index
    %c0_42 = arith.constant 0 : index
    %c0_43 = arith.constant 0 : index
    %61 = vector.load %arg3[%c5_41, %c0_42, %c0_43] : memref<9x16x4xbf16, #tpu.memory_space<vmem>>, vector<1x16x4xbf16>
    %62 = vector.shape_cast %61 : vector<1x16x4xbf16> to vector<16x4xbf16>
    %c255_i32 = arith.constant 255 : i32
    %63 = tpu.dynamic_rotate %20 by %c255_i32 dim 1 : vector<4x256xf32>, i32 -> vector<4x256xf32>
    %64 = vector.broadcast %11 : vector<1x256xf32> to vector<4x256xf32>
    %65 = arith.mulf %63, %64 : vector<4x256xf32>
    %66 = arith.truncf %65 : vector<4x256xf32> to vector<4x256xbf16>
    %cst_44 = arith.constant dense<0.000000e+00> : vector<16x256xf32>
    %67 = tpu.matmul %62, %66, %cst_44 {dimension_numbers = #tpu.dot_dimension_numbers<[1], [0], [0], [1], [0, 0, 1, 1], [], []>} : vector<16x4xbf16>, vector<4x256xbf16>, vector<16x256xf32> -> vector<16x256xf32>
    %68 = arith.addf %60, %67 : vector<16x256xf32>
    %c6_45 = arith.constant 6 : index
    %c0_46 = arith.constant 0 : index
    %c0_47 = arith.constant 0 : index
    %69 = vector.load %arg3[%c6_45, %c0_46, %c0_47] : memref<9x16x4xbf16, #tpu.memory_space<vmem>>, vector<1x16x4xbf16>
    %70 = vector.shape_cast %69 : vector<1x16x4xbf16> to vector<16x4xbf16>
    %c241_i32 = arith.constant 241 : i32
    %71 = tpu.dynamic_rotate %20 by %c241_i32 dim 1 : vector<4x256xf32>, i32 -> vector<4x256xf32>
    %72 = vector.broadcast %13 : vector<1x256xf32> to vector<4x256xf32>
    %73 = arith.mulf %71, %72 : vector<4x256xf32>
    %74 = arith.truncf %73 : vector<4x256xf32> to vector<4x256xbf16>
    %cst_48 = arith.constant dense<0.000000e+00> : vector<16x256xf32>
    %75 = tpu.matmul %70, %74, %cst_48 {dimension_numbers = #tpu.dot_dimension_numbers<[1], [0], [0], [1], [0, 0, 1, 1], [], []>} : vector<16x4xbf16>, vector<4x256xbf16>, vector<16x256xf32> -> vector<16x256xf32>
    %76 = arith.addf %68, %75 : vector<16x256xf32>
    %c7_49 = arith.constant 7 : index
    %c0_50 = arith.constant 0 : index
    %c0_51 = arith.constant 0 : index
    %77 = vector.load %arg3[%c7_49, %c0_50, %c0_51] : memref<9x16x4xbf16, #tpu.memory_space<vmem>>, vector<1x16x4xbf16>
    %78 = vector.shape_cast %77 : vector<1x16x4xbf16> to vector<16x4xbf16>
    %c240_i32 = arith.constant 240 : i32
    %79 = tpu.dynamic_rotate %20 by %c240_i32 dim 1 : vector<4x256xf32>, i32 -> vector<4x256xf32>
    %80 = vector.broadcast %15 : vector<1x256xf32> to vector<4x256xf32>
    %81 = arith.mulf %79, %80 : vector<4x256xf32>
    %82 = arith.truncf %81 : vector<4x256xf32> to vector<4x256xbf16>
    %cst_52 = arith.constant dense<0.000000e+00> : vector<16x256xf32>
    %83 = tpu.matmul %78, %82, %cst_52 {dimension_numbers = #tpu.dot_dimension_numbers<[1], [0], [0], [1], [0, 0, 1, 1], [], []>} : vector<16x4xbf16>, vector<4x256xbf16>, vector<16x256xf32> -> vector<16x256xf32>
    %84 = arith.addf %76, %83 : vector<16x256xf32>
    %c8_53 = arith.constant 8 : index
    %c0_54 = arith.constant 0 : index
    %c0_55 = arith.constant 0 : index
    %85 = vector.load %arg3[%c8_53, %c0_54, %c0_55] : memref<9x16x4xbf16, #tpu.memory_space<vmem>>, vector<1x16x4xbf16>
    %86 = vector.shape_cast %85 : vector<1x16x4xbf16> to vector<16x4xbf16>
    %c239_i32 = arith.constant 239 : i32
    %87 = tpu.dynamic_rotate %20 by %c239_i32 dim 1 : vector<4x256xf32>, i32 -> vector<4x256xf32>
    %88 = vector.broadcast %17 : vector<1x256xf32> to vector<4x256xf32>
    %89 = arith.mulf %87, %88 : vector<4x256xf32>
    %90 = arith.truncf %89 : vector<4x256xf32> to vector<4x256xbf16>
    %cst_56 = arith.constant dense<0.000000e+00> : vector<16x256xf32>
    %91 = tpu.matmul %86, %90, %cst_56 {dimension_numbers = #tpu.dot_dimension_numbers<[1], [0], [0], [1], [0, 0, 1, 1], [], []>} : vector<16x4xbf16>, vector<4x256xbf16>, vector<16x256xf32> -> vector<16x256xf32>
    %92 = arith.addf %84, %91 : vector<16x256xf32>
    %c0_57 = arith.constant 0 : index
    %c0_58 = arith.constant 0 : index
    %93 = vector.load %arg4[%c0_57, %c0_58] : memref<16x1xf32, #tpu.memory_space<vmem>>, vector<16x1xf32>
    %94 = vector.broadcast %93 : vector<16x1xf32> to vector<16x256xf32>
    %95 = arith.addf %92, %94 : vector<16x256xf32>
    %cst_59 = arith.constant 0.000000e+00 : f32
    %96 = vector.broadcast %cst_59 : f32 to vector<16x256xf32>
    %97 = arith.maximumf %95, %96 : vector<16x256xf32>
    %c0_60 = arith.constant 0 : index
    %c0_61 = arith.constant 0 : index
    %98 = vector.load %arg5[%c0_60, %c0_61] : memref<24x16xbf16, #tpu.memory_space<vmem>>, vector<24x16xbf16>
    %99 = arith.truncf %97 : vector<16x256xf32> to vector<16x256xbf16>
    %cst_62 = arith.constant dense<0.000000e+00> : vector<24x256xf32>
    %100 = tpu.matmul %98, %99, %cst_62 {dimension_numbers = #tpu.dot_dimension_numbers<[1], [0], [0], [1], [0, 0, 1, 1], [], []>} : vector<24x16xbf16>, vector<16x256xbf16>, vector<24x256xf32> -> vector<24x256xf32>
    %c0_63 = arith.constant 0 : index
    %c0_64 = arith.constant 0 : index
    %101 = vector.load %arg6[%c0_63, %c0_64] : memref<24x1xf32, #tpu.memory_space<vmem>>, vector<24x1xf32>
    %102 = vector.broadcast %101 : vector<24x1xf32> to vector<24x256xf32>
    %103 = arith.addf %100, %102 : vector<24x256xf32>
    %cst_65 = arith.constant 0.000000e+00 : f32
    %104 = vector.broadcast %cst_65 : f32 to vector<24x256xf32>
    %105 = arith.maximumf %103, %104 : vector<24x256xf32>
    %106 = vector.extract_strided_slice %105 {offsets = [0, 0], sizes = [8, 256], strides = [1, 1]} : vector<24x256xf32> to vector<8x256xf32>
    %107 = vector.extract_strided_slice %105 {offsets = [8, 0], sizes = [8, 256], strides = [1, 1]} : vector<24x256xf32> to vector<8x256xf32>
    %cst_66 = arith.constant 0.000000e+00 : f32
    %108 = vector.broadcast %cst_66 : f32 to vector<8x256xf32>
    %c0_67 = arith.constant 0 : index
    %c0_68 = arith.constant 0 : index
    %c0_69 = arith.constant 0 : index
    %109 = vector.load %arg7[%c0_67, %c0_68, %c0_69] : memref<9x8x8xbf16, #tpu.memory_space<vmem>>, vector<1x8x8xbf16>
    %110 = vector.shape_cast %109 : vector<1x8x8xbf16> to vector<8x8xbf16>
    %c17_i32_70 = arith.constant 17 : i32
    %111 = tpu.dynamic_rotate %107 by %c17_i32_70 dim 1 : vector<8x256xf32>, i32 -> vector<8x256xf32>
    %112 = vector.broadcast %1 : vector<1x256xf32> to vector<8x256xf32>
    %113 = arith.mulf %111, %112 : vector<8x256xf32>
    %114 = arith.truncf %113 : vector<8x256xf32> to vector<8x256xbf16>
    %cst_71 = arith.constant dense<0.000000e+00> : vector<8x256xf32>
    %115 = tpu.matmul %110, %114, %cst_71 {dimension_numbers = #tpu.dot_dimension_numbers<[1], [0], [0], [1], [0, 0, 1, 1], [], []>} : vector<8x8xbf16>, vector<8x256xbf16>, vector<8x256xf32> -> vector<8x256xf32>
    %116 = arith.addf %108, %115 : vector<8x256xf32>
    %c1_72 = arith.constant 1 : index
    %c0_73 = arith.constant 0 : index
    %c0_74 = arith.constant 0 : index
    %117 = vector.load %arg7[%c1_72, %c0_73, %c0_74] : memref<9x8x8xbf16, #tpu.memory_space<vmem>>, vector<1x8x8xbf16>
    %118 = vector.shape_cast %117 : vector<1x8x8xbf16> to vector<8x8xbf16>
    %c16_i32_75 = arith.constant 16 : i32
    %119 = tpu.dynamic_rotate %107 by %c16_i32_75 dim 1 : vector<8x256xf32>, i32 -> vector<8x256xf32>
    %120 = vector.broadcast %3 : vector<1x256xf32> to vector<8x256xf32>
    %121 = arith.mulf %119, %120 : vector<8x256xf32>
    %122 = arith.truncf %121 : vector<8x256xf32> to vector<8x256xbf16>
    %cst_76 = arith.constant dense<0.000000e+00> : vector<8x256xf32>
    %123 = tpu.matmul %118, %122, %cst_76 {dimension_numbers = #tpu.dot_dimension_numbers<[1], [0], [0], [1], [0, 0, 1, 1], [], []>} : vector<8x8xbf16>, vector<8x256xbf16>, vector<8x256xf32> -> vector<8x256xf32>
    %124 = arith.addf %116, %123 : vector<8x256xf32>
    %c2_77 = arith.constant 2 : index
    %c0_78 = arith.constant 0 : index
    %c0_79 = arith.constant 0 : index
    %125 = vector.load %arg7[%c2_77, %c0_78, %c0_79] : memref<9x8x8xbf16, #tpu.memory_space<vmem>>, vector<1x8x8xbf16>
    %126 = vector.shape_cast %125 : vector<1x8x8xbf16> to vector<8x8xbf16>
    %c15_i32_80 = arith.constant 15 : i32
    %127 = tpu.dynamic_rotate %107 by %c15_i32_80 dim 1 : vector<8x256xf32>, i32 -> vector<8x256xf32>
    %128 = vector.broadcast %5 : vector<1x256xf32> to vector<8x256xf32>
    %129 = arith.mulf %127, %128 : vector<8x256xf32>
    %130 = arith.truncf %129 : vector<8x256xf32> to vector<8x256xbf16>
    %cst_81 = arith.constant dense<0.000000e+00> : vector<8x256xf32>
    %131 = tpu.matmul %126, %130, %cst_81 {dimension_numbers = #tpu.dot_dimension_numbers<[1], [0], [0], [1], [0, 0, 1, 1], [], []>} : vector<8x8xbf16>, vector<8x256xbf16>, vector<8x256xf32> -> vector<8x256xf32>
    %132 = arith.addf %124, %131 : vector<8x256xf32>
    %c3_82 = arith.constant 3 : index
    %c0_83 = arith.constant 0 : index
    %c0_84 = arith.constant 0 : index
    %133 = vector.load %arg7[%c3_82, %c0_83, %c0_84] : memref<9x8x8xbf16, #tpu.memory_space<vmem>>, vector<1x8x8xbf16>
    %134 = vector.shape_cast %133 : vector<1x8x8xbf16> to vector<8x8xbf16>
    %c1_i32_85 = arith.constant 1 : i32
    %135 = tpu.dynamic_rotate %107 by %c1_i32_85 dim 1 : vector<8x256xf32>, i32 -> vector<8x256xf32>
    %136 = vector.broadcast %7 : vector<1x256xf32> to vector<8x256xf32>
    %137 = arith.mulf %135, %136 : vector<8x256xf32>
    %138 = arith.truncf %137 : vector<8x256xf32> to vector<8x256xbf16>
    %cst_86 = arith.constant dense<0.000000e+00> : vector<8x256xf32>
    %139 = tpu.matmul %134, %138, %cst_86 {dimension_numbers = #tpu.dot_dimension_numbers<[1], [0], [0], [1], [0, 0, 1, 1], [], []>} : vector<8x8xbf16>, vector<8x256xbf16>, vector<8x256xf32> -> vector<8x256xf32>
    %140 = arith.addf %132, %139 : vector<8x256xf32>
    %c4_87 = arith.constant 4 : index
    %c0_88 = arith.constant 0 : index
    %c0_89 = arith.constant 0 : index
    %141 = vector.load %arg7[%c4_87, %c0_88, %c0_89] : memref<9x8x8xbf16, #tpu.memory_space<vmem>>, vector<1x8x8xbf16>
    %142 = vector.shape_cast %141 : vector<1x8x8xbf16> to vector<8x8xbf16>
    %143 = vector.broadcast %9 : vector<1x256xf32> to vector<8x256xf32>
    %144 = arith.mulf %107, %143 : vector<8x256xf32>
    %145 = arith.truncf %144 : vector<8x256xf32> to vector<8x256xbf16>
    %cst_90 = arith.constant dense<0.000000e+00> : vector<8x256xf32>
    %146 = tpu.matmul %142, %145, %cst_90 {dimension_numbers = #tpu.dot_dimension_numbers<[1], [0], [0], [1], [0, 0, 1, 1], [], []>} : vector<8x8xbf16>, vector<8x256xbf16>, vector<8x256xf32> -> vector<8x256xf32>
    %147 = arith.addf %140, %146 : vector<8x256xf32>
    %c5_91 = arith.constant 5 : index
    %c0_92 = arith.constant 0 : index
    %c0_93 = arith.constant 0 : index
    %148 = vector.load %arg7[%c5_91, %c0_92, %c0_93] : memref<9x8x8xbf16, #tpu.memory_space<vmem>>, vector<1x8x8xbf16>
    %149 = vector.shape_cast %148 : vector<1x8x8xbf16> to vector<8x8xbf16>
    %c255_i32_94 = arith.constant 255 : i32
    %150 = tpu.dynamic_rotate %107 by %c255_i32_94 dim 1 : vector<8x256xf32>, i32 -> vector<8x256xf32>
    %151 = vector.broadcast %11 : vector<1x256xf32> to vector<8x256xf32>
    %152 = arith.mulf %150, %151 : vector<8x256xf32>
    %153 = arith.truncf %152 : vector<8x256xf32> to vector<8x256xbf16>
    %cst_95 = arith.constant dense<0.000000e+00> : vector<8x256xf32>
    %154 = tpu.matmul %149, %153, %cst_95 {dimension_numbers = #tpu.dot_dimension_numbers<[1], [0], [0], [1], [0, 0, 1, 1], [], []>} : vector<8x8xbf16>, vector<8x256xbf16>, vector<8x256xf32> -> vector<8x256xf32>
    %155 = arith.addf %147, %154 : vector<8x256xf32>
    %c6_96 = arith.constant 6 : index
    %c0_97 = arith.constant 0 : index
    %c0_98 = arith.constant 0 : index
    %156 = vector.load %arg7[%c6_96, %c0_97, %c0_98] : memref<9x8x8xbf16, #tpu.memory_space<vmem>>, vector<1x8x8xbf16>
    %157 = vector.shape_cast %156 : vector<1x8x8xbf16> to vector<8x8xbf16>
    %c241_i32_99 = arith.constant 241 : i32
    %158 = tpu.dynamic_rotate %107 by %c241_i32_99 dim 1 : vector<8x256xf32>, i32 -> vector<8x256xf32>
    %159 = vector.broadcast %13 : vector<1x256xf32> to vector<8x256xf32>
    %160 = arith.mulf %158, %159 : vector<8x256xf32>
    %161 = arith.truncf %160 : vector<8x256xf32> to vector<8x256xbf16>
    %cst_100 = arith.constant dense<0.000000e+00> : vector<8x256xf32>
    %162 = tpu.matmul %157, %161, %cst_100 {dimension_numbers = #tpu.dot_dimension_numbers<[1], [0], [0], [1], [0, 0, 1, 1], [], []>} : vector<8x8xbf16>, vector<8x256xbf16>, vector<8x256xf32> -> vector<8x256xf32>
    %163 = arith.addf %155, %162 : vector<8x256xf32>
    %c7_101 = arith.constant 7 : index
    %c0_102 = arith.constant 0 : index
    %c0_103 = arith.constant 0 : index
    %164 = vector.load %arg7[%c7_101, %c0_102, %c0_103] : memref<9x8x8xbf16, #tpu.memory_space<vmem>>, vector<1x8x8xbf16>
    %165 = vector.shape_cast %164 : vector<1x8x8xbf16> to vector<8x8xbf16>
    %c240_i32_104 = arith.constant 240 : i32
    %166 = tpu.dynamic_rotate %107 by %c240_i32_104 dim 1 : vector<8x256xf32>, i32 -> vector<8x256xf32>
    %167 = vector.broadcast %15 : vector<1x256xf32> to vector<8x256xf32>
    %168 = arith.mulf %166, %167 : vector<8x256xf32>
    %169 = arith.truncf %168 : vector<8x256xf32> to vector<8x256xbf16>
    %cst_105 = arith.constant dense<0.000000e+00> : vector<8x256xf32>
    %170 = tpu.matmul %165, %169, %cst_105 {dimension_numbers = #tpu.dot_dimension_numbers<[1], [0], [0], [1], [0, 0, 1, 1], [], []>} : vector<8x8xbf16>, vector<8x256xbf16>, vector<8x256xf32> -> vector<8x256xf32>
    %171 = arith.addf %163, %170 : vector<8x256xf32>
    %c8_106 = arith.constant 8 : index
    %c0_107 = arith.constant 0 : index
    %c0_108 = arith.constant 0 : index
    %172 = vector.load %arg7[%c8_106, %c0_107, %c0_108] : memref<9x8x8xbf16, #tpu.memory_space<vmem>>, vector<1x8x8xbf16>
    %173 = vector.shape_cast %172 : vector<1x8x8xbf16> to vector<8x8xbf16>
    %c239_i32_109 = arith.constant 239 : i32
    %174 = tpu.dynamic_rotate %107 by %c239_i32_109 dim 1 : vector<8x256xf32>, i32 -> vector<8x256xf32>
    %175 = vector.broadcast %17 : vector<1x256xf32> to vector<8x256xf32>
    %176 = arith.mulf %174, %175 : vector<8x256xf32>
    %177 = arith.truncf %176 : vector<8x256xf32> to vector<8x256xbf16>
    %cst_110 = arith.constant dense<0.000000e+00> : vector<8x256xf32>
    %178 = tpu.matmul %173, %177, %cst_110 {dimension_numbers = #tpu.dot_dimension_numbers<[1], [0], [0], [1], [0, 0, 1, 1], [], []>} : vector<8x8xbf16>, vector<8x256xbf16>, vector<8x256xf32> -> vector<8x256xf32>
    %179 = arith.addf %171, %178 : vector<8x256xf32>
    %c0_111 = arith.constant 0 : index
    %c0_112 = arith.constant 0 : index
    %180 = vector.load %arg8[%c0_111, %c0_112] : memref<8x1xf32, #tpu.memory_space<vmem>>, vector<8x1xf32>
    %181 = vector.broadcast %180 : vector<8x1xf32> to vector<8x256xf32>
    %182 = arith.addf %179, %181 : vector<8x256xf32>
    %cst_113 = arith.constant 0.000000e+00 : f32
    %183 = vector.broadcast %cst_113 : f32 to vector<8x256xf32>
    %184 = arith.maximumf %182, %183 : vector<8x256xf32>
    %185 = vector.extract_strided_slice %105 {offsets = [16, 0], sizes = [8, 256], strides = [1, 1]} : vector<24x256xf32> to vector<8x256xf32>
    %cst_114 = arith.constant 0.000000e+00 : f32
    %186 = vector.broadcast %cst_114 : f32 to vector<8x256xf32>
    %c0_115 = arith.constant 0 : index
    %c0_116 = arith.constant 0 : index
    %c0_117 = arith.constant 0 : index
    %187 = vector.load %arg9[%c0_115, %c0_116, %c0_117] : memref<9x8x8xbf16, #tpu.memory_space<vmem>>, vector<1x8x8xbf16>
    %188 = vector.shape_cast %187 : vector<1x8x8xbf16> to vector<8x8xbf16>
    %c17_i32_118 = arith.constant 17 : i32
    %189 = tpu.dynamic_rotate %185 by %c17_i32_118 dim 1 : vector<8x256xf32>, i32 -> vector<8x256xf32>
    %190 = vector.broadcast %1 : vector<1x256xf32> to vector<8x256xf32>
    %191 = arith.mulf %189, %190 : vector<8x256xf32>
    %192 = arith.truncf %191 : vector<8x256xf32> to vector<8x256xbf16>
    %cst_119 = arith.constant dense<0.000000e+00> : vector<8x256xf32>
    %193 = tpu.matmul %188, %192, %cst_119 {dimension_numbers = #tpu.dot_dimension_numbers<[1], [0], [0], [1], [0, 0, 1, 1], [], []>} : vector<8x8xbf16>, vector<8x256xbf16>, vector<8x256xf32> -> vector<8x256xf32>
    %194 = arith.addf %186, %193 : vector<8x256xf32>
    %c1_120 = arith.constant 1 : index
    %c0_121 = arith.constant 0 : index
    %c0_122 = arith.constant 0 : index
    %195 = vector.load %arg9[%c1_120, %c0_121, %c0_122] : memref<9x8x8xbf16, #tpu.memory_space<vmem>>, vector<1x8x8xbf16>
    %196 = vector.shape_cast %195 : vector<1x8x8xbf16> to vector<8x8xbf16>
    %c16_i32_123 = arith.constant 16 : i32
    %197 = tpu.dynamic_rotate %185 by %c16_i32_123 dim 1 : vector<8x256xf32>, i32 -> vector<8x256xf32>
    %198 = vector.broadcast %3 : vector<1x256xf32> to vector<8x256xf32>
    %199 = arith.mulf %197, %198 : vector<8x256xf32>
    %200 = arith.truncf %199 : vector<8x256xf32> to vector<8x256xbf16>
    %cst_124 = arith.constant dense<0.000000e+00> : vector<8x256xf32>
    %201 = tpu.matmul %196, %200, %cst_124 {dimension_numbers = #tpu.dot_dimension_numbers<[1], [0], [0], [1], [0, 0, 1, 1], [], []>} : vector<8x8xbf16>, vector<8x256xbf16>, vector<8x256xf32> -> vector<8x256xf32>
    %202 = arith.addf %194, %201 : vector<8x256xf32>
    %c2_125 = arith.constant 2 : index
    %c0_126 = arith.constant 0 : index
    %c0_127 = arith.constant 0 : index
    %203 = vector.load %arg9[%c2_125, %c0_126, %c0_127] : memref<9x8x8xbf16, #tpu.memory_space<vmem>>, vector<1x8x8xbf16>
    %204 = vector.shape_cast %203 : vector<1x8x8xbf16> to vector<8x8xbf16>
    %c15_i32_128 = arith.constant 15 : i32
    %205 = tpu.dynamic_rotate %185 by %c15_i32_128 dim 1 : vector<8x256xf32>, i32 -> vector<8x256xf32>
    %206 = vector.broadcast %5 : vector<1x256xf32> to vector<8x256xf32>
    %207 = arith.mulf %205, %206 : vector<8x256xf32>
    %208 = arith.truncf %207 : vector<8x256xf32> to vector<8x256xbf16>
    %cst_129 = arith.constant dense<0.000000e+00> : vector<8x256xf32>
    %209 = tpu.matmul %204, %208, %cst_129 {dimension_numbers = #tpu.dot_dimension_numbers<[1], [0], [0], [1], [0, 0, 1, 1], [], []>} : vector<8x8xbf16>, vector<8x256xbf16>, vector<8x256xf32> -> vector<8x256xf32>
    %210 = arith.addf %202, %209 : vector<8x256xf32>
    %c3_130 = arith.constant 3 : index
    %c0_131 = arith.constant 0 : index
    %c0_132 = arith.constant 0 : index
    %211 = vector.load %arg9[%c3_130, %c0_131, %c0_132] : memref<9x8x8xbf16, #tpu.memory_space<vmem>>, vector<1x8x8xbf16>
    %212 = vector.shape_cast %211 : vector<1x8x8xbf16> to vector<8x8xbf16>
    %c1_i32_133 = arith.constant 1 : i32
    %213 = tpu.dynamic_rotate %185 by %c1_i32_133 dim 1 : vector<8x256xf32>, i32 -> vector<8x256xf32>
    %214 = vector.broadcast %7 : vector<1x256xf32> to vector<8x256xf32>
    %215 = arith.mulf %213, %214 : vector<8x256xf32>
    %216 = arith.truncf %215 : vector<8x256xf32> to vector<8x256xbf16>
    %cst_134 = arith.constant dense<0.000000e+00> : vector<8x256xf32>
    %217 = tpu.matmul %212, %216, %cst_134 {dimension_numbers = #tpu.dot_dimension_numbers<[1], [0], [0], [1], [0, 0, 1, 1], [], []>} : vector<8x8xbf16>, vector<8x256xbf16>, vector<8x256xf32> -> vector<8x256xf32>
    %218 = arith.addf %210, %217 : vector<8x256xf32>
    %c4_135 = arith.constant 4 : index
    %c0_136 = arith.constant 0 : index
    %c0_137 = arith.constant 0 : index
    %219 = vector.load %arg9[%c4_135, %c0_136, %c0_137] : memref<9x8x8xbf16, #tpu.memory_space<vmem>>, vector<1x8x8xbf16>
    %220 = vector.shape_cast %219 : vector<1x8x8xbf16> to vector<8x8xbf16>
    %221 = vector.broadcast %9 : vector<1x256xf32> to vector<8x256xf32>
    %222 = arith.mulf %185, %221 : vector<8x256xf32>
    %223 = arith.truncf %222 : vector<8x256xf32> to vector<8x256xbf16>
    %cst_138 = arith.constant dense<0.000000e+00> : vector<8x256xf32>
    %224 = tpu.matmul %220, %223, %cst_138 {dimension_numbers = #tpu.dot_dimension_numbers<[1], [0], [0], [1], [0, 0, 1, 1], [], []>} : vector<8x8xbf16>, vector<8x256xbf16>, vector<8x256xf32> -> vector<8x256xf32>
    %225 = arith.addf %218, %224 : vector<8x256xf32>
    %c5_139 = arith.constant 5 : index
    %c0_140 = arith.constant 0 : index
    %c0_141 = arith.constant 0 : index
    %226 = vector.load %arg9[%c5_139, %c0_140, %c0_141] : memref<9x8x8xbf16, #tpu.memory_space<vmem>>, vector<1x8x8xbf16>
    %227 = vector.shape_cast %226 : vector<1x8x8xbf16> to vector<8x8xbf16>
    %c255_i32_142 = arith.constant 255 : i32
    %228 = tpu.dynamic_rotate %185 by %c255_i32_142 dim 1 : vector<8x256xf32>, i32 -> vector<8x256xf32>
    %229 = vector.broadcast %11 : vector<1x256xf32> to vector<8x256xf32>
    %230 = arith.mulf %228, %229 : vector<8x256xf32>
    %231 = arith.truncf %230 : vector<8x256xf32> to vector<8x256xbf16>
    %cst_143 = arith.constant dense<0.000000e+00> : vector<8x256xf32>
    %232 = tpu.matmul %227, %231, %cst_143 {dimension_numbers = #tpu.dot_dimension_numbers<[1], [0], [0], [1], [0, 0, 1, 1], [], []>} : vector<8x8xbf16>, vector<8x256xbf16>, vector<8x256xf32> -> vector<8x256xf32>
    %233 = arith.addf %225, %232 : vector<8x256xf32>
    %c6_144 = arith.constant 6 : index
    %c0_145 = arith.constant 0 : index
    %c0_146 = arith.constant 0 : index
    %234 = vector.load %arg9[%c6_144, %c0_145, %c0_146] : memref<9x8x8xbf16, #tpu.memory_space<vmem>>, vector<1x8x8xbf16>
    %235 = vector.shape_cast %234 : vector<1x8x8xbf16> to vector<8x8xbf16>
    %c241_i32_147 = arith.constant 241 : i32
    %236 = tpu.dynamic_rotate %185 by %c241_i32_147 dim 1 : vector<8x256xf32>, i32 -> vector<8x256xf32>
    %237 = vector.broadcast %13 : vector<1x256xf32> to vector<8x256xf32>
    %238 = arith.mulf %236, %237 : vector<8x256xf32>
    %239 = arith.truncf %238 : vector<8x256xf32> to vector<8x256xbf16>
    %cst_148 = arith.constant dense<0.000000e+00> : vector<8x256xf32>
    %240 = tpu.matmul %235, %239, %cst_148 {dimension_numbers = #tpu.dot_dimension_numbers<[1], [0], [0], [1], [0, 0, 1, 1], [], []>} : vector<8x8xbf16>, vector<8x256xbf16>, vector<8x256xf32> -> vector<8x256xf32>
    %241 = arith.addf %233, %240 : vector<8x256xf32>
    %c7_149 = arith.constant 7 : index
    %c0_150 = arith.constant 0 : index
    %c0_151 = arith.constant 0 : index
    %242 = vector.load %arg9[%c7_149, %c0_150, %c0_151] : memref<9x8x8xbf16, #tpu.memory_space<vmem>>, vector<1x8x8xbf16>
    %243 = vector.shape_cast %242 : vector<1x8x8xbf16> to vector<8x8xbf16>
    %c240_i32_152 = arith.constant 240 : i32
    %244 = tpu.dynamic_rotate %185 by %c240_i32_152 dim 1 : vector<8x256xf32>, i32 -> vector<8x256xf32>
    %245 = vector.broadcast %15 : vector<1x256xf32> to vector<8x256xf32>
    %246 = arith.mulf %244, %245 : vector<8x256xf32>
    %247 = arith.truncf %246 : vector<8x256xf32> to vector<8x256xbf16>
    %cst_153 = arith.constant dense<0.000000e+00> : vector<8x256xf32>
    %248 = tpu.matmul %243, %247, %cst_153 {dimension_numbers = #tpu.dot_dimension_numbers<[1], [0], [0], [1], [0, 0, 1, 1], [], []>} : vector<8x8xbf16>, vector<8x256xbf16>, vector<8x256xf32> -> vector<8x256xf32>
    %249 = arith.addf %241, %248 : vector<8x256xf32>
    %c8_154 = arith.constant 8 : index
    %c0_155 = arith.constant 0 : index
    %c0_156 = arith.constant 0 : index
    %250 = vector.load %arg9[%c8_154, %c0_155, %c0_156] : memref<9x8x8xbf16, #tpu.memory_space<vmem>>, vector<1x8x8xbf16>
    %251 = vector.shape_cast %250 : vector<1x8x8xbf16> to vector<8x8xbf16>
    %c239_i32_157 = arith.constant 239 : i32
    %252 = tpu.dynamic_rotate %185 by %c239_i32_157 dim 1 : vector<8x256xf32>, i32 -> vector<8x256xf32>
    %253 = vector.broadcast %17 : vector<1x256xf32> to vector<8x256xf32>
    %254 = arith.mulf %252, %253 : vector<8x256xf32>
    %255 = arith.truncf %254 : vector<8x256xf32> to vector<8x256xbf16>
    %cst_158 = arith.constant dense<0.000000e+00> : vector<8x256xf32>
    %256 = tpu.matmul %251, %255, %cst_158 {dimension_numbers = #tpu.dot_dimension_numbers<[1], [0], [0], [1], [0, 0, 1, 1], [], []>} : vector<8x8xbf16>, vector<8x256xbf16>, vector<8x256xf32> -> vector<8x256xf32>
    %257 = arith.addf %249, %256 : vector<8x256xf32>
    %c0_159 = arith.constant 0 : index
    %c0_160 = arith.constant 0 : index
    %258 = vector.load %arg10[%c0_159, %c0_160] : memref<8x1xf32, #tpu.memory_space<vmem>>, vector<8x1xf32>
    %259 = vector.broadcast %258 : vector<8x1xf32> to vector<8x256xf32>
    %260 = arith.addf %257, %259 : vector<8x256xf32>
    %cst_161 = arith.constant 0.000000e+00 : f32
    %261 = vector.broadcast %cst_161 : f32 to vector<8x256xf32>
    %262 = arith.maximumf %260, %261 : vector<8x256xf32>
    %cst_162 = arith.constant 0.000000e+00 : f32
    %263 = vector.broadcast %cst_162 : f32 to vector<8x256xf32>
    %c0_163 = arith.constant 0 : index
    %c0_164 = arith.constant 0 : index
    %c0_165 = arith.constant 0 : index
    %264 = vector.load %arg11[%c0_163, %c0_164, %c0_165] : memref<9x8x8xbf16, #tpu.memory_space<vmem>>, vector<1x8x8xbf16>
    %265 = vector.shape_cast %264 : vector<1x8x8xbf16> to vector<8x8xbf16>
    %c17_i32_166 = arith.constant 17 : i32
    %266 = tpu.dynamic_rotate %262 by %c17_i32_166 dim 1 : vector<8x256xf32>, i32 -> vector<8x256xf32>
    %267 = vector.broadcast %1 : vector<1x256xf32> to vector<8x256xf32>
    %268 = arith.mulf %266, %267 : vector<8x256xf32>
    %269 = arith.truncf %268 : vector<8x256xf32> to vector<8x256xbf16>
    %cst_167 = arith.constant dense<0.000000e+00> : vector<8x256xf32>
    %270 = tpu.matmul %265, %269, %cst_167 {dimension_numbers = #tpu.dot_dimension_numbers<[1], [0], [0], [1], [0, 0, 1, 1], [], []>} : vector<8x8xbf16>, vector<8x256xbf16>, vector<8x256xf32> -> vector<8x256xf32>
    %271 = arith.addf %263, %270 : vector<8x256xf32>
    %c1_168 = arith.constant 1 : index
    %c0_169 = arith.constant 0 : index
    %c0_170 = arith.constant 0 : index
    %272 = vector.load %arg11[%c1_168, %c0_169, %c0_170] : memref<9x8x8xbf16, #tpu.memory_space<vmem>>, vector<1x8x8xbf16>
    %273 = vector.shape_cast %272 : vector<1x8x8xbf16> to vector<8x8xbf16>
    %c16_i32_171 = arith.constant 16 : i32
    %274 = tpu.dynamic_rotate %262 by %c16_i32_171 dim 1 : vector<8x256xf32>, i32 -> vector<8x256xf32>
    %275 = vector.broadcast %3 : vector<1x256xf32> to vector<8x256xf32>
    %276 = arith.mulf %274, %275 : vector<8x256xf32>
    %277 = arith.truncf %276 : vector<8x256xf32> to vector<8x256xbf16>
    %cst_172 = arith.constant dense<0.000000e+00> : vector<8x256xf32>
    %278 = tpu.matmul %273, %277, %cst_172 {dimension_numbers = #tpu.dot_dimension_numbers<[1], [0], [0], [1], [0, 0, 1, 1], [], []>} : vector<8x8xbf16>, vector<8x256xbf16>, vector<8x256xf32> -> vector<8x256xf32>
    %279 = arith.addf %271, %278 : vector<8x256xf32>
    %c2_173 = arith.constant 2 : index
    %c0_174 = arith.constant 0 : index
    %c0_175 = arith.constant 0 : index
    %280 = vector.load %arg11[%c2_173, %c0_174, %c0_175] : memref<9x8x8xbf16, #tpu.memory_space<vmem>>, vector<1x8x8xbf16>
    %281 = vector.shape_cast %280 : vector<1x8x8xbf16> to vector<8x8xbf16>
    %c15_i32_176 = arith.constant 15 : i32
    %282 = tpu.dynamic_rotate %262 by %c15_i32_176 dim 1 : vector<8x256xf32>, i32 -> vector<8x256xf32>
    %283 = vector.broadcast %5 : vector<1x256xf32> to vector<8x256xf32>
    %284 = arith.mulf %282, %283 : vector<8x256xf32>
    %285 = arith.truncf %284 : vector<8x256xf32> to vector<8x256xbf16>
    %cst_177 = arith.constant dense<0.000000e+00> : vector<8x256xf32>
    %286 = tpu.matmul %281, %285, %cst_177 {dimension_numbers = #tpu.dot_dimension_numbers<[1], [0], [0], [1], [0, 0, 1, 1], [], []>} : vector<8x8xbf16>, vector<8x256xbf16>, vector<8x256xf32> -> vector<8x256xf32>
    %287 = arith.addf %279, %286 : vector<8x256xf32>
    %c3_178 = arith.constant 3 : index
    %c0_179 = arith.constant 0 : index
    %c0_180 = arith.constant 0 : index
    %288 = vector.load %arg11[%c3_178, %c0_179, %c0_180] : memref<9x8x8xbf16, #tpu.memory_space<vmem>>, vector<1x8x8xbf16>
    %289 = vector.shape_cast %288 : vector<1x8x8xbf16> to vector<8x8xbf16>
    %c1_i32_181 = arith.constant 1 : i32
    %290 = tpu.dynamic_rotate %262 by %c1_i32_181 dim 1 : vector<8x256xf32>, i32 -> vector<8x256xf32>
    %291 = vector.broadcast %7 : vector<1x256xf32> to vector<8x256xf32>
    %292 = arith.mulf %290, %291 : vector<8x256xf32>
    %293 = arith.truncf %292 : vector<8x256xf32> to vector<8x256xbf16>
    %cst_182 = arith.constant dense<0.000000e+00> : vector<8x256xf32>
    %294 = tpu.matmul %289, %293, %cst_182 {dimension_numbers = #tpu.dot_dimension_numbers<[1], [0], [0], [1], [0, 0, 1, 1], [], []>} : vector<8x8xbf16>, vector<8x256xbf16>, vector<8x256xf32> -> vector<8x256xf32>
    %295 = arith.addf %287, %294 : vector<8x256xf32>
    %c4_183 = arith.constant 4 : index
    %c0_184 = arith.constant 0 : index
    %c0_185 = arith.constant 0 : index
    %296 = vector.load %arg11[%c4_183, %c0_184, %c0_185] : memref<9x8x8xbf16, #tpu.memory_space<vmem>>, vector<1x8x8xbf16>
    %297 = vector.shape_cast %296 : vector<1x8x8xbf16> to vector<8x8xbf16>
    %298 = vector.broadcast %9 : vector<1x256xf32> to vector<8x256xf32>
    %299 = arith.mulf %262, %298 : vector<8x256xf32>
    %300 = arith.truncf %299 : vector<8x256xf32> to vector<8x256xbf16>
    %cst_186 = arith.constant dense<0.000000e+00> : vector<8x256xf32>
    %301 = tpu.matmul %297, %300, %cst_186 {dimension_numbers = #tpu.dot_dimension_numbers<[1], [0], [0], [1], [0, 0, 1, 1], [], []>} : vector<8x8xbf16>, vector<8x256xbf16>, vector<8x256xf32> -> vector<8x256xf32>
    %302 = arith.addf %295, %301 : vector<8x256xf32>
    %c5_187 = arith.constant 5 : index
    %c0_188 = arith.constant 0 : index
    %c0_189 = arith.constant 0 : index
    %303 = vector.load %arg11[%c5_187, %c0_188, %c0_189] : memref<9x8x8xbf16, #tpu.memory_space<vmem>>, vector<1x8x8xbf16>
    %304 = vector.shape_cast %303 : vector<1x8x8xbf16> to vector<8x8xbf16>
    %c255_i32_190 = arith.constant 255 : i32
    %305 = tpu.dynamic_rotate %262 by %c255_i32_190 dim 1 : vector<8x256xf32>, i32 -> vector<8x256xf32>
    %306 = vector.broadcast %11 : vector<1x256xf32> to vector<8x256xf32>
    %307 = arith.mulf %305, %306 : vector<8x256xf32>
    %308 = arith.truncf %307 : vector<8x256xf32> to vector<8x256xbf16>
    %cst_191 = arith.constant dense<0.000000e+00> : vector<8x256xf32>
    %309 = tpu.matmul %304, %308, %cst_191 {dimension_numbers = #tpu.dot_dimension_numbers<[1], [0], [0], [1], [0, 0, 1, 1], [], []>} : vector<8x8xbf16>, vector<8x256xbf16>, vector<8x256xf32> -> vector<8x256xf32>
    %310 = arith.addf %302, %309 : vector<8x256xf32>
    %c6_192 = arith.constant 6 : index
    %c0_193 = arith.constant 0 : index
    %c0_194 = arith.constant 0 : index
    %311 = vector.load %arg11[%c6_192, %c0_193, %c0_194] : memref<9x8x8xbf16, #tpu.memory_space<vmem>>, vector<1x8x8xbf16>
    %312 = vector.shape_cast %311 : vector<1x8x8xbf16> to vector<8x8xbf16>
    %c241_i32_195 = arith.constant 241 : i32
    %313 = tpu.dynamic_rotate %262 by %c241_i32_195 dim 1 : vector<8x256xf32>, i32 -> vector<8x256xf32>
    %314 = vector.broadcast %13 : vector<1x256xf32> to vector<8x256xf32>
    %315 = arith.mulf %313, %314 : vector<8x256xf32>
    %316 = arith.truncf %315 : vector<8x256xf32> to vector<8x256xbf16>
    %cst_196 = arith.constant dense<0.000000e+00> : vector<8x256xf32>
    %317 = tpu.matmul %312, %316, %cst_196 {dimension_numbers = #tpu.dot_dimension_numbers<[1], [0], [0], [1], [0, 0, 1, 1], [], []>} : vector<8x8xbf16>, vector<8x256xbf16>, vector<8x256xf32> -> vector<8x256xf32>
    %318 = arith.addf %310, %317 : vector<8x256xf32>
    %c7_197 = arith.constant 7 : index
    %c0_198 = arith.constant 0 : index
    %c0_199 = arith.constant 0 : index
    %319 = vector.load %arg11[%c7_197, %c0_198, %c0_199] : memref<9x8x8xbf16, #tpu.memory_space<vmem>>, vector<1x8x8xbf16>
    %320 = vector.shape_cast %319 : vector<1x8x8xbf16> to vector<8x8xbf16>
    %c240_i32_200 = arith.constant 240 : i32
    %321 = tpu.dynamic_rotate %262 by %c240_i32_200 dim 1 : vector<8x256xf32>, i32 -> vector<8x256xf32>
    %322 = vector.broadcast %15 : vector<1x256xf32> to vector<8x256xf32>
    %323 = arith.mulf %321, %322 : vector<8x256xf32>
    %324 = arith.truncf %323 : vector<8x256xf32> to vector<8x256xbf16>
    %cst_201 = arith.constant dense<0.000000e+00> : vector<8x256xf32>
    %325 = tpu.matmul %320, %324, %cst_201 {dimension_numbers = #tpu.dot_dimension_numbers<[1], [0], [0], [1], [0, 0, 1, 1], [], []>} : vector<8x8xbf16>, vector<8x256xbf16>, vector<8x256xf32> -> vector<8x256xf32>
    %326 = arith.addf %318, %325 : vector<8x256xf32>
    %c8_202 = arith.constant 8 : index
    %c0_203 = arith.constant 0 : index
    %c0_204 = arith.constant 0 : index
    %327 = vector.load %arg11[%c8_202, %c0_203, %c0_204] : memref<9x8x8xbf16, #tpu.memory_space<vmem>>, vector<1x8x8xbf16>
    %328 = vector.shape_cast %327 : vector<1x8x8xbf16> to vector<8x8xbf16>
    %c239_i32_205 = arith.constant 239 : i32
    %329 = tpu.dynamic_rotate %262 by %c239_i32_205 dim 1 : vector<8x256xf32>, i32 -> vector<8x256xf32>
    %330 = vector.broadcast %17 : vector<1x256xf32> to vector<8x256xf32>
    %331 = arith.mulf %329, %330 : vector<8x256xf32>
    %332 = arith.truncf %331 : vector<8x256xf32> to vector<8x256xbf16>
    %cst_206 = arith.constant dense<0.000000e+00> : vector<8x256xf32>
    %333 = tpu.matmul %328, %332, %cst_206 {dimension_numbers = #tpu.dot_dimension_numbers<[1], [0], [0], [1], [0, 0, 1, 1], [], []>} : vector<8x8xbf16>, vector<8x256xbf16>, vector<8x256xf32> -> vector<8x256xf32>
    %334 = arith.addf %326, %333 : vector<8x256xf32>
    %c0_207 = arith.constant 0 : index
    %c0_208 = arith.constant 0 : index
    %335 = vector.load %arg12[%c0_207, %c0_208] : memref<8x1xf32, #tpu.memory_space<vmem>>, vector<8x1xf32>
    %336 = vector.broadcast %335 : vector<8x1xf32> to vector<8x256xf32>
    %337 = arith.addf %334, %336 : vector<8x256xf32>
    %cst_209 = arith.constant 0.000000e+00 : f32
    %338 = vector.broadcast %cst_209 : f32 to vector<8x256xf32>
    %339 = arith.maximumf %337, %338 : vector<8x256xf32>
    %c17_i32_210 = arith.constant 17 : i32
    %340 = tpu.dynamic_rotate %97 by %c17_i32_210 dim 1 : vector<16x256xf32>, i32 -> vector<16x256xf32>
    %341 = vector.broadcast %1 : vector<1x256xf32> to vector<16x256xf32>
    %342 = arith.mulf %340, %341 : vector<16x256xf32>
    %c16_i32_211 = arith.constant 16 : i32
    %343 = tpu.dynamic_rotate %97 by %c16_i32_211 dim 1 : vector<16x256xf32>, i32 -> vector<16x256xf32>
    %344 = vector.broadcast %3 : vector<1x256xf32> to vector<16x256xf32>
    %345 = arith.mulf %343, %344 : vector<16x256xf32>
    %346 = arith.addf %342, %345 : vector<16x256xf32>
    %c15_i32_212 = arith.constant 15 : i32
    %347 = tpu.dynamic_rotate %97 by %c15_i32_212 dim 1 : vector<16x256xf32>, i32 -> vector<16x256xf32>
    %348 = vector.broadcast %5 : vector<1x256xf32> to vector<16x256xf32>
    %349 = arith.mulf %347, %348 : vector<16x256xf32>
    %350 = arith.addf %346, %349 : vector<16x256xf32>
    %c1_i32_213 = arith.constant 1 : i32
    %351 = tpu.dynamic_rotate %97 by %c1_i32_213 dim 1 : vector<16x256xf32>, i32 -> vector<16x256xf32>
    %352 = vector.broadcast %7 : vector<1x256xf32> to vector<16x256xf32>
    %353 = arith.mulf %351, %352 : vector<16x256xf32>
    %354 = arith.addf %350, %353 : vector<16x256xf32>
    %355 = vector.broadcast %9 : vector<1x256xf32> to vector<16x256xf32>
    %356 = arith.mulf %97, %355 : vector<16x256xf32>
    %357 = arith.addf %354, %356 : vector<16x256xf32>
    %c255_i32_214 = arith.constant 255 : i32
    %358 = tpu.dynamic_rotate %97 by %c255_i32_214 dim 1 : vector<16x256xf32>, i32 -> vector<16x256xf32>
    %359 = vector.broadcast %11 : vector<1x256xf32> to vector<16x256xf32>
    %360 = arith.mulf %358, %359 : vector<16x256xf32>
    %361 = arith.addf %357, %360 : vector<16x256xf32>
    %c241_i32_215 = arith.constant 241 : i32
    %362 = tpu.dynamic_rotate %97 by %c241_i32_215 dim 1 : vector<16x256xf32>, i32 -> vector<16x256xf32>
    %363 = vector.broadcast %13 : vector<1x256xf32> to vector<16x256xf32>
    %364 = arith.mulf %362, %363 : vector<16x256xf32>
    %365 = arith.addf %361, %364 : vector<16x256xf32>
    %c240_i32_216 = arith.constant 240 : i32
    %366 = tpu.dynamic_rotate %97 by %c240_i32_216 dim 1 : vector<16x256xf32>, i32 -> vector<16x256xf32>
    %367 = vector.broadcast %15 : vector<1x256xf32> to vector<16x256xf32>
    %368 = arith.mulf %366, %367 : vector<16x256xf32>
    %369 = arith.addf %365, %368 : vector<16x256xf32>
    %c239_i32_217 = arith.constant 239 : i32
    %370 = tpu.dynamic_rotate %97 by %c239_i32_217 dim 1 : vector<16x256xf32>, i32 -> vector<16x256xf32>
    %371 = vector.broadcast %17 : vector<1x256xf32> to vector<16x256xf32>
    %372 = arith.mulf %370, %371 : vector<16x256xf32>
    %373 = arith.addf %369, %372 : vector<16x256xf32>
    %c0_218 = arith.constant 0 : index
    %c0_219 = arith.constant 0 : index
    %374 = vector.load %arg13[%c0_218, %c0_219] : memref<8x16xbf16, #tpu.memory_space<vmem>>, vector<8x16xbf16>
    %375 = arith.truncf %373 : vector<16x256xf32> to vector<16x256xbf16>
    %cst_220 = arith.constant dense<0.000000e+00> : vector<8x256xf32>
    %376 = tpu.matmul %374, %375, %cst_220 {dimension_numbers = #tpu.dot_dimension_numbers<[1], [0], [0], [1], [0, 0, 1, 1], [], []>} : vector<8x16xbf16>, vector<16x256xbf16>, vector<8x256xf32> -> vector<8x256xf32>
    %c0_221 = arith.constant 0 : index
    %c0_222 = arith.constant 0 : index
    %377 = vector.load %arg14[%c0_221, %c0_222] : memref<8x1xf32, #tpu.memory_space<vmem>>, vector<8x1xf32>
    %378 = vector.broadcast %377 : vector<8x1xf32> to vector<8x256xf32>
    %379 = arith.addf %376, %378 : vector<8x256xf32>
    %cst_223 = arith.constant 0.000000e+00 : f32
    %380 = vector.broadcast %cst_223 : f32 to vector<8x256xf32>
    %381 = arith.maximumf %379, %380 : vector<8x256xf32>
    %382 = tpu.concatenate %106, %184, %339, %381 in 0 : vector<8x256xf32>, vector<8x256xf32>, vector<8x256xf32>, vector<8x256xf32> -> vector<32x256xf32>
    %cst_224 = arith.constant dense<0.000000e+00> : vector<32xf32>
    %383 = vector.multi_reduction <add>, %382, %cst_224 [1] : vector<32x256xf32> to vector<32xf32>
    %384 = vector.shape_cast %383 : vector<32xf32> to vector<32x1xf32>
    %cst_225 = arith.constant 3.906250e-03 : f32
    %385 = vector.broadcast %cst_225 : f32 to vector<32x1xf32>
    %386 = arith.mulf %384, %385 : vector<32x1xf32>
    %c0_226 = arith.constant 0 : index
    %c0_227 = arith.constant 0 : index
    %387 = vector.load %arg15[%c0_226, %c0_227] : memref<32x10xf32, #tpu.memory_space<vmem>>, vector<32x10xf32>
    %388 = vector.broadcast %386 : vector<32x1xf32> to vector<32x10xf32>
    %389 = arith.mulf %388, %387 : vector<32x10xf32>
    %cst_228 = arith.constant dense<0.000000e+00> : vector<10xf32>
    %390 = vector.multi_reduction <add>, %389, %cst_228 [0] : vector<32x10xf32> to vector<10xf32>
    %391 = vector.shape_cast %390 : vector<10xf32> to vector<1x10xf32>
    %c0_229 = arith.constant 0 : index
    %c0_230 = arith.constant 0 : index
    %392 = vector.load %arg16[%c0_229, %c0_230] : memref<1x10xf32, #tpu.memory_space<vmem>>, vector<1x10xf32>
    %393 = arith.addf %391, %392 : vector<1x10xf32>
    %c0_231 = arith.constant 0 : index
    %c0_232 = arith.constant 0 : index
    %c0_233 = arith.constant 0 : index
    %394 = vector.load %arg17[%c0_231, %c0_232, %c0_233] : memref<1x1x10xf32, #tpu.memory_space<vmem>>, vector<1x1x10xf32>
    %395 = vector.shape_cast %394 : vector<1x1x10xf32> to vector<1x10xf32>
    %396 = vector.shape_cast %393 : vector<1x10xf32> to vector<1x1x10xf32>
    tpu.vector_store %arg17[%c0_231, %c0_232, %c0_233], %396 {strides = array<i32>} : memref<1x1x10xf32, #tpu.memory_space<vmem>>, vector<1x1x10xf32>,
    return
  }
  func.func @transform_0(%arg0: i32) -> (i32, i32, i32) {
    %c0_i32 = arith.constant 0 : i32
    %c0_i32_0 = arith.constant 0 : i32
    %c0_i32_1 = arith.constant 0 : i32
    return %arg0, %c0_i32, %c0_i32_0 : i32, i32, i32
  }
  func.func @transform_1(%arg0: i32) -> (i32, i32, i32) {
    %c0_i32 = arith.constant 0 : i32
    %c0_i32_0 = arith.constant 0 : i32
    %c0_i32_1 = arith.constant 0 : i32
    %c0_i32_2 = arith.constant 0 : i32
    return %c0_i32, %c0_i32_0, %c0_i32_1 : i32, i32, i32
  }
  func.func @transform_2(%arg0: i32) -> (i32, i32, i32) {
    %c0_i32 = arith.constant 0 : i32
    %c0_i32_0 = arith.constant 0 : i32
    %c0_i32_1 = arith.constant 0 : i32
    %c0_i32_2 = arith.constant 0 : i32
    return %c0_i32, %c0_i32_0, %c0_i32_1 : i32, i32, i32
  }
  func.func @transform_3(%arg0: i32) -> (i32, i32) {
    %c0_i32 = arith.constant 0 : i32
    %c0_i32_0 = arith.constant 0 : i32
    %c0_i32_1 = arith.constant 0 : i32
    return %c0_i32, %c0_i32_0 : i32, i32
  }
  func.func @transform_4(%arg0: i32) -> (i32, i32) {
    %c0_i32 = arith.constant 0 : i32
    %c0_i32_0 = arith.constant 0 : i32
    %c0_i32_1 = arith.constant 0 : i32
    return %c0_i32, %c0_i32_0 : i32, i32
  }
  func.func @transform_5(%arg0: i32) -> (i32, i32) {
    %c0_i32 = arith.constant 0 : i32
    %c0_i32_0 = arith.constant 0 : i32
    %c0_i32_1 = arith.constant 0 : i32
    return %c0_i32, %c0_i32_0 : i32, i32
  }
  func.func @transform_6(%arg0: i32) -> (i32, i32, i32) {
    %c0_i32 = arith.constant 0 : i32
    %c0_i32_0 = arith.constant 0 : i32
    %c0_i32_1 = arith.constant 0 : i32
    %c0_i32_2 = arith.constant 0 : i32
    return %c0_i32, %c0_i32_0, %c0_i32_1 : i32, i32, i32
  }
  func.func @transform_7(%arg0: i32) -> (i32, i32) {
    %c0_i32 = arith.constant 0 : i32
    %c0_i32_0 = arith.constant 0 : i32
    %c0_i32_1 = arith.constant 0 : i32
    return %c0_i32, %c0_i32_0 : i32, i32
  }
  func.func @transform_8(%arg0: i32) -> (i32, i32, i32) {
    %c0_i32 = arith.constant 0 : i32
    %c0_i32_0 = arith.constant 0 : i32
    %c0_i32_1 = arith.constant 0 : i32
    %c0_i32_2 = arith.constant 0 : i32
    return %c0_i32, %c0_i32_0, %c0_i32_1 : i32, i32, i32
  }
  func.func @transform_9(%arg0: i32) -> (i32, i32) {
    %c0_i32 = arith.constant 0 : i32
    %c0_i32_0 = arith.constant 0 : i32
    %c0_i32_1 = arith.constant 0 : i32
    return %c0_i32, %c0_i32_0 : i32, i32
  }
  func.func @transform_10(%arg0: i32) -> (i32, i32, i32) {
    %c0_i32 = arith.constant 0 : i32
    %c0_i32_0 = arith.constant 0 : i32
    %c0_i32_1 = arith.constant 0 : i32
    %c0_i32_2 = arith.constant 0 : i32
    return %c0_i32, %c0_i32_0, %c0_i32_1 : i32, i32, i32
  }
  func.func @transform_11(%arg0: i32) -> (i32, i32) {
    %c0_i32 = arith.constant 0 : i32
    %c0_i32_0 = arith.constant 0 : i32
    %c0_i32_1 = arith.constant 0 : i32
    return %c0_i32, %c0_i32_0 : i32, i32
  }
  func.func @transform_12(%arg0: i32) -> (i32, i32) {
    %c0_i32 = arith.constant 0 : i32
    %c0_i32_0 = arith.constant 0 : i32
    %c0_i32_1 = arith.constant 0 : i32
    return %c0_i32, %c0_i32_0 : i32, i32
  }
  func.func @transform_13(%arg0: i32) -> (i32, i32) {
    %c0_i32 = arith.constant 0 : i32
    %c0_i32_0 = arith.constant 0 : i32
    %c0_i32_1 = arith.constant 0 : i32
    return %c0_i32, %c0_i32_0 : i32, i32
  }
  func.func @transform_14(%arg0: i32) -> (i32, i32) {
    %c0_i32 = arith.constant 0 : i32
    %c0_i32_0 = arith.constant 0 : i32
    %c0_i32_1 = arith.constant 0 : i32
    return %c0_i32, %c0_i32_0 : i32, i32
  }
  func.func @transform_15(%arg0: i32) -> (i32, i32) {
    %c0_i32 = arith.constant 0 : i32
    %c0_i32_0 = arith.constant 0 : i32
    %c0_i32_1 = arith.constant 0 : i32
    return %c0_i32, %c0_i32_0 : i32, i32
  }
  func.func @transform_16(%arg0: i32) -> (i32, i32, i32) {
    %c0_i32 = arith.constant 0 : i32
    %c0_i32_0 = arith.constant 0 : i32
    %c0_i32_1 = arith.constant 0 : i32
    return %arg0, %c0_i32, %c0_i32_0 : i32, i32, i32
  }
}

</mosaic_0001>

<llo_original>
// kernel: inception_forward.1
$region0: #{inception_forward.1}
  #allocation0 [shape = 'u32[]', space=smem, size = 0x4, offset = 0x4, fixed_abs, tag = 'smem constant byte address 0x4 - core index']
  #allocation1 [shape = 'u32[72,128]{1,0:T(1,128)}', space=vmem, size = 0x9000, scoped, tag = 'internal scratch']
  %s0 = inlined_call_operand.vmem [shape: bf16[2,4,256], index: 0, kind: input, shape index: {}]
  %s1 = inlined_call_operand.vmem [shape: f32[9,1,256], index: 1, kind: input, shape index: {}]
  %s2 = inlined_call_operand.vmem [shape: bf16[9,16,4], index: 2, kind: input, shape index: {}]
  %s3 = inlined_call_operand.vmem [shape: f32[16,1], index: 3, kind: input, shape index: {}]
  %s4 = inlined_call_operand.vmem [shape: bf16[24,16], index: 4, kind: input, shape index: {}]
  %s5 = inlined_call_operand.vmem [shape: f32[24,1], index: 5, kind: input, shape index: {}]
  %s6 = inlined_call_operand.vmem [shape: bf16[9,8,8], index: 6, kind: input, shape index: {}]
  %s7 = inlined_call_operand.vmem [shape: f32[8,1], index: 7, kind: input, shape index: {}]
  %s8 = inlined_call_operand.vmem [shape: bf16[9,8,8], index: 8, kind: input, shape index: {}]
  %s9 = inlined_call_operand.vmem [shape: f32[8,1], index: 9, kind: input, shape index: {}]
  %s10 = inlined_call_operand.vmem [shape: bf16[9,8,8], index: 10, kind: input, shape index: {}]
  %s11 = inlined_call_operand.vmem [shape: f32[8,1], index: 11, kind: input, shape index: {}]
  %s12 = inlined_call_operand.vmem [shape: bf16[8,16], index: 12, kind: input, shape index: {}]
  %s13 = inlined_call_operand.vmem [shape: f32[8,1], index: 13, kind: input, shape index: {}]
  %s14 = inlined_call_operand.vmem [shape: f32[32,10], index: 14, kind: input, shape index: {}]
  %s15 = inlined_call_operand.vmem [shape: f32[1,10], index: 15, kind: input, shape index: {}]
  %s16 = inlined_call_operand.hbm [shape: f32[2,1,10], index: 16, kind: output, shape index: {}]
  %s17 = sld [smem:[#allocation0]]
  $region97: #{inception_forward.1} parent=0
    _
  %s19 = ssub.s32 1, %s17
  %s20 = scalar_select 0, %s19, %s17
  $region1: #{inception_forward.1} parent=0
    #allocation2 [shape = 'u8[1024]{0}', space=vmem, size = 0x400, scoped, tag = 'output window, operand 0']
    #allocation3 [shape = 's32[2]{0}', space=sflag, size = 0x8, scoped, tag = 'scoped memory for inception_forward.1']
    %21 = vsyncpa [#allocation3], 0
    %s22 = scalar_lea.sflag [#allocation3], 1
    %23 = vsyncpa %s22, 0
    loop: start=0, step=1, limit=4
    $region2: #{inception_forward.1} parent=1 // loop_pre_header
      _
    $region3: #{inception_forward.1} parent=1 // loop_header
      %s25 = sphi 0, %s29
      %p26 = scmp.ge.s32.totalorder %s25, 4
      %s35 = sphi 0, %s37
      %s38 = sphi 0, %s35
      %s39 = sphi 0, %s38
      %s55 = sphi 0, %s39
      %s59 = sphi 0, %s59
      %s61 = sphi 0, %s59
      %s62 = sphi 0, %s61
      %s76 = sphi 0, %s62
      %s80 = sphi 0, %s80
      %s82 = sphi 0, %s80
      %s83 = sphi 0, %s82
      %s97 = sphi 0, %s83
      %s101 = sphi 0, %s101
      %s103 = sphi 0, %s101
      %s104 = sphi 0, %s103
      %s118 = sphi 0, %s104
      %s122 = sphi 0, %s122
      %s124 = sphi 0, %s122
      %s125 = sphi 0, %s124
      %s139 = sphi 0, %s125
      %s143 = sphi 0, %s143
      %s145 = sphi 0, %s143
      %s146 = sphi 0, %s145
      %s160 = sphi 0, %s146
      %s164 = sphi 0, %s164
      %s166 = sphi 0, %s164
      %s167 = sphi 0, %s166
      %s181 = sphi 0, %s167
      %s185 = sphi 0, %s185
      %s187 = sphi 0, %s185
      %s188 = sphi 0, %s187
      %s202 = sphi 0, %s188
      %s206 = sphi 0, %s206
      %s208 = sphi 0, %s206
      %s209 = sphi 0, %s208
      %s223 = sphi 0, %s209
      %s227 = sphi 0, %s227
      %s229 = sphi 0, %s227
      %s230 = sphi 0, %s229
      %s244 = sphi 0, %s230
      %s248 = sphi 0, %s248
      %s250 = sphi 0, %s248
      %s251 = sphi 0, %s250
      %s265 = sphi 0, %s251
      %s269 = sphi 0, %s269
      %s271 = sphi 0, %s269
      %s272 = sphi 0, %s271
      %s286 = sphi 0, %s272
      %s290 = sphi 0, %s290
      %s292 = sphi 0, %s290
      %s293 = sphi 0, %s292
      %s307 = sphi 0, %s293
      %s311 = sphi 0, %s311
      %s313 = sphi 0, %s311
      %s314 = sphi 0, %s313
      %s328 = sphi 0, %s314
      %s332 = sphi 0, %s332
      %s334 = sphi 0, %s332
      %s335 = sphi 0, %s334
      %s349 = sphi 0, %s335
      %s353 = sphi 0, %s353
      %s355 = sphi 0, %s353
      %s356 = sphi 0, %s355
      %s370 = sphi 0, %s356
      %s376 = sphi 0, %s378
      %s379 = sphi 0, %s376
      %s380 = sphi 0, %s379
      %s396 = sphi 0, %s380
    $region4: #{inception_forward.1} parent=1 // loop_header_branch
      %28 = sbr.rel (%p26) target = $region8
    $region5: #{inception_forward.1} parent=1 // loop_body
      %s30 = ssub.s32 %s25, 1
      %s31 = ssub.s32 %s25, 2
      %s32 = sadd.s32 %s25, 1
      %s33 = ssub.s32 %s25, %s32
      %p34 = scmp.eq.s32.totalorder %s33, 0
      %s36 = sadd.s32 %s35, 1
      %s37 = scalar_select %p34, %s35, %s36
      %p40 = pneg %p34
      %p41 = scmp.eq.s32.totalorder %s25, 1
      %p42 = por %p40, %p41
      %p43 = scmp.ne.s32.totalorder %s35, %s38
      %p44 = scmp.eq.s32.totalorder %s25, 0
      %p45 = por %p43, %p44
      %p46 = scmp.ne.s32.totalorder %s35, %s38
      %p47 = scmp.eq.s32.totalorder %s30, 1
      %p48 = por %p46, %p47
      %p49 = scmp.ne.s32.totalorder %s38, %s39
      %p50 = scmp.eq.s32.totalorder %s30, 0
      %p51 = por %p49, %p50
      %p52 = scmp.ne.s32.totalorder %s38, %s39
      %p53 = scmp.eq.s32.totalorder %s31, 1
      %p54 = por %p52, %p53
      %p56 = scmp.ne.s32.totalorder %s39, %s55
      %p57 = scmp.eq.s32.totalorder %s31, 0
      %p58 = por %p56, %p57
      %s60 = sadd.s32 %s59, 1
      %p63 = scmp.eq.s32.totalorder %s25, 1
      %p64 = scmp.ne.s32.totalorder %s59, %s61
      %p65 = scmp.eq.s32.totalorder %s25, 0
      %p66 = por %p64, %p65
      %p67 = scmp.ne.s32.totalorder %s59, %s61
      %p68 = scmp.eq.s32.totalorder %s30, 1
      %p69 = por %p67, %p68
      %p70 = scmp.ne.s32.totalorder %s61, %s62
      %p71 = scmp.eq.s32.totalorder %s30, 0
      %p72 = por %p70, %p71
      %p73 = scmp.ne.s32.totalorder %s61, %s62
      %p74 = scmp.eq.s32.totalorder %s31, 1
      %p75 = por %p73, %p74
      %p77 = scmp.ne.s32.totalorder %s62, %s76
      %p78 = scmp.eq.s32.totalorder %s31, 0
      %p79 = por %p77, %p78
      %s81 = sadd.s32 %s80, 1
      %p84 = scmp.eq.s32.totalorder %s25, 1
      %p85 = scmp.ne.s32.totalorder %s80, %s82
      %p86 = scmp.eq.s32.totalorder %s25, 0
      %p87 = por %p85, %p86
      %p88 = scmp.ne.s32.totalorder %s80, %s82
      %p89 = scmp.eq.s32.totalorder %s30, 1
      %p90 = por %p88, %p89
      %p91 = scmp.ne.s32.totalorder %s82, %s83
      %p92 = scmp.eq.s32.totalorder %s30, 0
      %p93 = por %p91, %p92
      %p94 = scmp.ne.s32.totalorder %s82, %s83
      %p95 = scmp.eq.s32.totalorder %s31, 1
      %p96 = por %p94, %p95
      %p98 = scmp.ne.s32.totalorder %s83, %s97
      %p99 = scmp.eq.s32.totalorder %s31, 0
      %p100 = por %p98, %p99
      %s102 = sadd.s32 %s101, 1
      %p105 = scmp.eq.s32.totalorder %s25, 1
      %p106 = scmp.ne.s32.totalorder %s101, %s103
      %p107 = scmp.eq.s32.totalorder %s25, 0
      %p108 = por %p106, %p107
      %p109 = scmp.ne.s32.totalorder %s101, %s103
      %p110 = scmp.eq.s32.totalorder %s30, 1
      %p111 = por %p109, %p110
      %p112 = scmp.ne.s32.totalorder %s103, %s104
      %p113 = scmp.eq.s32.totalorder %s30, 0
      %p114 = por %p112, %p113
      %p115 = scmp.ne.s32.totalorder %s103, %s104
      %p116 = scmp.eq.s32.totalorder %s31, 1
      %p117 = por %p115, %p116
      %p119 = scmp.ne.s32.totalorder %s104, %s118
      %p120 = scmp.eq.s32.totalorder %s31, 0
      %p121 = por %p119, %p120
      %s123 = sadd.s32 %s122, 1
      %p126 = scmp.eq.s32.totalorder %s25, 1
      %p127 = scmp.ne.s32.totalorder %s122, %s124
      %p128 = scmp.eq.s32.totalorder %s25, 0
      %p129 = por %p127, %p128
      %p130 = scmp.ne.s32.totalorder %s122, %s124
      %p131 = scmp.eq.s32.totalorder %s30, 1
      %p132 = por %p130, %p131
      %p133 = scmp.ne.s32.totalorder %s124, %s125
      %p134 = scmp.eq.s32.totalorder %s30, 0
      %p135 = por %p133, %p134
      %p136 = scmp.ne.s32.totalorder %s124, %s125
      %p137 = scmp.eq.s32.totalorder %s31, 1
      %p138 = por %p136, %p137
      %p140 = scmp.ne.s32.totalorder %s125, %s139
      %p141 = scmp.eq.s32.totalorder %s31, 0
      %p142 = por %p140, %p141
      %s144 = sadd.s32 %s143, 1
      %p147 = scmp.eq.s32.totalorder %s25, 1
      %p148 = scmp.ne.s32.totalorder %s143, %s145
      %p149 = scmp.eq.s32.totalorder %s25, 0
      %p150 = por %p148, %p149
      %p151 = scmp.ne.s32.totalorder %s143, %s145
      %p152 = scmp.eq.s32.totalorder %s30, 1
      %p153 = por %p151, %p152
      %p154 = scmp.ne.s32.totalorder %s145, %s146
      %p155 = scmp.eq.s32.totalorder %s30, 0
      %p156 = por %p154, %p155
      %p157 = scmp.ne.s32.totalorder %s145, %s146
      %p158 = scmp.eq.s32.totalorder %s31, 1
      %p159 = por %p157, %p158
      %p161 = scmp.ne.s32.totalorder %s146, %s160
      %p162 = scmp.eq.s32.totalorder %s31, 0
      %p163 = por %p161, %p162
      %s165 = sadd.s32 %s164, 1
      %p168 = scmp.eq.s32.totalorder %s25, 1
      %p169 = scmp.ne.s32.totalorder %s164, %s166
      %p170 = scmp.eq.s32.totalorder %s25, 0
      %p171 = por %p169, %p170
      %p172 = scmp.ne.s32.totalorder %s164, %s166
      %p173 = scmp.eq.s32.totalorder %s30, 1
      %p174 = por %p172, %p173
      %p175 = scmp.ne.s32.totalorder %s166, %s167
      %p176 = scmp.eq.s32.totalorder %s30, 0
      %p177 = por %p175, %p176
      %p178 = scmp.ne.s32.totalorder %s166, %s167
      %p179 = scmp.eq.s32.totalorder %s31, 1
      %p180 = por %p178, %p179
      %p182 = scmp.ne.s32.totalorder %s167, %s181
      %p183 = scmp.eq.s32.totalorder %s31, 0
      %p184 = por %p182, %p183
      %s186 = sadd.s32 %s185, 1
      %p189 = scmp.eq.s32.totalorder %s25, 1
      %p190 = scmp.ne.s32.totalorder %s185, %s187
      %p191 = scmp.eq.s32.totalorder %s25, 0
      %p192 = por %p190, %p191
      %p193 = scmp.ne.s32.totalorder %s185, %s187
      %p194 = scmp.eq.s32.totalorder %s30, 1
      %p195 = por %p193, %p194
      %p196 = scmp.ne.s32.totalorder %s187, %s188
      %p197 = scmp.eq.s32.totalorder %s30, 0
      %p198 = por %p196, %p197
      %p199 = scmp.ne.s32.totalorder %s187, %s188
      %p200 = scmp.eq.s32.totalorder %s31, 1
      %p201 = por %p199, %p200
      %p203 = scmp.ne.s32.totalorder %s188, %s202
      %p204 = scmp.eq.s32.totalorder %s31, 0
      %p205 = por %p203, %p204
      %s207 = sadd.s32 %s206, 1
      %p210 = scmp.eq.s32.totalorder %s25, 1
      %p211 = scmp.ne.s32.totalorder %s206, %s208
      %p212 = scmp.eq.s32.totalorder %s25, 0
      %p213 = por %p211, %p212
      %p214 = scmp.ne.s32.totalorder %s206, %s208
      %p215 = scmp.eq.s32.totalorder %s30, 1
      %p216 = por %p214, %p215
      %p217 = scmp.ne.s32.totalorder %s208, %s209
      %p218 = scmp.eq.s32.totalorder %s30, 0
      %p219 = por %p217, %p218
      %p220 = scmp.ne.s32.totalorder %s208, %s209
      %p221 = scmp.eq.s32.totalorder %s31, 1
      %p222 = por %p220, %p221
      %p224 = scmp.ne.s32.totalorder %s209, %s223
      %p225 = scmp.eq.s32.totalorder %s31, 0
      %p226 = por %p224, %p225
      %s228 = sadd.s32 %s227, 1
      %p231 = scmp.eq.s32.totalorder %s25, 1
      %p232 = scmp.ne.s32.totalorder %s227, %s229
      %p233 = scmp.eq.s32.totalorder %s25, 0
      %p234 = por %p232, %p233
      %p235 = scmp.ne.s32.totalorder %s227, %s229
      %p236 = scmp.eq.s32.totalorder %s30, 1
      %p237 = por %p235, %p236
      %p238 = scmp.ne.s32.totalorder %s229, %s230
      %p239 = scmp.eq.s32.totalorder %s30, 0
      %p240 = por %p238, %p239
      %p241 = scmp.ne.s32.totalorder %s229, %s230
      %p242 = scmp.eq.s32.totalorder %s31, 1
      %p243 = por %p241, %p242
      %p245 = scmp.ne.s32.totalorder %s230, %s244
      %p246 = scmp.eq.s32.totalorder %s31, 0
      %p247 = por %p245, %p246
      %s249 = sadd.s32 %s248, 1
      %p252 = scmp.eq.s32.totalorder %s25, 1
      %p253 = scmp.ne.s32.totalorder %s248, %s250
      %p254 = scmp.eq.s32.totalorder %s25, 0
      %p255 = por %p253, %p254
      %p256 = scmp.ne.s32.totalorder %s248, %s250
      %p257 = scmp.eq.s32.totalorder %s30, 1
      %p258 = por %p256, %p257
      %p259 = scmp.ne.s32.totalorder %s250, %s251
      %p260 = scmp.eq.s32.totalorder %s30, 0
      %p261 = por %p259, %p260
      %p262 = scmp.ne.s32.totalorder %s250, %s251
      %p263 = scmp.eq.s32.totalorder %s31, 1
      %p264 = por %p262, %p263
      %p266 = scmp.ne.s32.totalorder %s251, %s265
      %p267 = scmp.eq.s32.totalorder %s31, 0
      %p268 = por %p266, %p267
      %s270 = sadd.s32 %s269, 1
      %p273 = scmp.eq.s32.totalorder %s25, 1
      %p274 = scmp.ne.s32.totalorder %s269, %s271
      %p275 = scmp.eq.s32.totalorder %s25, 0
      %p276 = por %p274, %p275
      %p277 = scmp.ne.s32.totalorder %s269, %s271
      %p278 = scmp.eq.s32.totalorder %s30, 1
      %p279 = por %p277, %p278
      %p280 = scmp.ne.s32.totalorder %s271, %s272
      %p281 = scmp.eq.s32.totalorder %s30, 0
      %p282 = por %p280, %p281
      %p283 = scmp.ne.s32.totalorder %s271, %s272
      %p284 = scmp.eq.s32.totalorder %s31, 1
      %p285 = por %p283, %p284
      %p287 = scmp.ne.s32.totalorder %s272, %s286
      %p288 = scmp.eq.s32.totalorder %s31, 0
      %p289 = por %p287, %p288
      %s291 = sadd.s32 %s290, 1
      %p294 = scmp.eq.s32.totalorder %s25, 1
      %p295 = scmp.ne.s32.totalorder %s290, %s292
      %p296 = scmp.eq.s32.totalorder %s25, 0
      %p297 = por %p295, %p296
      %p298 = scmp.ne.s32.totalorder %s290, %s292
      %p299 = scmp.eq.s32.totalorder %s30, 1
      %p300 = por %p298, %p299
      %p301 = scmp.ne.s32.totalorder %s292, %s293
      %p302 = scmp.eq.s32.totalorder %s30, 0
      %p303 = por %p301, %p302
      %p304 = scmp.ne.s32.totalorder %s292, %s293
      %p305 = scmp.eq.s32.totalorder %s31, 1
      %p306 = por %p304, %p305
      %p308 = scmp.ne.s32.totalorder %s293, %s307
      %p309 = scmp.eq.s32.totalorder %s31, 0
      %p310 = por %p308, %p309
      %s312 = sadd.s32 %s311, 1
      %p315 = scmp.eq.s32.totalorder %s25, 1
      %p316 = scmp.ne.s32.totalorder %s311, %s313
      %p317 = scmp.eq.s32.totalorder %s25, 0
      %p318 = por %p316, %p317
      %p319 = scmp.ne.s32.totalorder %s311, %s313
      %p320 = scmp.eq.s32.totalorder %s30, 1
      %p321 = por %p319, %p320
      %p322 = scmp.ne.s32.totalorder %s313, %s314
      %p323 = scmp.eq.s32.totalorder %s30, 0
      %p324 = por %p322, %p323
      %p325 = scmp.ne.s32.totalorder %s313, %s314
      %p326 = scmp.eq.s32.totalorder %s31, 1
      %p327 = por %p325, %p326
      %p329 = scmp.ne.s32.totalorder %s314, %s328
      %p330 = scmp.eq.s32.totalorder %s31, 0
      %p331 = por %p329, %p330
      %s333 = sadd.s32 %s332, 1
      %p336 = scmp.eq.s32.totalorder %s25, 1
      %p337 = scmp.ne.s32.totalorder %s332, %s334
      %p338 = scmp.eq.s32.totalorder %s25, 0
      %p339 = por %p337, %p338
      %p340 = scmp.ne.s32.totalorder %s332, %s334
      %p341 = scmp.eq.s32.totalorder %s30, 1
      %p342 = por %p340, %p341
      %p343 = scmp.ne.s32.totalorder %s334, %s335
      %p344 = scmp.eq.s32.totalorder %s30, 0
      %p345 = por %p343, %p344
      %p346 = scmp.ne.s32.totalorder %s334, %s335
      %p347 = scmp.eq.s32.totalorder %s31, 1
      %p348 = por %p346, %p347
      %p350 = scmp.ne.s32.totalorder %s335, %s349
      %p351 = scmp.eq.s32.totalorder %s31, 0
      %p352 = por %p350, %p351
      %s354 = sadd.s32 %s353, 1
      %p357 = scmp.eq.s32.totalorder %s25, 1
      %p358 = scmp.ne.s32.totalorder %s353, %s355
      %p359 = scmp.eq.s32.totalorder %s25, 0
      %p360 = por %p358, %p359
      %p361 = scmp.ne.s32.totalorder %s353, %s355
      %p362 = scmp.eq.s32.totalorder %s30, 1
      %p363 = por %p361, %p362
      %p364 = scmp.ne.s32.totalorder %s355, %s356
      %p365 = scmp.eq.s32.totalorder %s30, 0
      %p366 = por %p364, %p365
      %p367 = scmp.ne.s32.totalorder %s355, %s356
      %p368 = scmp.eq.s32.totalorder %s31, 1
      %p369 = por %p367, %p368
      %p371 = scmp.ne.s32.totalorder %s356, %s370
      %p372 = scmp.eq.s32.totalorder %s31, 0
      %p373 = por %p371, %p372
      %s374 = ssub.s32 %s25, %s32
      %p375 = scmp.eq.s32.totalorder %s374, 0
      %s377 = sadd.s32 %s376, 1
      %s378 = scalar_select %p375, %s376, %s377
      %p381 = pneg %p375
      %p382 = scmp.eq.s32.totalorder %s25, 1
      %p383 = por %p381, %p382
      %p384 = scmp.ne.s32.totalorder %s376, %s379
      %p385 = scmp.eq.s32.totalorder %s25, 0
      %p386 = por %p384, %p385
      %p387 = scmp.ne.s32.totalorder %s376, %s379
      %p388 = scmp.eq.s32.totalorder %s30, 1
      %p389 = por %p387, %p388
      %p390 = scmp.ne.s32.totalorder %s379, %s380
      %p391 = scmp.eq.s32.totalorder %s30, 0
      %p392 = por %p390, %p391
      %p393 = scmp.ne.s32.totalorder %s379, %s380
      %p394 = scmp.eq.s32.totalorder %s31, 1
      %p395 = por %p393, %p394
      %p397 = scmp.ne.s32.totalorder %s380, %s396
      %p398 = scmp.eq.s32.totalorder %s31, 0
      %p399 = por %p397, %p398
      %p400 = scmp.le.s32.totalorder 1, %s25
      %p401 = scmp.lt.s32.totalorder %s25, 3
      %p402 = pnand %p400, %p401
      %p403 = pneg %p402
      // Predicated region
      $region9: #{inception_forward.1} parent=5 // pred_check
        _
      $region10: #{inception_forward.1} parent=5 // pred_check_branch
        %405 = sbr.rel (%p402) target = $region12
      $region11: #{inception_forward.1} parent=5 // pred_region
        %s406 = ssub.s32 %s25, 1
        // Predicated region
        $region13: #{inception_forward.1} parent=11 // pred_check
          %p407 = pneg %p72
        $region14: #{inception_forward.1} parent=11 // pred_check_branch
          %409 = sbr.rel (%p407) target = $region16
        $region15: #{inception_forward.1} parent=11 // pred_region
          _
        $region16: #{inception_forward.1} parent=11 // pred_fallthru
          _
        // Predicated region
        $region17: #{inception_forward.1} parent=11 // pred_check
          %p410 = pneg %p93
        $region18: #{inception_forward.1} parent=11 // pred_check_branch
          %412 = sbr.rel (%p410) target = $region20
        $region19: #{inception_forward.1} parent=11 // pred_region
          _
        $region20: #{inception_forward.1} parent=11 // pred_fallthru
          _
        // Predicated region
        $region21: #{inception_forward.1} parent=11 // pred_check
          %p413 = pneg %p114
        $region22: #{inception_forward.1} parent=11 // pred_check_branch
          %415 = sbr.rel (%p413) target = $region24
        $region23: #{inception_forward.1} parent=11 // pred_region
          _
        $region24: #{inception_forward.1} parent=11 // pred_fallthru
          _
        // Predicated region
        $region25: #{inception_forward.1} parent=11 // pred_check
          %p416 = pneg %p135
        $region26: #{inception_forward.1} parent=11 // pred_check_branch
          %418 = sbr.rel (%p416) target = $region28
        $region27: #{inception_forward.1} parent=11 // pred_region
          _
        $region28: #{inception_forward.1} parent=11 // pred_fallthru
          _
        // Predicated region
        $region29: #{inception_forward.1} parent=11 // pred_check
          %p419 = pneg %p156
        $region30: #{inception_forward.1} parent=11 // pred_check_branch
          %421 = sbr.rel (%p419) target = $region32
        $region31: #{inception_forward.1} parent=11 // pred_region
          _
        $region32: #{inception_forward.1} parent=11 // pred_fallthru
          _
        // Predicated region
        $region33: #{inception_forward.1} parent=11 // pred_check
          %p422 = pneg %p177
        $region34: #{inception_forward.1} parent=11 // pred_check_branch
          %424 = sbr.rel (%p422) target = $region36
        $region35: #{inception_forward.1} parent=11 // pred_region
          _
        $region36: #{inception_forward.1} parent=11 // pred_fallthru
          _
        // Predicated region
        $region37: #{inception_forward.1} parent=11 // pred_check
          %p425 = pneg %p198
        $region38: #{inception_forward.1} parent=11 // pred_check_branch
          %427 = sbr.rel (%p425) target = $region40
        $region39: #{inception_forward.1} parent=11 // pred_region
          _
        $region40: #{inception_forward.1} parent=11 // pred_fallthru
          _
        // Predicated region
        $region41: #{inception_forward.1} parent=11 // pred_check
          %p428 = pneg %p219
        $region42: #{inception_forward.1} parent=11 // pred_check_branch
          %430 = sbr.rel (%p428) target = $region44
        $region43: #{inception_forward.1} parent=11 // pred_region
          _
        $region44: #{inception_forward.1} parent=11 // pred_fallthru
          _
        // Predicated region
        $region45: #{inception_forward.1} parent=11 // pred_check
          %p431 = pneg %p240
        $region46: #{inception_forward.1} parent=11 // pred_check_branch
          %433 = sbr.rel (%p431) target = $region48
        $region47: #{inception_forward.1} parent=11 // pred_region
          _
        $region48: #{inception_forward.1} parent=11 // pred_fallthru
          _
        // Predicated region
        $region49: #{inception_forward.1} parent=11 // pred_check
          %p434 = pneg %p261
        $region50: #{inception_forward.1} parent=11 // pred_check_branch
          %436 = sbr.rel (%p434) target = $region52
        $region51: #{inception_forward.1} parent=11 // pred_region
          _
        $region52: #{inception_forward.1} parent=11 // pred_fallthru
          _
        // Predicated region
        $region53: #{inception_forward.1} parent=11 // pred_check
          %p437 = pneg %p282
        $region54: #{inception_forward.1} parent=11 // pred_check_branch
          %439 = sbr.rel (%p437) target = $region56
        $region55: #{inception_forward.1} parent=11 // pred_region
          _
        $region56: #{inception_forward.1} parent=11 // pred_fallthru
          _
        // Predicated region
        $region57: #{inception_forward.1} parent=11 // pred_check
          %p440 = pneg %p303
        $region58: #{inception_forward.1} parent=11 // pred_check_branch
          %442 = sbr.rel (%p440) target = $region60
        $region59: #{inception_forward.1} parent=11 // pred_region
          _
        $region60: #{inception_forward.1} parent=11 // pred_fallthru
          _
        // Predicated region
        $region61: #{inception_forward.1} parent=11 // pred_check
          %p443 = pneg %p324
        $region62: #{inception_forward.1} parent=11 // pred_check_branch
          %445 = sbr.rel (%p443) target = $region64
        $region63: #{inception_forward.1} parent=11 // pred_region
          _
        $region64: #{inception_forward.1} parent=11 // pred_fallthru
          _
        // Predicated region
        $region65: #{inception_forward.1} parent=11 // pred_check
          %p446 = pneg %p345
        $region66: #{inception_forward.1} parent=11 // pred_check_branch
          %448 = sbr.rel (%p446) target = $region68
        $region67: #{inception_forward.1} parent=11 // pred_region
          _
        $region68: #{inception_forward.1} parent=11 // pred_fallthru
          _
        // Predicated region
        $region69: #{inception_forward.1} parent=11 // pred_check
          %p449 = pneg %p366
        $region70: #{inception_forward.1} parent=11 // pred_check_branch
          %451 = sbr.rel (%p449) target = $region72
        $region71: #{inception_forward.1} parent=11 // pred_region
          _
        $region72: #{inception_forward.1} parent=11 // pred_fallthru
          _
      $region12: #{inception_forward.1} parent=5 // pred_fallthru
        _
      %p452 = scmp.lt.s32.totalorder %s25, 2
      // Predicated region
      $region73: #{inception_forward.1} parent=5 // pred_check
        %p453 = pneg %p452
      $region74: #{inception_forward.1} parent=5 // pred_check_branch
        %455 = sbr.rel (%p453) target = $region76
      $region75: #{inception_forward.1} parent=5 // pred_region
        // Predicated region
        $region77: #{inception_forward.1} parent=75 // pred_check
          %p456 = pneg %p45
        $region78: #{inception_forward.1} parent=75 // pred_check_branch
          %458 = sbr.rel (%p456) target = $region80
        $region79: #{inception_forward.1} parent=75 // pred_region
          %p459 = scmp.lt.s32.totalorder %s25, 1
          %s460 = scalar_select %p459, %s25, 1
          %s461 = smul.addr %s460, 2
          %s462 = smul.addr %s461, 2
          %s463 = scalar_lea.vmem %s0, %s462
        $region80: #{inception_forward.1} parent=75 // pred_fallthru
          _
      $region76: #{inception_forward.1} parent=5 // pred_fallthru
        _
      %p464 = scmp.le.s32.totalorder 1, %s25
      %p465 = scmp.lt.s32.totalorder %s25, 3
      %p466 = pnand %p464, %p465
      %p467 = pneg %p466
      // Predicated region
      $region81: #{inception_forward.1} parent=5 // pred_check
        _
      $region82: #{inception_forward.1} parent=5 // pred_check_branch
        %469 = sbr.rel (%p466) target = $region84
      $region83: #{inception_forward.1} parent=5 // pred_region
        %s470 = ssub.s32 %s25, 1
        %p471 = scmp.lt.s32.totalorder %s30, 1
        %s472 = scalar_select %p471, %s30, 1
        %s473 = smul.addr %s472, 2
        %s474 = smul.addr %s473, 2
        %s475 = scalar_lea.vmem %s0, %s474
        %p476 = pneg %p51
        %p477 = pneg %p48
        %p478 = pneg %p72
        %p479 = pneg %p69
        %p480 = pneg %p93
        %p481 = pneg %p90
        %p482 = pneg %p114
        %p483 = pneg %p111
        %p484 = pneg %p135
        %p485 = pneg %p132
        %p486 = pneg %p156
        %p487 = pneg %p153
        %p488 = pneg %p177
        %p489 = pneg %p174
        %p490 = pneg %p198
        %p491 = pneg %p195
        %p492 = pneg %p219
        %p493 = pneg %p216
        %p494 = pneg %p240
        %p495 = pneg %p237
        %p496 = pneg %p261
        %p497 = pneg %p258
        %p498 = pneg %p282
        %p499 = pneg %p279
        %p500 = pneg %p303
        %p501 = pneg %p300
        %p502 = pneg %p324
        %p503 = pneg %p321
        %p504 = pneg %p345
        %p505 = pneg %p342
        %p506 = pneg %p366
        %p507 = pneg %p363
        %p508 = pneg %p392
        %p509 = pneg %p389
        %s510 = sand.u32 %s379, 1
        %s511 = scalar_lea.sflag [#allocation3], %s510
        %s512 = sand.u32 %s379, 1
        %s513 = scalar_lea.vmem [#allocation2], %s512
        %p514 = scmp.lt.s32.totalorder %s30, 1
        %s515 = scalar_select %p514, %s30, 1
        %s516 = smul.addr %s515, 2
        %s517 = smul.addr %s516, 2
        %s518 = scalar_lea.vmem %s0, %s517
        %v520 = vld [vmem:[%s1] sm:$0x3]
        %s521 = scalar_lea.vmem %s1, 2
        %v522 = vld [vmem:[%s521] sm:$0x3]
        %s523 = scalar_lea.vmem %s1, 4
        %v524 = vld [vmem:[%s523] sm:$0x3]
        %s525 = scalar_lea.vmem %s1, 6
        %v526 = vld [vmem:[%s525] sm:$0x3]
        %s527 = scalar_lea.vmem %s1, 8
        %v528 = vld [vmem:[%s527] sm:$0x3]
        %s529 = scalar_lea.vmem %s1, 10
        %v530 = vld [vmem:[%s529] sm:$0x3]
        %s531 = scalar_lea.vmem %s1, 12
        %v532 = vld [vmem:[%s531] sm:$0x3]
        %s533 = scalar_lea.vmem %s1, 14
        %v534 = vld [vmem:[%s533] sm:$0x3]
        %s535 = scalar_lea.vmem %s1, 16
        %v536 = vld [vmem:[%s535] sm:$0x3]
        %v537 = vld [vmem:[%s518] sm:$0xf]
        %v538 = vunpack.c.l.bf16 %v537
        %v539 = vld [vmem:[%s2] sm:$0xf]
        %v540 = vld [vmem:[%s2 + $0x4] sm:$0xf]
        %542 = vst [vmem:[#allocation1] ss:$2 sm:$0xff] %v538
        %v543 = vld.sshfl [vmem:[#allocation1] sm:$0xff pattern:$0x75316420]
        %v544 = vld.sshfl [vmem:[#allocation1 + $0x8] sm:$0xff pattern:$0x75316420]
        %547 = vrot.lane.b32.xlu0 %v543, 17
        %v548 = vpop.permute.xlu0 %547
        %549 = vrot.lane.b32.xlu0 %v544, 17
        %v550 = vpop.permute.xlu0 %549
        %v551 = vlaneseq
        %v552 = vand.u32 %v551, 127
        %vm553 = vcmp.lt.s32.totalorder %v552, 17
        %v554 = vsel %vm553, %v548, %v550
        %v555 = vsel %vm553, %v550, %v548
        %v557 = vperm.slane %v520, 0
        %v558 = vperm.slane %v520, 1
        %v561 = vmul.f32 %v555, %v557
        %v562 = vmul.f32 %v554, %v558
        %v563 = vpack.c.bf16 %v561, %v561
        %v564 = vpack.c.bf16 %v562, %v562
        %s565 = scalar_lea.vmem %s2, 8
        %v566 = vld [vmem:[%s565] sm:$0xf]
        %v567 = vld [vmem:[%s565 + $0x4] sm:$0xf]
        %568 = vst [vmem:[#allocation1] ss:$2 sm:$0xff] %v538
        %v569 = vld.sshfl [vmem:[#allocation1] sm:$0xff pattern:$0x75316420]
        %v570 = vld.sshfl [vmem:[#allocation1 + $0x8] sm:$0xff pattern:$0x75316420]
        %573 = vrot.lane.b32.xlu0 %v569, 16
        %v574 = vpop.permute.xlu0 %573
        %575 = vrot.lane.b32.xlu0 %v570, 16
        %v576 = vpop.permute.xlu0 %575
        %vm577 = vcmp.lt.s32.totalorder %v552, 16
        %v578 = vsel %vm577, %v574, %v576
        %v579 = vsel %vm577, %v576, %v574
        %v581 = vperm.slane %v522, 0
        %v582 = vperm.slane %v522, 1
        %v585 = vmul.f32 %v579, %v581
        %v586 = vmul.f32 %v578, %v582
        %v587 = vpack.c.bf16 %v585, %v585
        %v588 = vpack.c.bf16 %v586, %v586
        %v591 = vunpack.c.l.b16 %v566
        %v592 = vunpack.c.l.b16 %v567
        %v593 = vpack.c.b16 %v592, %v591
        %vm594 = vcmask 31744
        %v596 = vsel %vm594, %v593, 0
        %vm598 = vcmask 1041408
        %v600 = vsel %vm598, %v587, 0
        %v603 = vsel %vm598, %v588, 0
        %605 = vmatpush.bf16.msra.mxu0 0
        %606 = vmatpush.bf16.msra.mxu0 0
        %607 = vmatpush.bf16.msra.mxu0 0
        %608 = vmatpush.bf16.msra.mxu0 0
        %609 = vmatpush.bf16.msra.mxu0 0
        %610 = vmatpush.bf16.msra.mxu0 0
        %611 = vmatpush.bf16.msra.mxu0 0
        %612 = vmatpush.bf16.msra.mxu0 %v600
        %613 = vmatmul.bf16.gmra.mxu0 %v596
        %v614 = vpop.f32.mrf.mxu0
        %v615 = vadd.f32 0.0, %v614
        %v616 = vpop.f32.mrf.mxu0
        %v617 = vadd.f32 0.0, %v616
        %618 = vdwg.mxu0
        %619 = vmatpush.bf16.msra.mxu0 0
        %620 = vmatpush.bf16.msra.mxu0 0
        %621 = vmatpush.bf16.msra.mxu0 0
        %622 = vmatpush.bf16.msra.mxu0 0
        %623 = vmatpush.bf16.msra.mxu0 0
        %624 = vmatpush.bf16.msra.mxu0 0
        %625 = vmatpush.bf16.msra.mxu0 0
        %626 = vmatpush.bf16.msra.mxu0 %v603
        %627 = vmatmul.bf16.gmra.mxu0 %v596
        %v628 = vpop.f32.mrf.mxu0
        %v629 = vadd.f32 0.0, %v628
        %v630 = vpop.f32.mrf.mxu0
        %v631 = vadd.f32 0.0, %v630
        %632 = vdwg.mxu0
        %v635 = vunpack.c.l.b16 %v539
        %v636 = vunpack.c.l.b16 %v540
        %v637 = vpack.c.b16 %v636, %v635
        %v639 = vsel %vm594, %v637, 0
        %v642 = vsel %vm598, %v563, 0
        %v645 = vsel %vm598, %v564, 0
        %647 = vmatpush.bf16.msra.mxu0 0
        %648 = vmatpush.bf16.msra.mxu0 0
        %649 = vmatpush.bf16.msra.mxu0 0
        %650 = vmatpush.bf16.msra.mxu0 0
        %651 = vmatpush.bf16.msra.mxu0 0
        %652 = vmatpush.bf16.msra.mxu0 0
        %653 = vmatpush.bf16.msra.mxu0 0
        %654 = vmatpush.bf16.msra.mxu0 %v642
        %655 = vmatmul.bf16.gmra.mxu0 %v639
        %v656 = vpop.f32.mrf.mxu0
        %v657 = vadd.f32 %v615, %v656
        %v658 = vpop.f32.mrf.mxu0
        %v659 = vadd.f32 %v617, %v658
        %660 = vdwg.mxu0
        %661 = vmatpush.bf16.msra.mxu0 0
        %662 = vmatpush.bf16.msra.mxu0 0
        %663 = vmatpush.bf16.msra.mxu0 0
        %664 = vmatpush.bf16.msra.mxu0 0
        %665 = vmatpush.bf16.msra.mxu0 0
        %666 = vmatpush.bf16.msra.mxu0 0
        %667 = vmatpush.bf16.msra.mxu0 0
        %668 = vmatpush.bf16.msra.mxu0 %v645
        %669 = vmatmul.bf16.gmra.mxu0 %v639
        %v670 = vpop.f32.mrf.mxu0
        %v671 = vadd.f32 %v629, %v670
        %v672 = vpop.f32.mrf.mxu0
        %v673 = vadd.f32 %v631, %v672
        %674 = vdwg.mxu0
        %s675 = scalar_lea.vmem %s2, 16
        %v676 = vld [vmem:[%s675] sm:$0xf]
        %v677 = vld [vmem:[%s675 + $0x4] sm:$0xf]
        %678 = vst [vmem:[#allocation1] ss:$2 sm:$0xff] %v538
        %v679 = vld.sshfl [vmem:[#allocation1] sm:$0xff pattern:$0x75316420]
        %v680 = vld.sshfl [vmem:[#allocation1 + $0x8] sm:$0xff pattern:$0x75316420]
        %683 = vrot.lane.b32.xlu0 %v679, 15
        %v684 = vpop.permute.xlu0 %683
        %685 = vrot.lane.b32.xlu0 %v680, 15
        %v686 = vpop.permute.xlu0 %685
        %vm687 = vcmp.lt.s32.totalorder %v552, 15
        %v688 = vsel %vm687, %v684, %v686
        %v689 = vsel %vm687, %v686, %v684
        %v691 = vperm.slane %v524, 0
        %v692 = vperm.slane %v524, 1
        %v695 = vmul.f32 %v689, %v691
        %v696 = vmul.f32 %v688, %v692
        %v697 = vpack.c.bf16 %v695, %v695
        %v698 = vpack.c.bf16 %v696, %v696
        %v701 = vunpack.c.l.b16 %v676
        %v702 = vunpack.c.l.b16 %v677
        %v703 = vpack.c.b16 %v702, %v701
        %v705 = vsel %vm594, %v703, 0
        %v708 = vsel %vm598, %v697, 0
        %v711 = vsel %vm598, %v698, 0
        %713 = vmatpush.bf16.msra.mxu0 0
        %714 = vmatpush.bf16.msra.mxu0 0
        %715 = vmatpush.bf16.msra.mxu0 0
        %716 = vmatpush.bf16.msra.mxu0 0
        %717 = vmatpush.bf16.msra.mxu0 0
        %718 = vmatpush.bf16.msra.mxu0 0
        %719 = vmatpush.bf16.msra.mxu0 0
        %720 = vmatpush.bf16.msra.mxu0 %v708
        %721 = vmatmul.bf16.gmra.mxu0 %v705
        %v722 = vpop.f32.mrf.mxu0
        %v723 = vadd.f32 0.0, %v722
        %v724 = vpop.f32.mrf.mxu0
        %v725 = vadd.f32 0.0, %v724
        %726 = vdwg.mxu0
        %727 = vmatpush.bf16.msra.mxu0 0
        %728 = vmatpush.bf16.msra.mxu0 0
        %729 = vmatpush.bf16.msra.mxu0 0
        %730 = vmatpush.bf16.msra.mxu0 0
        %731 = vmatpush.bf16.msra.mxu0 0
        %732 = vmatpush.bf16.msra.mxu0 0
        %733 = vmatpush.bf16.msra.mxu0 0
        %734 = vmatpush.bf16.msra.mxu0 %v711
        %735 = vmatmul.bf16.gmra.mxu0 %v705
        %v736 = vpop.f32.mrf.mxu0
        %v737 = vadd.f32 0.0, %v736
        %v738 = vpop.f32.mrf.mxu0
        %v739 = vadd.f32 0.0, %v738
        %740 = vdwg.mxu0
        %v741 = vadd.f32 %v657, %v723
        %v742 = vadd.f32 %v671, %v737
        %v743 = vadd.f32 %v659, %v725
        %v744 = vadd.f32 %v673, %v739
        %s745 = scalar_lea.vmem %s2, 24
        %v746 = vld [vmem:[%s745] sm:$0xf]
        %v747 = vld [vmem:[%s745 + $0x4] sm:$0xf]
        %748 = vst [vmem:[#allocation1] ss:$2 sm:$0xff] %v538
        %v749 = vld.sshfl [vmem:[#allocation1] sm:$0xff pattern:$0x75316420]
        %v750 = vld.sshfl [vmem:[#allocation1 + $0x8] sm:$0xff pattern:$0x75316420]
        %753 = vrot.lane.b32.xlu0 %v749, 1
        %v754 = vpop.permute.xlu0 %753
        %755 = vrot.lane.b32.xlu0 %v750, 1
        %v756 = vpop.permute.xlu0 %755
        %vm757 = vcmp.lt.s32.totalorder %v552, 1
        %v758 = vsel %vm757, %v754, %v756
        %v759 = vsel %vm757, %v756, %v754
        %v761 = vperm.slane %v526, 0
        %v762 = vperm.slane %v526, 1
        %v765 = vmul.f32 %v759, %v761
        %v766 = vmul.f32 %v758, %v762
        %v767 = vpack.c.bf16 %v765, %v765
        %v768 = vpack.c.bf16 %v766, %v766
        %v771 = vunpack.c.l.b16 %v746
        %v772 = vunpack.c.l.b16 %v747
        %v773 = vpack.c.b16 %v772, %v771
        %v775 = vsel %vm594, %v773, 0
        %v778 = vsel %vm598, %v767, 0
        %v781 = vsel %vm598, %v768, 0
        %783 = vmatpush.bf16.msra.mxu0 0
        %784 = vmatpush.bf16.msra.mxu0 0
        %785 = vmatpush.bf16.msra.mxu0 0
        %786 = vmatpush.bf16.msra.mxu0 0
        %787 = vmatpush.bf16.msra.mxu0 0
        %788 = vmatpush.bf16.msra.mxu0 0
        %789 = vmatpush.bf16.msra.mxu0 0
        %790 = vmatpush.bf16.msra.mxu0 %v778
        %791 = vmatmul.bf16.gmra.mxu0 %v775
        %v792 = vpop.f32.mrf.mxu0
        %v793 = vadd.f32 0.0, %v792
        %v794 = vpop.f32.mrf.mxu0
        %v795 = vadd.f32 0.0, %v794
        %796 = vdwg.mxu0
        %797 = vmatpush.bf16.msra.mxu0 0
        %798 = vmatpush.bf16.msra.mxu0 0
        %799 = vmatpush.bf16.msra.mxu0 0
        %800 = vmatpush.bf16.msra.mxu0 0
        %801 = vmatpush.bf16.msra.mxu0 0
        %802 = vmatpush.bf16.msra.mxu0 0
        %803 = vmatpush.bf16.msra.mxu0 0
        %804 = vmatpush.bf16.msra.mxu0 %v781
        %805 = vmatmul.bf16.gmra.mxu0 %v775
        %v806 = vpop.f32.mrf.mxu0
        %v807 = vadd.f32 0.0, %v806
        %v808 = vpop.f32.mrf.mxu0
        %v809 = vadd.f32 0.0, %v808
        %810 = vdwg.mxu0
        %v811 = vadd.f32 %v741, %v793
        %v812 = vadd.f32 %v742, %v807
        %v813 = vadd.f32 %v743, %v795
        %v814 = vadd.f32 %v744, %v809
        %s815 = scalar_lea.vmem %s2, 32
        %v816 = vld [vmem:[%s815] sm:$0xf]
        %v817 = vld [vmem:[%s815 + $0x4] sm:$0xf]
        %v819 = vperm.slane %v528, 0
        %v820 = vperm.slane %v528, 1
        %v821 = vrot.slane %v820, 4
        %vm822 = vcmask 1043456
        %v823 = vsel %vm822, %v819, %v821
        %v825 = vmul.f32 %v538, %v823
        %827 = vst [vmem:[#allocation1] ss:$2 sm:$0xff] %v825
        %v828 = vld.sshfl [vmem:[#allocation1] sm:$0xff pattern:$0x75316420]
        %v829 = vld.sshfl [vmem:[#allocation1 + $0x8] sm:$0xff pattern:$0x75316420]
        %v832 = vpack.c.bf16 %v828, %v828
        %v833 = vpack.c.bf16 %v829, %v829
        %v836 = vunpack.c.l.b16 %v816
        %v837 = vunpack.c.l.b16 %v817
        %v838 = vpack.c.b16 %v837, %v836
        %v840 = vsel %vm594, %v838, 0
        %v843 = vsel %vm598, %v832, 0
        %v846 = vsel %vm598, %v833, 0
        %848 = vmatpush.bf16.msra.mxu0 0
        %849 = vmatpush.bf16.msra.mxu0 0
        %850 = vmatpush.bf16.msra.mxu0 0
        %851 = vmatpush.bf16.msra.mxu0 0
        %852 = vmatpush.bf16.msra.mxu0 0
        %853 = vmatpush.bf16.msra.mxu0 0
        %854 = vmatpush.bf16.msra.mxu0 0
        %855 = vmatpush.bf16.msra.mxu0 %v843
        %856 = vmatmul.bf16.gmra.mxu0 %v840
        %v857 = vpop.f32.mrf.mxu0
        %v858 = vadd.f32 0.0, %v857
        %v859 = vpop.f32.mrf.mxu0
        %v860 = vadd.f32 0.0, %v859
        %861 = vdwg.mxu0
        %862 = vmatpush.bf16.msra.mxu0 0
        %863 = vmatpush.bf16.msra.mxu0 0
        %864 = vmatpush.bf16.msra.mxu0 0
        %865 = vmatpush.bf16.msra.mxu0 0
        %866 = vmatpush.bf16.msra.mxu0 0
        %867 = vmatpush.bf16.msra.mxu0 0
        %868 = vmatpush.bf16.msra.mxu0 0
        %869 = vmatpush.bf16.msra.mxu0 %v846
        %870 = vmatmul.bf16.gmra.mxu0 %v840
        %v871 = vpop.f32.mrf.mxu0
        %v872 = vadd.f32 0.0, %v871
        %v873 = vpop.f32.mrf.mxu0
        %v874 = vadd.f32 0.0, %v873
        %875 = vdwg.mxu0
        %v876 = vadd.f32 %v811, %v858
        %v877 = vadd.f32 %v812, %v872
        %v878 = vadd.f32 %v813, %v860
        %v879 = vadd.f32 %v814, %v874
        %s880 = scalar_lea.vmem %s2, 40
        %v881 = vld [vmem:[%s880] sm:$0xf]
        %v882 = vld [vmem:[%s880 + $0x4] sm:$0xf]
        %883 = vst [vmem:[#allocation1] ss:$2 sm:$0xff] %v538
        %v884 = vld.sshfl [vmem:[#allocation1] sm:$0xff pattern:$0x75316420]
        %v885 = vld.sshfl [vmem:[#allocation1 + $0x8] sm:$0xff pattern:$0x75316420]
        %888 = vrot.lane.b32.xlu0 %v884, 127
        %v889 = vpop.permute.xlu0 %888
        %890 = vrot.lane.b32.xlu0 %v885, 127
        %v891 = vpop.permute.xlu0 %890
        %vm892 = vcmp.lt.s32.totalorder %v552, 127
        %v893 = vsel %vm892, %v889, %v891
        %v894 = vsel %vm892, %v891, %v889
        %v896 = vperm.slane %v530, 0
        %v897 = vperm.slane %v530, 1
        %v900 = vmul.f32 %v893, %v896
        %v901 = vmul.f32 %v894, %v897
        %v902 = vpack.c.bf16 %v900, %v900
        %v903 = vpack.c.bf16 %v901, %v901
        %v906 = vunpack.c.l.b16 %v881
        %v907 = vunpack.c.l.b16 %v882
        %v908 = vpack.c.b16 %v907, %v906
        %v910 = vsel %vm594, %v908, 0
        %v913 = vsel %vm598, %v902, 0
        %v916 = vsel %vm598, %v903, 0
        %918 = vmatpush.bf16.msra.mxu0 0
        %919 = vmatpush.bf16.msra.mxu0 0
        %920 = vmatpush.bf16.msra.mxu0 0
        %921 = vmatpush.bf16.msra.mxu0 0
        %922 = vmatpush.bf16.msra.mxu0 0
        %923 = vmatpush.bf16.msra.mxu0 0
        %924 = vmatpush.bf16.msra.mxu0 0
        %925 = vmatpush.bf16.msra.mxu0 %v913
        %926 = vmatmul.bf16.gmra.mxu0 %v910
        %v927 = vpop.f32.mrf.mxu0
        %v928 = vadd.f32 0.0, %v927
        %v929 = vpop.f32.mrf.mxu0
        %v930 = vadd.f32 0.0, %v929
        %931 = vdwg.mxu0
        %932 = vmatpush.bf16.msra.mxu0 0
        %933 = vmatpush.bf16.msra.mxu0 0
        %934 = vmatpush.bf16.msra.mxu0 0
        %935 = vmatpush.bf16.msra.mxu0 0
        %936 = vmatpush.bf16.msra.mxu0 0
        %937 = vmatpush.bf16.msra.mxu0 0
        %938 = vmatpush.bf16.msra.mxu0 0
        %939 = vmatpush.bf16.msra.mxu0 %v916
        %940 = vmatmul.bf16.gmra.mxu0 %v910
        %v941 = vpop.f32.mrf.mxu0
        %v942 = vadd.f32 0.0, %v941
        %v943 = vpop.f32.mrf.mxu0
        %v944 = vadd.f32 0.0, %v943
        %945 = vdwg.mxu0
        %v946 = vadd.f32 %v876, %v928
        %v947 = vadd.f32 %v877, %v942
        %v948 = vadd.f32 %v878, %v930
        %v949 = vadd.f32 %v879, %v944
        %s950 = scalar_lea.vmem %s2, 48
        %v951 = vld [vmem:[%s950] sm:$0xf]
        %v952 = vld [vmem:[%s950 + $0x4] sm:$0xf]
        %953 = vst [vmem:[#allocation1] ss:$2 sm:$0xff] %v538
        %v954 = vld.sshfl [vmem:[#allocation1] sm:$0xff pattern:$0x75316420]
        %v955 = vld.sshfl [vmem:[#allocation1 + $0x8] sm:$0xff pattern:$0x75316420]
        %958 = vrot.lane.b32.xlu0 %v954, 113
        %v959 = vpop.permute.xlu0 %958
        %960 = vrot.lane.b32.xlu0 %v955, 113
        %v961 = vpop.permute.xlu0 %960
        %vm962 = vcmp.lt.s32.totalorder %v552, 113
        %v963 = vsel %vm962, %v959, %v961
        %v964 = vsel %vm962, %v961, %v959
        %v966 = vperm.slane %v532, 0
        %v967 = vperm.slane %v532, 1
        %v970 = vmul.f32 %v963, %v966
        %v971 = vmul.f32 %v964, %v967
        %v972 = vpack.c.bf16 %v970, %v970
        %v973 = vpack.c.bf16 %v971, %v971
        %v976 = vunpack.c.l.b16 %v951
        %v977 = vunpack.c.l.b16 %v952
        %v978 = vpack.c.b16 %v977, %v976
        %v980 = vsel %vm594, %v978, 0
        %v983 = vsel %vm598, %v972, 0
        %v986 = vsel %vm598, %v973, 0
        %988 = vmatpush.bf16.msra.mxu0 0
        %989 = vmatpush.bf16.msra.mxu0 0
        %990 = vmatpush.bf16.msra.mxu0 0
        %991 = vmatpush.bf16.msra.mxu0 0
        %992 = vmatpush.bf16.msra.mxu0 0
        %993 = vmatpush.bf16.msra.mxu0 0
        %994 = vmatpush.bf16.msra.mxu0 0
        %995 = vmatpush.bf16.msra.mxu0 %v983
        %996 = vmatmul.bf16.gmra.mxu0 %v980
        %v997 = vpop.f32.mrf.mxu0
        %v998 = vadd.f32 0.0, %v997
        %v999 = vpop.f32.mrf.mxu0
        %v1000 = vadd.f32 0.0, %v999
        %1001 = vdwg.mxu0
        %1002 = vmatpush.bf16.msra.mxu0 0
        %1003 = vmatpush.bf16.msra.mxu0 0
        %1004 = vmatpush.bf16.msra.mxu0 0
        %1005 = vmatpush.bf16.msra.mxu0 0
        %1006 = vmatpush.bf16.msra.mxu0 0
        %1007 = vmatpush.bf16.msra.mxu0 0
        %1008 = vmatpush.bf16.msra.mxu0 0
        %1009 = vmatpush.bf16.msra.mxu0 %v986
        %1010 = vmatmul.bf16.gmra.mxu0 %v980
        %v1011 = vpop.f32.mrf.mxu0
        %v1012 = vadd.f32 0.0, %v1011
        %v1013 = vpop.f32.mrf.mxu0
        %v1014 = vadd.f32 0.0, %v1013
        %1015 = vdwg.mxu0
        %v1016 = vadd.f32 %v946, %v998
        %v1017 = vadd.f32 %v947, %v1012
        %v1018 = vadd.f32 %v948, %v1000
        %v1019 = vadd.f32 %v949, %v1014
        %s1020 = scalar_lea.vmem %s2, 56
        %v1021 = vld [vmem:[%s1020] sm:$0xf]
        %v1022 = vld [vmem:[%s1020 + $0x4] sm:$0xf]
        %1023 = vst [vmem:[#allocation1] ss:$2 sm:$0xff] %v538
        %v1024 = vld.sshfl [vmem:[#allocation1] sm:$0xff pattern:$0x75316420]
        %v1025 = vld.sshfl [vmem:[#allocation1 + $0x8] sm:$0xff pattern:$0x75316420]
        %1028 = vrot.lane.b32.xlu0 %v1024, 112
        %v1029 = vpop.permute.xlu0 %1028
        %1030 = vrot.lane.b32.xlu0 %v1025, 112
        %v1031 = vpop.permute.xlu0 %1030
        %vm1032 = vcmp.lt.s32.totalorder %v552, 112
        %v1033 = vsel %vm1032, %v1029, %v1031
        %v1034 = vsel %vm1032, %v1031, %v1029
        %v1036 = vperm.slane %v534, 0
        %v1037 = vperm.slane %v534, 1
        %v1040 = vmul.f32 %v1033, %v1036
        %v1041 = vmul.f32 %v1034, %v1037
        %v1042 = vpack.c.bf16 %v1040, %v1040
        %v1043 = vpack.c.bf16 %v1041, %v1041
        %v1046 = vunpack.c.l.b16 %v1021
        %v1047 = vunpack.c.l.b16 %v1022
        %v1048 = vpack.c.b16 %v1047, %v1046
        %v1050 = vsel %vm594, %v1048, 0
        %v1053 = vsel %vm598, %v1042, 0
        %v1056 = vsel %vm598, %v1043, 0
        %1058 = vmatpush.bf16.msra.mxu0 0
        %1059 = vmatpush.bf16.msra.mxu0 0
        %1060 = vmatpush.bf16.msra.mxu0 0
        %1061 = vmatpush.bf16.msra.mxu0 0
        %1062 = vmatpush.bf16.msra.mxu0 0
        %1063 = vmatpush.bf16.msra.mxu0 0
        %1064 = vmatpush.bf16.msra.mxu0 0
        %1065 = vmatpush.bf16.msra.mxu0 %v1053
        %1066 = vmatmul.bf16.gmra.mxu0 %v1050
        %v1067 = vpop.f32.mrf.mxu0
        %v1068 = vadd.f32 0.0, %v1067
        %v1069 = vpop.f32.mrf.mxu0
        %v1070 = vadd.f32 0.0, %v1069
        %1071 = vdwg.mxu0
        %1072 = vmatpush.bf16.msra.mxu0 0
        %1073 = vmatpush.bf16.msra.mxu0 0
        %1074 = vmatpush.bf16.msra.mxu0 0
        %1075 = vmatpush.bf16.msra.mxu0 0
        %1076 = vmatpush.bf16.msra.mxu0 0
        %1077 = vmatpush.bf16.msra.mxu0 0
        %1078 = vmatpush.bf16.msra.mxu0 0
        %1079 = vmatpush.bf16.msra.mxu0 %v1056
        %1080 = vmatmul.bf16.gmra.mxu0 %v1050
        %v1081 = vpop.f32.mrf.mxu0
        %v1082 = vadd.f32 0.0, %v1081
        %v1083 = vpop.f32.mrf.mxu0
        %v1084 = vadd.f32 0.0, %v1083
        %1085 = vdwg.mxu0
        %v1086 = vadd.f32 %v1016, %v1068
        %v1087 = vadd.f32 %v1017, %v1082
        %v1088 = vadd.f32 %v1018, %v1070
        %v1089 = vadd.f32 %v1019, %v1084
        %s1090 = scalar_lea.vmem %s2, 64
        %v1091 = vld [vmem:[%s1090] sm:$0xf]
        %v1092 = vld [vmem:[%s1090 + $0x4] sm:$0xf]
        %1093 = vst [vmem:[#allocation1] ss:$2 sm:$0xff] %v538
        %v1094 = vld.sshfl [vmem:[#allocation1] sm:$0xff pattern:$0x75316420]
        %v1095 = vld.sshfl [vmem:[#allocation1 + $0x8] sm:$0xff pattern:$0x75316420]
        %1098 = vrot.lane.b32.xlu0 %v1094, 111
        %v1099 = vpop.permute.xlu0 %1098
        %1100 = vrot.lane.b32.xlu0 %v1095, 111
        %v1101 = vpop.permute.xlu0 %1100
        %vm1102 = vcmp.lt.s32.totalorder %v552, 111
        %v1103 = vsel %vm1102, %v1099, %v1101
        %v1104 = vsel %vm1102, %v1101, %v1099
        %v1106 = vperm.slane %v536, 0
        %v1107 = vperm.slane %v536, 1
        %v1110 = vmul.f32 %v1103, %v1106
        %v1111 = vmul.f32 %v1104, %v1107
        %v1112 = vpack.c.bf16 %v1110, %v1110
        %v1113 = vpack.c.bf16 %v1111, %v1111
        %v1116 = vunpack.c.l.b16 %v1091
        %v1117 = vunpack.c.l.b16 %v1092
        %v1118 = vpack.c.b16 %v1117, %v1116
        %v1120 = vsel %vm594, %v1118, 0
        %v1123 = vsel %vm598, %v1112, 0
        %v1126 = vsel %vm598, %v1113, 0
        %1128 = vmatpush.bf16.msra.mxu0 0
        %1129 = vmatpush.bf16.msra.mxu0 0
        %1130 = vmatpush.bf16.msra.mxu0 0
        %1131 = vmatpush.bf16.msra.mxu0 0
        %1132 = vmatpush.bf16.msra.mxu0 0
        %1133 = vmatpush.bf16.msra.mxu0 0
        %1134 = vmatpush.bf16.msra.mxu0 0
        %1135 = vmatpush.bf16.msra.mxu0 %v1123
        %1136 = vmatmul.bf16.gmra.mxu0 %v1120
        %v1137 = vpop.f32.mrf.mxu0
        %v1138 = vadd.f32 0.0, %v1137
        %v1139 = vpop.f32.mrf.mxu0
        %v1140 = vadd.f32 0.0, %v1139
        %1141 = vdwg.mxu0
        %1142 = vmatpush.bf16.msra.mxu0 0
        %1143 = vmatpush.bf16.msra.mxu0 0
        %1144 = vmatpush.bf16.msra.mxu0 0
        %1145 = vmatpush.bf16.msra.mxu0 0
        %1146 = vmatpush.bf16.msra.mxu0 0
        %1147 = vmatpush.bf16.msra.mxu0 0
        %1148 = vmatpush.bf16.msra.mxu0 0
        %1149 = vmatpush.bf16.msra.mxu0 %v1126
        %1150 = vmatmul.bf16.gmra.mxu0 %v1120
        %v1151 = vpop.f32.mrf.mxu0
        %v1152 = vadd.f32 0.0, %v1151
        %v1153 = vpop.f32.mrf.mxu0
        %v1154 = vadd.f32 0.0, %v1153
        %1155 = vdwg.mxu0
        %v1156 = vadd.f32 %v1086, %v1138
        %v1157 = vadd.f32 %v1087, %v1152
        %v1158 = vadd.f32 %v1088, %v1140
        %v1159 = vadd.f32 %v1089, %v1154
        %v1160 = vld [vmem:[%s3] sm:$0xff]
        %v1161 = vld [vmem:[%s3 + $0x8] sm:$0xff]
        %1163 = vset.pattern.permute.xlu0 0
        %1164 = vperm.xlu0 %1163, %v1160
        %v1165 = vpop.permute.xlu0 %1164
        %1168 = vset.pattern.permute.xlu0 0
        %1169 = vperm.xlu0 %1168, %v1161
        %v1170 = vpop.permute.xlu0 %1169
        %v1172 = vadd.f32 %v1156, %v1165
        %v1173 = vadd.f32 %v1157, %v1165
        %v1174 = vadd.f32 %v1158, %v1170
        %v1175 = vadd.f32 %v1159, %v1170
        %v1176 = vmax.f32 %v1172, 0.0
        %v1177 = vmax.f32 %v1173, 0.0
        %v1178 = vmax.f32 %v1174, 0.0
        %v1179 = vmax.f32 %v1175, 0.0
        %v1180 = vld [vmem:[%s4] sm:$0xf]
        %v1181 = vld [vmem:[%s4 + $0x4] sm:$0xf]
        %v1182 = vld [vmem:[%s4 + $0x8] sm:$0xf]
        %v1183 = vpack.c.bf16 %v1178, %v1176
        %v1184 = vpack.c.bf16 %v1179, %v1177
        %v1185 = vld [vmem:[%s5] sm:$0xff]
        %v1186 = vld [vmem:[%s5 + $0x8] sm:$0xff]
        %v1187 = vld [vmem:[%s5 + $0x10] sm:$0xff]
        %1189 = vset.pattern.permute.xlu0 0
        %1190 = vperm.xlu0 %1189, %v1185
        %v1191 = vpop.permute.xlu0 %1190
        %1194 = vset.pattern.permute.xlu0 0
        %1195 = vperm.xlu0 %1194, %v1186
        %v1196 = vpop.permute.xlu0 %1195
        %1199 = vset.pattern.permute.xlu0 0
        %1200 = vperm.xlu0 %1199, %v1187
        %v1201 = vpop.permute.xlu0 %1200
        %v1206 = vunpack.c.l.b16 %v1180
        %v1207 = vunpack.c.l.b16 %v1181
        %v1208 = vunpack.c.l.b16 %v1182
        %v1209 = vpack.c.b16 %v1207, %v1206
        %v1210 = vpack.c.b16 %v1208, %v1208
        %vm1211 = vcmask 130048
        %v1213 = vsel %vm1211, %v1209, 0
        %v1216 = vsel %vm1211, %v1210, 0
        %1218 = vmatpush.bf16.msra.mxu0 0
        %1219 = vmatpush.bf16.msra.mxu0 0
        %1220 = vmatpush.bf16.msra.mxu0 0
        %1221 = vmatpush.bf16.msra.mxu0 0
        %1222 = vmatpush.bf16.msra.mxu0 0
        %1223 = vmatpush.bf16.msra.mxu0 0
        %1224 = vmatpush.bf16.msra.mxu0 0
        %1225 = vmatpush.bf16.msra.mxu0 %v1183
        %1226 = vmatmul.bf16.gmra.mxu0 %v1213
        %v1227 = vpop.f32.mrf.mxu0
        %v1228 = vadd.f32 %v1191, %v1227
        %v1229 = vpop.f32.mrf.mxu0
        %v1230 = vadd.f32 %v1196, %v1229
        %1231 = vmatmul.bf16.gmra.mxu0 %v1216
        %v1232 = vpop.f32.mrf.mxu0
        %v1233 = vadd.f32 %v1201, %v1232
        %v1234 = vpop.f32.mrf.mxu0
        %1235 = vdwg.mxu0
        %1236 = vmatpush.bf16.msra.mxu0 0
        %1237 = vmatpush.bf16.msra.mxu0 0
        %1238 = vmatpush.bf16.msra.mxu0 0
        %1239 = vmatpush.bf16.msra.mxu0 0
        %1240 = vmatpush.bf16.msra.mxu0 0
        %1241 = vmatpush.bf16.msra.mxu0 0
        %1242 = vmatpush.bf16.msra.mxu0 0
        %1243 = vmatpush.bf16.msra.mxu0 %v1184
        %1244 = vmatmul.bf16.gmra.mxu0 %v1213
        %v1245 = vpop.f32.mrf.mxu0
        %v1246 = vadd.f32 %v1191, %v1245
        %v1247 = vpop.f32.mrf.mxu0
        %v1248 = vadd.f32 %v1196, %v1247
        %1249 = vmatmul.bf16.gmra.mxu0 %v1216
        %v1250 = vpop.f32.mrf.mxu0
        %v1251 = vadd.f32 %v1201, %v1250
        %v1252 = vpop.f32.mrf.mxu0
        %1253 = vdwg.mxu0
        %v1254 = vmax.f32 %v1228, 0.0
        %v1255 = vmax.f32 %v1246, 0.0
        %v1256 = vmax.f32 %v1230, 0.0
        %v1257 = vmax.f32 %v1248, 0.0
        %v1258 = vmax.f32 %v1233, 0.0
        %v1259 = vmax.f32 %v1251, 0.0
        %v1260 = vld [vmem:[%s6] sm:$0xf]
        %1261 = vrot.lane.b32.xlu0 %v1256, 17
        %v1262 = vpop.permute.xlu0 %1261
        %1263 = vrot.lane.b32.xlu0 %v1257, 17
        %v1264 = vpop.permute.xlu0 %1263
        %v1265 = vsel %vm553, %v1262, %v1264
        %v1266 = vsel %vm553, %v1264, %v1262
        %v1267 = vmul.f32 %v1266, %v557
        %v1268 = vmul.f32 %v1265, %v558
        %v1269 = vpack.c.bf16 %v1267, %v1267
        %v1270 = vpack.c.bf16 %v1268, %v1268
        %s1271 = scalar_lea.vmem %s6, 4
        %v1272 = vld [vmem:[%s1271] sm:$0xf]
        %1273 = vrot.lane.b32.xlu0 %v1256, 16
        %v1274 = vpop.permute.xlu0 %1273
        %1275 = vrot.lane.b32.xlu0 %v1257, 16
        %v1276 = vpop.permute.xlu0 %1275
        %v1277 = vsel %vm577, %v1274, %v1276
        %v1278 = vsel %vm577, %v1276, %v1274
        %v1279 = vmul.f32 %v1278, %v581
        %v1280 = vmul.f32 %v1277, %v582
        %v1281 = vpack.c.bf16 %v1279, %v1279
        %v1282 = vpack.c.bf16 %v1280, %v1280
        %vm1283 = vcmask 64512
        %v1285 = vsel %vm1283, %v1272, 0
        %v1288 = vsel %vm822, %v1281, 0
        %v1291 = vsel %vm822, %v1282, 0
        %1293 = vmatpush.bf16.msra.mxu0 0
        %1294 = vmatpush.bf16.msra.mxu0 0
        %1295 = vmatpush.bf16.msra.mxu0 0
        %1296 = vmatpush.bf16.msra.mxu0 0
        %1297 = vmatpush.bf16.msra.mxu0 0
        %1298 = vmatpush.bf16.msra.mxu0 0
        %1299 = vmatpush.bf16.msra.mxu0 0
        %1300 = vmatpush.bf16.msra.mxu0 %v1288
        %1301 = vmatmul.bf16.gmra.mxu0 %v1285
        %v1302 = vpop.f32.mrf.mxu0
        %v1303 = vadd.f32 0.0, %v1302
        %v1304 = vpop.f32.mrf.mxu0
        %1305 = vdwg.mxu0
        %1306 = vmatpush.bf16.msra.mxu0 0
        %1307 = vmatpush.bf16.msra.mxu0 0
        %1308 = vmatpush.bf16.msra.mxu0 0
        %1309 = vmatpush.bf16.msra.mxu0 0
        %1310 = vmatpush.bf16.msra.mxu0 0
        %1311 = vmatpush.bf16.msra.mxu0 0
        %1312 = vmatpush.bf16.msra.mxu0 0
        %1313 = vmatpush.bf16.msra.mxu0 %v1291
        %1314 = vmatmul.bf16.gmra.mxu0 %v1285
        %v1315 = vpop.f32.mrf.mxu0
        %v1316 = vadd.f32 0.0, %v1315
        %v1317 = vpop.f32.mrf.mxu0
        %1318 = vdwg.mxu0
        %v1320 = vsel %vm1283, %v1260, 0
        %v1323 = vsel %vm822, %v1269, 0
        %v1326 = vsel %vm822, %v1270, 0
        %1328 = vmatpush.bf16.msra.mxu0 0
        %1329 = vmatpush.bf16.msra.mxu0 0
        %1330 = vmatpush.bf16.msra.mxu0 0
        %1331 = vmatpush.bf16.msra.mxu0 0
        %1332 = vmatpush.bf16.msra.mxu0 0
        %1333 = vmatpush.bf16.msra.mxu0 0
        %1334 = vmatpush.bf16.msra.mxu0 0
        %1335 = vmatpush.bf16.msra.mxu0 %v1323
        %1336 = vmatmul.bf16.gmra.mxu0 %v1320
        %v1337 = vpop.f32.mrf.mxu0
        %v1338 = vadd.f32 %v1303, %v1337
        %v1339 = vpop.f32.mrf.mxu0
        %1340 = vdwg.mxu0
        %1341 = vmatpush.bf16.msra.mxu0 0
        %1342 = vmatpush.bf16.msra.mxu0 0
        %1343 = vmatpush.bf16.msra.mxu0 0
        %1344 = vmatpush.bf16.msra.mxu0 0
        %1345 = vmatpush.bf16.msra.mxu0 0
        %1346 = vmatpush.bf16.msra.mxu0 0
        %1347 = vmatpush.bf16.msra.mxu0 0
        %1348 = vmatpush.bf16.msra.mxu0 %v1326
        %1349 = vmatmul.bf16.gmra.mxu0 %v1320
        %v1350 = vpop.f32.mrf.mxu0
        %v1351 = vadd.f32 %v1316, %v1350
        %v1352 = vpop.f32.mrf.mxu0
        %1353 = vdwg.mxu0
        %s1354 = scalar_lea.vmem %s6, 8
        %v1355 = vld [vmem:[%s1354] sm:$0xf]
        %1356 = vrot.lane.b32.xlu0 %v1256, 15
        %v1357 = vpop.permute.xlu0 %1356
        %1358 = vrot.lane.b32.xlu0 %v1257, 15
        %v1359 = vpop.permute.xlu0 %1358
        %v1360 = vsel %vm687, %v1357, %v1359
        %v1361 = vsel %vm687, %v1359, %v1357
        %v1362 = vmul.f32 %v1361, %v691
        %v1363 = vmul.f32 %v1360, %v692
        %v1364 = vpack.c.bf16 %v1362, %v1362
        %v1365 = vpack.c.bf16 %v1363, %v1363
        %v1367 = vsel %vm1283, %v1355, 0
        %v1370 = vsel %vm822, %v1364, 0
        %v1373 = vsel %vm822, %v1365, 0
        %1375 = vmatpush.bf16.msra.mxu0 0
        %1376 = vmatpush.bf16.msra.mxu0 0
        %1377 = vmatpush.bf16.msra.mxu0 0
        %1378 = vmatpush.bf16.msra.mxu0 0
        %1379 = vmatpush.bf16.msra.mxu0 0
        %1380 = vmatpush.bf16.msra.mxu0 0
        %1381 = vmatpush.bf16.msra.mxu0 0
        %1382 = vmatpush.bf16.msra.mxu0 %v1370
        %1383 = vmatmul.bf16.gmra.mxu0 %v1367
        %v1384 = vpop.f32.mrf.mxu0
        %v1385 = vadd.f32 0.0, %v1384
        %v1386 = vpop.f32.mrf.mxu0
        %1387 = vdwg.mxu0
        %1388 = vmatpush.bf16.msra.mxu0 0
        %1389 = vmatpush.bf16.msra.mxu0 0
        %1390 = vmatpush.bf16.msra.mxu0 0
        %1391 = vmatpush.bf16.msra.mxu0 0
        %1392 = vmatpush.bf16.msra.mxu0 0
        %1393 = vmatpush.bf16.msra.mxu0 0
        %1394 = vmatpush.bf16.msra.mxu0 0
        %1395 = vmatpush.bf16.msra.mxu0 %v1373
        %1396 = vmatmul.bf16.gmra.mxu0 %v1367
        %v1397 = vpop.f32.mrf.mxu0
        %v1398 = vadd.f32 0.0, %v1397
        %v1399 = vpop.f32.mrf.mxu0
        %1400 = vdwg.mxu0
        %v1401 = vadd.f32 %v1338, %v1385
        %v1402 = vadd.f32 %v1351, %v1398
        %s1403 = scalar_lea.vmem %s6, 12
        %v1404 = vld [vmem:[%s1403] sm:$0xf]
        %1405 = vrot.lane.b32.xlu0 %v1256, 1
        %v1406 = vpop.permute.xlu0 %1405
        %1407 = vrot.lane.b32.xlu0 %v1257, 1
        %v1408 = vpop.permute.xlu0 %1407
        %v1409 = vsel %vm757, %v1406, %v1408
        %v1410 = vsel %vm757, %v1408, %v1406
        %v1411 = vmul.f32 %v1410, %v761
        %v1412 = vmul.f32 %v1409, %v762
        %v1413 = vpack.c.bf16 %v1411, %v1411
        %v1414 = vpack.c.bf16 %v1412, %v1412
        %v1416 = vsel %vm1283, %v1404, 0
        %v1419 = vsel %vm822, %v1413, 0
        %v1422 = vsel %vm822, %v1414, 0
        %1424 = vmatpush.bf16.msra.mxu0 0
        %1425 = vmatpush.bf16.msra.mxu0 0
        %1426 = vmatpush.bf16.msra.mxu0 0
        %1427 = vmatpush.bf16.msra.mxu0 0
        %1428 = vmatpush.bf16.msra.mxu0 0
        %1429 = vmatpush.bf16.msra.mxu0 0
        %1430 = vmatpush.bf16.msra.mxu0 0
        %1431 = vmatpush.bf16.msra.mxu0 %v1419
        %1432 = vmatmul.bf16.gmra.mxu0 %v1416
        %v1433 = vpop.f32.mrf.mxu0
        %v1434 = vadd.f32 0.0, %v1433
        %v1435 = vpop.f32.mrf.mxu0
        %1436 = vdwg.mxu0
        %1437 = vmatpush.bf16.msra.mxu0 0
        %1438 = vmatpush.bf16.msra.mxu0 0
        %1439 = vmatpush.bf16.msra.mxu0 0
        %1440 = vmatpush.bf16.msra.mxu0 0
        %1441 = vmatpush.bf16.msra.mxu0 0
        %1442 = vmatpush.bf16.msra.mxu0 0
        %1443 = vmatpush.bf16.msra.mxu0 0
        %1444 = vmatpush.bf16.msra.mxu0 %v1422
        %1445 = vmatmul.bf16.gmra.mxu0 %v1416
        %v1446 = vpop.f32.mrf.mxu0
        %v1447 = vadd.f32 0.0, %v1446
        %v1448 = vpop.f32.mrf.mxu0
        %1449 = vdwg.mxu0
        %v1450 = vadd.f32 %v1401, %v1434
        %v1451 = vadd.f32 %v1402, %v1447
        %s1452 = scalar_lea.vmem %s6, 16
        %v1453 = vld [vmem:[%s1452] sm:$0xf]
        %v1456 = vmul.f32 %v1256, %v819
        %v1457 = vmul.f32 %v1257, %v820
        %v1458 = vpack.c.bf16 %v1456, %v1456
        %v1459 = vpack.c.bf16 %v1457, %v1457
        %v1461 = vsel %vm1283, %v1453, 0
        %v1464 = vsel %vm822, %v1458, 0
        %v1467 = vsel %vm822, %v1459, 0
        %1469 = vmatpush.bf16.msra.mxu0 0
        %1470 = vmatpush.bf16.msra.mxu0 0
        %1471 = vmatpush.bf16.msra.mxu0 0
        %1472 = vmatpush.bf16.msra.mxu0 0
        %1473 = vmatpush.bf16.msra.mxu0 0
        %1474 = vmatpush.bf16.msra.mxu0 0
        %1475 = vmatpush.bf16.msra.mxu0 0
        %1476 = vmatpush.bf16.msra.mxu0 %v1464
        %1477 = vmatmul.bf16.gmra.mxu0 %v1461
        %v1478 = vpop.f32.mrf.mxu0
        %v1479 = vadd.f32 0.0, %v1478
        %v1480 = vpop.f32.mrf.mxu0
        %1481 = vdwg.mxu0
        %1482 = vmatpush.bf16.msra.mxu0 0
        %1483 = vmatpush.bf16.msra.mxu0 0
        %1484 = vmatpush.bf16.msra.mxu0 0
        %1485 = vmatpush.bf16.msra.mxu0 0
        %1486 = vmatpush.bf16.msra.mxu0 0
        %1487 = vmatpush.bf16.msra.mxu0 0
        %1488 = vmatpush.bf16.msra.mxu0 0
        %1489 = vmatpush.bf16.msra.mxu0 %v1467
        %1490 = vmatmul.bf16.gmra.mxu0 %v1461
        %v1491 = vpop.f32.mrf.mxu0
        %v1492 = vadd.f32 0.0, %v1491
        %v1493 = vpop.f32.mrf.mxu0
        %1494 = vdwg.mxu0
        %v1495 = vadd.f32 %v1450, %v1479
        %v1496 = vadd.f32 %v1451, %v1492
        %s1497 = scalar_lea.vmem %s6, 20
        %v1498 = vld [vmem:[%s1497] sm:$0xf]
        %1499 = vrot.lane.b32.xlu0 %v1256, 127
        %v1500 = vpop.permute.xlu0 %1499
        %1501 = vrot.lane.b32.xlu0 %v1257, 127
        %v1502 = vpop.permute.xlu0 %1501
        %v1503 = vsel %vm892, %v1500, %v1502
        %v1504 = vsel %vm892, %v1502, %v1500
        %v1505 = vmul.f32 %v1503, %v896
        %v1506 = vmul.f32 %v1504, %v897
        %v1507 = vpack.c.bf16 %v1505, %v1505
        %v1508 = vpack.c.bf16 %v1506, %v1506
        %v1510 = vsel %vm1283, %v1498, 0
        %v1513 = vsel %vm822, %v1507, 0
        %v1516 = vsel %vm822, %v1508, 0
        %1518 = vmatpush.bf16.msra.mxu0 0
        %1519 = vmatpush.bf16.msra.mxu0 0
        %1520 = vmatpush.bf16.msra.mxu0 0
        %1521 = vmatpush.bf16.msra.mxu0 0
        %1522 = vmatpush.bf16.msra.mxu0 0
        %1523 = vmatpush.bf16.msra.mxu0 0
        %1524 = vmatpush.bf16.msra.mxu0 0
        %1525 = vmatpush.bf16.msra.mxu0 %v1513
        %1526 = vmatmul.bf16.gmra.mxu0 %v1510
        %v1527 = vpop.f32.mrf.mxu0
        %v1528 = vadd.f32 0.0, %v1527
        %v1529 = vpop.f32.mrf.mxu0
        %1530 = vdwg.mxu0
        %1531 = vmatpush.bf16.msra.mxu0 0
        %1532 = vmatpush.bf16.msra.mxu0 0
        %1533 = vmatpush.bf16.msra.mxu0 0
        %1534 = vmatpush.bf16.msra.mxu0 0
        %1535 = vmatpush.bf16.msra.mxu0 0
        %1536 = vmatpush.bf16.msra.mxu0 0
        %1537 = vmatpush.bf16.msra.mxu0 0
        %1538 = vmatpush.bf16.msra.mxu0 %v1516
        %1539 = vmatmul.bf16.gmra.mxu0 %v1510
        %v1540 = vpop.f32.mrf.mxu0
        %v1541 = vadd.f32 0.0, %v1540
        %v1542 = vpop.f32.mrf.mxu0
        %1543 = vdwg.mxu0
        %v1544 = vadd.f32 %v1495, %v1528
        %v1545 = vadd.f32 %v1496, %v1541
        %s1546 = scalar_lea.vmem %s6, 24
        %v1547 = vld [vmem:[%s1546] sm:$0xf]
        %1548 = vrot.lane.b32.xlu0 %v1256, 113
        %v1549 = vpop.permute.xlu0 %1548
        %1550 = vrot.lane.b32.xlu0 %v1257, 113
        %v1551 = vpop.permute.xlu0 %1550
        %v1552 = vsel %vm962, %v1549, %v1551
        %v1553 = vsel %vm962, %v1551, %v1549
        %v1554 = vmul.f32 %v1552, %v966
        %v1555 = vmul.f32 %v1553, %v967
        %v1556 = vpack.c.bf16 %v1554, %v1554
        %v1557 = vpack.c.bf16 %v1555, %v1555
        %v1559 = vsel %vm1283, %v1547, 0
        %v1562 = vsel %vm822, %v1556, 0
        %v1565 = vsel %vm822, %v1557, 0
        %1567 = vmatpush.bf16.msra.mxu0 0
        %1568 = vmatpush.bf16.msra.mxu0 0
        %1569 = vmatpush.bf16.msra.mxu0 0
        %1570 = vmatpush.bf16.msra.mxu0 0
        %1571 = vmatpush.bf16.msra.mxu0 0
        %1572 = vmatpush.bf16.msra.mxu0 0
        %1573 = vmatpush.bf16.msra.mxu0 0
        %1574 = vmatpush.bf16.msra.mxu0 %v1562
        %1575 = vmatmul.bf16.gmra.mxu0 %v1559
        %v1576 = vpop.f32.mrf.mxu0
        %v1577 = vadd.f32 0.0, %v1576
        %v1578 = vpop.f32.mrf.mxu0
        %1579 = vdwg.mxu0
        %1580 = vmatpush.bf16.msra.mxu0 0
        %1581 = vmatpush.bf16.msra.mxu0 0
        %1582 = vmatpush.bf16.msra.mxu0 0
        %1583 = vmatpush.bf16.msra.mxu0 0
        %1584 = vmatpush.bf16.msra.mxu0 0
        %1585 = vmatpush.bf16.msra.mxu0 0
        %1586 = vmatpush.bf16.msra.mxu0 0
        %1587 = vmatpush.bf16.msra.mxu0 %v1565
        %1588 = vmatmul.bf16.gmra.mxu0 %v1559
        %v1589 = vpop.f32.mrf.mxu0
        %v1590 = vadd.f32 0.0, %v1589
        %v1591 = vpop.f32.mrf.mxu0
        %1592 = vdwg.mxu0
        %v1593 = vadd.f32 %v1544, %v1577
        %v1594 = vadd.f32 %v1545, %v1590
        %s1595 = scalar_lea.vmem %s6, 28
        %v1596 = vld [vmem:[%s1595] sm:$0xf]
        %1597 = vrot.lane.b32.xlu0 %v1256, 112
        %v1598 = vpop.permute.xlu0 %1597
        %1599 = vrot.lane.b32.xlu0 %v1257, 112
        %v1600 = vpop.permute.xlu0 %1599
        %v1601 = vsel %vm1032, %v1598, %v1600
        %v1602 = vsel %vm1032, %v1600, %v1598
        %v1603 = vmul.f32 %v1601, %v1036
        %v1604 = vmul.f32 %v1602, %v1037
        %v1605 = vpack.c.bf16 %v1603, %v1603
        %v1606 = vpack.c.bf16 %v1604, %v1604
        %v1608 = vsel %vm1283, %v1596, 0
        %v1611 = vsel %vm822, %v1605, 0
        %v1614 = vsel %vm822, %v1606, 0
        %1616 = vmatpush.bf16.msra.mxu0 0
        %1617 = vmatpush.bf16.msra.mxu0 0
        %1618 = vmatpush.bf16.msra.mxu0 0
        %1619 = vmatpush.bf16.msra.mxu0 0
        %1620 = vmatpush.bf16.msra.mxu0 0
        %1621 = vmatpush.bf16.msra.mxu0 0
        %1622 = vmatpush.bf16.msra.mxu0 0
        %1623 = vmatpush.bf16.msra.mxu0 %v1611
        %1624 = vmatmul.bf16.gmra.mxu0 %v1608
        %v1625 = vpop.f32.mrf.mxu0
        %v1626 = vadd.f32 0.0, %v1625
        %v1627 = vpop.f32.mrf.mxu0
        %1628 = vdwg.mxu0
        %1629 = vmatpush.bf16.msra.mxu0 0
        %1630 = vmatpush.bf16.msra.mxu0 0
        %1631 = vmatpush.bf16.msra.mxu0 0
        %1632 = vmatpush.bf16.msra.mxu0 0
        %1633 = vmatpush.bf16.msra.mxu0 0
        %1634 = vmatpush.bf16.msra.mxu0 0
        %1635 = vmatpush.bf16.msra.mxu0 0
        %1636 = vmatpush.bf16.msra.mxu0 %v1614
        %1637 = vmatmul.bf16.gmra.mxu0 %v1608
        %v1638 = vpop.f32.mrf.mxu0
        %v1639 = vadd.f32 0.0, %v1638
        %v1640 = vpop.f32.mrf.mxu0
        %1641 = vdwg.mxu0
        %v1642 = vadd.f32 %v1593, %v1626
        %v1643 = vadd.f32 %v1594, %v1639
        %s1644 = scalar_lea.vmem %s6, 32
        %v1645 = vld [vmem:[%s1644] sm:$0xf]
        %1646 = vrot.lane.b32.xlu0 %v1256, 111
        %v1647 = vpop.permute.xlu0 %1646
        %1648 = vrot.lane.b32.xlu0 %v1257, 111
        %v1649 = vpop.permute.xlu0 %1648
        %v1650 = vsel %vm1102, %v1647, %v1649
        %v1651 = vsel %vm1102, %v1649, %v1647
        %v1652 = vmul.f32 %v1650, %v1106
        %v1653 = vmul.f32 %v1651, %v1107
        %v1654 = vpack.c.bf16 %v1652, %v1652
        %v1655 = vpack.c.bf16 %v1653, %v1653
        %v1657 = vsel %vm1283, %v1645, 0
        %v1660 = vsel %vm822, %v1654, 0
        %v1663 = vsel %vm822, %v1655, 0
        %1665 = vmatpush.bf16.msra.mxu0 0
        %1666 = vmatpush.bf16.msra.mxu0 0
        %1667 = vmatpush.bf16.msra.mxu0 0
        %1668 = vmatpush.bf16.msra.mxu0 0
        %1669 = vmatpush.bf16.msra.mxu0 0
        %1670 = vmatpush.bf16.msra.mxu0 0
        %1671 = vmatpush.bf16.msra.mxu0 0
        %1672 = vmatpush.bf16.msra.mxu0 %v1660
        %1673 = vmatmul.bf16.gmra.mxu0 %v1657
        %v1674 = vpop.f32.mrf.mxu0
        %v1675 = vadd.f32 0.0, %v1674
        %v1676 = vpop.f32.mrf.mxu0
        %1677 = vdwg.mxu0
        %1678 = vmatpush.bf16.msra.mxu0 0
        %1679 = vmatpush.bf16.msra.mxu0 0
        %1680 = vmatpush.bf16.msra.mxu0 0
        %1681 = vmatpush.bf16.msra.mxu0 0
        %1682 = vmatpush.bf16.msra.mxu0 0
        %1683 = vmatpush.bf16.msra.mxu0 0
        %1684 = vmatpush.bf16.msra.mxu0 0
        %1685 = vmatpush.bf16.msra.mxu0 %v1663
        %1686 = vmatmul.bf16.gmra.mxu0 %v1657
        %v1687 = vpop.f32.mrf.mxu0
        %v1688 = vadd.f32 0.0, %v1687
        %v1689 = vpop.f32.mrf.mxu0
        %1690 = vdwg.mxu0
        %v1691 = vadd.f32 %v1642, %v1675
        %v1692 = vadd.f32 %v1643, %v1688
        %v1693 = vld [vmem:[%s7] sm:$0xff]
        %1695 = vset.pattern.permute.xlu0 0
        %1696 = vperm.xlu0 %1695, %v1693
        %v1697 = vpop.permute.xlu0 %1696
        %v1699 = vadd.f32 %v1691, %v1697
        %v1700 = vadd.f32 %v1692, %v1697
        %v1701 = vmax.f32 %v1699, 0.0
        %v1702 = vmax.f32 %v1700, 0.0
        %v1703 = vld [vmem:[%s8] sm:$0xf]
        %1704 = vrot.lane.b32.xlu0 %v1258, 17
        %v1705 = vpop.permute.xlu0 %1704
        %1706 = vrot.lane.b32.xlu0 %v1259, 17
        %v1707 = vpop.permute.xlu0 %1706
        %v1708 = vsel %vm553, %v1705, %v1707
        %v1709 = vsel %vm553, %v1707, %v1705
        %v1710 = vmul.f32 %v1709, %v557
        %v1711 = vmul.f32 %v1708, %v558
        %v1712 = vpack.c.bf16 %v1710, %v1710
        %v1713 = vpack.c.bf16 %v1711, %v1711
        %s1714 = scalar_lea.vmem %s8, 4
        %v1715 = vld [vmem:[%s1714] sm:$0xf]
        %1716 = vrot.lane.b32.xlu0 %v1258, 16
        %v1717 = vpop.permute.xlu0 %1716
        %1718 = vrot.lane.b32.xlu0 %v1259, 16
        %v1719 = vpop.permute.xlu0 %1718
        %v1720 = vsel %vm577, %v1717, %v1719
        %v1721 = vsel %vm577, %v1719, %v1717
        %v1722 = vmul.f32 %v1721, %v581
        %v1723 = vmul.f32 %v1720, %v582
        %v1724 = vpack.c.bf16 %v1722, %v1722
        %v1725 = vpack.c.bf16 %v1723, %v1723
        %v1727 = vsel %vm1283, %v1715, 0
        %v1730 = vsel %vm822, %v1724, 0
        %v1733 = vsel %vm822, %v1725, 0
        %1735 = vmatpush.bf16.msra.mxu0 0
        %1736 = vmatpush.bf16.msra.mxu0 0
        %1737 = vmatpush.bf16.msra.mxu0 0
        %1738 = vmatpush.bf16.msra.mxu0 0
        %1739 = vmatpush.bf16.msra.mxu0 0
        %1740 = vmatpush.bf16.msra.mxu0 0
        %1741 = vmatpush.bf16.msra.mxu0 0
        %1742 = vmatpush.bf16.msra.mxu0 %v1730
        %1743 = vmatmul.bf16.gmra.mxu0 %v1727
        %v1744 = vpop.f32.mrf.mxu0
        %v1745 = vadd.f32 0.0, %v1744
        %v1746 = vpop.f32.mrf.mxu0
        %1747 = vdwg.mxu0
        %1748 = vmatpush.bf16.msra.mxu0 0
        %1749 = vmatpush.bf16.msra.mxu0 0
        %1750 = vmatpush.bf16.msra.mxu0 0
        %1751 = vmatpush.bf16.msra.mxu0 0
        %1752 = vmatpush.bf16.msra.mxu0 0
        %1753 = vmatpush.bf16.msra.mxu0 0
        %1754 = vmatpush.bf16.msra.mxu0 0
        %1755 = vmatpush.bf16.msra.mxu0 %v1733
        %1756 = vmatmul.bf16.gmra.mxu0 %v1727
        %v1757 = vpop.f32.mrf.mxu0
        %v1758 = vadd.f32 0.0, %v1757
        %v1759 = vpop.f32.mrf.mxu0
        %1760 = vdwg.mxu0
        %v1762 = vsel %vm1283, %v1703, 0
        %v1765 = vsel %vm822, %v1712, 0
        %v1768 = vsel %vm822, %v1713, 0
        %1770 = vmatpush.bf16.msra.mxu0 0
        %1771 = vmatpush.bf16.msra.mxu0 0
        %1772 = vmatpush.bf16.msra.mxu0 0
        %1773 = vmatpush.bf16.msra.mxu0 0
        %1774 = vmatpush.bf16.msra.mxu0 0
        %1775 = vmatpush.bf16.msra.mxu0 0
        %1776 = vmatpush.bf16.msra.mxu0 0
        %1777 = vmatpush.bf16.msra.mxu0 %v1765
        %1778 = vmatmul.bf16.gmra.mxu0 %v1762
        %v1779 = vpop.f32.mrf.mxu0
        %v1780 = vadd.f32 %v1745, %v1779
        %v1781 = vpop.f32.mrf.mxu0
        %1782 = vdwg.mxu0
        %1783 = vmatpush.bf16.msra.mxu0 0
        %1784 = vmatpush.bf16.msra.mxu0 0
        %1785 = vmatpush.bf16.msra.mxu0 0
        %1786 = vmatpush.bf16.msra.mxu0 0
        %1787 = vmatpush.bf16.msra.mxu0 0
        %1788 = vmatpush.bf16.msra.mxu0 0
        %1789 = vmatpush.bf16.msra.mxu0 0
        %1790 = vmatpush.bf16.msra.mxu0 %v1768
        %1791 = vmatmul.bf16.gmra.mxu0 %v1762
        %v1792 = vpop.f32.mrf.mxu0
        %v1793 = vadd.f32 %v1758, %v1792
        %v1794 = vpop.f32.mrf.mxu0
        %1795 = vdwg.mxu0
        %s1796 = scalar_lea.vmem %s8, 8
        %v1797 = vld [vmem:[%s1796] sm:$0xf]
        %1798 = vrot.lane.b32.xlu0 %v1258, 15
        %v1799 = vpop.permute.xlu0 %1798
        %1800 = vrot.lane.b32.xlu0 %v1259, 15
        %v1801 = vpop.permute.xlu0 %1800
        %v1802 = vsel %vm687, %v1799, %v1801
        %v1803 = vsel %vm687, %v1801, %v1799
        %v1804 = vmul.f32 %v1803, %v691
        %v1805 = vmul.f32 %v1802, %v692
        %v1806 = vpack.c.bf16 %v1804, %v1804
        %v1807 = vpack.c.bf16 %v1805, %v1805
        %v1809 = vsel %vm1283, %v1797, 0
        %v1812 = vsel %vm822, %v1806, 0
        %v1815 = vsel %vm822, %v1807, 0
        %1817 = vmatpush.bf16.msra.mxu0 0
        %1818 = vmatpush.bf16.msra.mxu0 0
        %1819 = vmatpush.bf16.msra.mxu0 0
        %1820 = vmatpush.bf16.msra.mxu0 0
        %1821 = vmatpush.bf16.msra.mxu0 0
        %1822 = vmatpush.bf16.msra.mxu0 0
        %1823 = vmatpush.bf16.msra.mxu0 0
        %1824 = vmatpush.bf16.msra.mxu0 %v1812
        %1825 = vmatmul.bf16.gmra.mxu0 %v1809
        %v1826 = vpop.f32.mrf.mxu0
        %v1827 = vadd.f32 0.0, %v1826
        %v1828 = vpop.f32.mrf.mxu0
        %1829 = vdwg.mxu0
        %1830 = vmatpush.bf16.msra.mxu0 0
        %1831 = vmatpush.bf16.msra.mxu0 0
        %1832 = vmatpush.bf16.msra.mxu0 0
        %1833 = vmatpush.bf16.msra.mxu0 0
        %1834 = vmatpush.bf16.msra.mxu0 0
        %1835 = vmatpush.bf16.msra.mxu0 0
        %1836 = vmatpush.bf16.msra.mxu0 0
        %1837 = vmatpush.bf16.msra.mxu0 %v1815
        %1838 = vmatmul.bf16.gmra.mxu0 %v1809
        %v1839 = vpop.f32.mrf.mxu0
        %v1840 = vadd.f32 0.0, %v1839
        %v1841 = vpop.f32.mrf.mxu0
        %1842 = vdwg.mxu0
        %v1843 = vadd.f32 %v1780, %v1827
        %v1844 = vadd.f32 %v1793, %v1840
        %s1845 = scalar_lea.vmem %s8, 12
        %v1846 = vld [vmem:[%s1845] sm:$0xf]
        %1847 = vrot.lane.b32.xlu0 %v1258, 1
        %v1848 = vpop.permute.xlu0 %1847
        %1849 = vrot.lane.b32.xlu0 %v1259, 1
        %v1850 = vpop.permute.xlu0 %1849
        %v1851 = vsel %vm757, %v1848, %v1850
        %v1852 = vsel %vm757, %v1850, %v1848
        %v1853 = vmul.f32 %v1852, %v761
        %v1854 = vmul.f32 %v1851, %v762
        %v1855 = vpack.c.bf16 %v1853, %v1853
        %v1856 = vpack.c.bf16 %v1854, %v1854
        %v1858 = vsel %vm1283, %v1846, 0
        %v1861 = vsel %vm822, %v1855, 0
        %v1864 = vsel %vm822, %v1856, 0
        %1866 = vmatpush.bf16.msra.mxu0 0
        %1867 = vmatpush.bf16.msra.mxu0 0
        %1868 = vmatpush.bf16.msra.mxu0 0
        %1869 = vmatpush.bf16.msra.mxu0 0
        %1870 = vmatpush.bf16.msra.mxu0 0
        %1871 = vmatpush.bf16.msra.mxu0 0
        %1872 = vmatpush.bf16.msra.mxu0 0
        %1873 = vmatpush.bf16.msra.mxu0 %v1861
        %1874 = vmatmul.bf16.gmra.mxu0 %v1858
        %v1875 = vpop.f32.mrf.mxu0
        %v1876 = vadd.f32 0.0, %v1875
        %v1877 = vpop.f32.mrf.mxu0
        %1878 = vdwg.mxu0
        %1879 = vmatpush.bf16.msra.mxu0 0
        %1880 = vmatpush.bf16.msra.mxu0 0
        %1881 = vmatpush.bf16.msra.mxu0 0
        %1882 = vmatpush.bf16.msra.mxu0 0
        %1883 = vmatpush.bf16.msra.mxu0 0
        %1884 = vmatpush.bf16.msra.mxu0 0
        %1885 = vmatpush.bf16.msra.mxu0 0
        %1886 = vmatpush.bf16.msra.mxu0 %v1864
        %1887 = vmatmul.bf16.gmra.mxu0 %v1858
        %v1888 = vpop.f32.mrf.mxu0
        %v1889 = vadd.f32 0.0, %v1888
        %v1890 = vpop.f32.mrf.mxu0
        %1891 = vdwg.mxu0
        %v1892 = vadd.f32 %v1843, %v1876
        %v1893 = vadd.f32 %v1844, %v1889
        %s1894 = scalar_lea.vmem %s8, 16
        %v1895 = vld [vmem:[%s1894] sm:$0xf]
        %v1896 = vmul.f32 %v1258, %v819
        %v1897 = vmul.f32 %v1259, %v820
        %v1898 = vpack.c.bf16 %v1896, %v1896
        %v1899 = vpack.c.bf16 %v1897, %v1897
        %v1901 = vsel %vm1283, %v1895, 0
        %v1904 = vsel %vm822, %v1898, 0
        %v1907 = vsel %vm822, %v1899, 0
        %1909 = vmatpush.bf16.msra.mxu0 0
        %1910 = vmatpush.bf16.msra.mxu0 0
        %1911 = vmatpush.bf16.msra.mxu0 0
        %1912 = vmatpush.bf16.msra.mxu0 0
        %1913 = vmatpush.bf16.msra.mxu0 0
        %1914 = vmatpush.bf16.msra.mxu0 0
        %1915 = vmatpush.bf16.msra.mxu0 0
        %1916 = vmatpush.bf16.msra.mxu0 %v1904
        %1917 = vmatmul.bf16.gmra.mxu0 %v1901
        %v1918 = vpop.f32.mrf.mxu0
        %v1919 = vadd.f32 0.0, %v1918
        %v1920 = vpop.f32.mrf.mxu0
        %1921 = vdwg.mxu0
        %1922 = vmatpush.bf16.msra.mxu0 0
        %1923 = vmatpush.bf16.msra.mxu0 0
        %1924 = vmatpush.bf16.msra.mxu0 0
        %1925 = vmatpush.bf16.msra.mxu0 0
        %1926 = vmatpush.bf16.msra.mxu0 0
        %1927 = vmatpush.bf16.msra.mxu0 0
        %1928 = vmatpush.bf16.msra.mxu0 0
        %1929 = vmatpush.bf16.msra.mxu0 %v1907
        %1930 = vmatmul.bf16.gmra.mxu0 %v1901
        %v1931 = vpop.f32.mrf.mxu0
        %v1932 = vadd.f32 0.0, %v1931
        %v1933 = vpop.f32.mrf.mxu0
        %1934 = vdwg.mxu0
        %v1935 = vadd.f32 %v1892, %v1919
        %v1936 = vadd.f32 %v1893, %v1932
        %s1937 = scalar_lea.vmem %s8, 20
        %v1938 = vld [vmem:[%s1937] sm:$0xf]
        %1939 = vrot.lane.b32.xlu0 %v1258, 127
        %v1940 = vpop.permute.xlu0 %1939
        %1941 = vrot.lane.b32.xlu0 %v1259, 127
        %v1942 = vpop.permute.xlu0 %1941
        %v1943 = vsel %vm892, %v1940, %v1942
        %v1944 = vsel %vm892, %v1942, %v1940
        %v1945 = vmul.f32 %v1943, %v896
        %v1946 = vmul.f32 %v1944, %v897
        %v1947 = vpack.c.bf16 %v1945, %v1945
        %v1948 = vpack.c.bf16 %v1946, %v1946
        %v1950 = vsel %vm1283, %v1938, 0
        %v1953 = vsel %vm822, %v1947, 0
        %v1956 = vsel %vm822, %v1948, 0
        %1958 = vmatpush.bf16.msra.mxu0 0
        %1959 = vmatpush.bf16.msra.mxu0 0
        %1960 = vmatpush.bf16.msra.mxu0 0
        %1961 = vmatpush.bf16.msra.mxu0 0
        %1962 = vmatpush.bf16.msra.mxu0 0
        %1963 = vmatpush.bf16.msra.mxu0 0
        %1964 = vmatpush.bf16.msra.mxu0 0
        %1965 = vmatpush.bf16.msra.mxu0 %v1953
        %1966 = vmatmul.bf16.gmra.mxu0 %v1950
        %v1967 = vpop.f32.mrf.mxu0
        %v1968 = vadd.f32 0.0, %v1967
        %v1969 = vpop.f32.mrf.mxu0
        %1970 = vdwg.mxu0
        %1971 = vmatpush.bf16.msra.mxu0 0
        %1972 = vmatpush.bf16.msra.mxu0 0
        %1973 = vmatpush.bf16.msra.mxu0 0
        %1974 = vmatpush.bf16.msra.mxu0 0
        %1975 = vmatpush.bf16.msra.mxu0 0
        %1976 = vmatpush.bf16.msra.mxu0 0
        %1977 = vmatpush.bf16.msra.mxu0 0
        %1978 = vmatpush.bf16.msra.mxu0 %v1956
        %1979 = vmatmul.bf16.gmra.mxu0 %v1950
        %v1980 = vpop.f32.mrf.mxu0
        %v1981 = vadd.f32 0.0, %v1980
        %v1982 = vpop.f32.mrf.mxu0
        %1983 = vdwg.mxu0
        %v1984 = vadd.f32 %v1935, %v1968
        %v1985 = vadd.f32 %v1936, %v1981
        %s1986 = scalar_lea.vmem %s8, 24
        %v1987 = vld [vmem:[%s1986] sm:$0xf]
        %1988 = vrot.lane.b32.xlu0 %v1258, 113
        %v1989 = vpop.permute.xlu0 %1988
        %1990 = vrot.lane.b32.xlu0 %v1259, 113
        %v1991 = vpop.permute.xlu0 %1990
        %v1992 = vsel %vm962, %v1989, %v1991
        %v1993 = vsel %vm962, %v1991, %v1989
        %v1994 = vmul.f32 %v1992, %v966
        %v1995 = vmul.f32 %v1993, %v967
        %v1996 = vpack.c.bf16 %v1994, %v1994
        %v1997 = vpack.c.bf16 %v1995, %v1995
        %v1999 = vsel %vm1283, %v1987, 0
        %v2002 = vsel %vm822, %v1996, 0
        %v2005 = vsel %vm822, %v1997, 0
        %2007 = vmatpush.bf16.msra.mxu0 0
        %2008 = vmatpush.bf16.msra.mxu0 0
        %2009 = vmatpush.bf16.msra.mxu0 0
        %2010 = vmatpush.bf16.msra.mxu0 0
        %2011 = vmatpush.bf16.msra.mxu0 0
        %2012 = vmatpush.bf16.msra.mxu0 0
        %2013 = vmatpush.bf16.msra.mxu0 0
        %2014 = vmatpush.bf16.msra.mxu0 %v2002
        %2015 = vmatmul.bf16.gmra.mxu0 %v1999
        %v2016 = vpop.f32.mrf.mxu0
        %v2017 = vadd.f32 0.0, %v2016
        %v2018 = vpop.f32.mrf.mxu0
        %2019 = vdwg.mxu0
        %2020 = vmatpush.bf16.msra.mxu0 0
        %2021 = vmatpush.bf16.msra.mxu0 0
        %2022 = vmatpush.bf16.msra.mxu0 0
        %2023 = vmatpush.bf16.msra.mxu0 0
        %2024 = vmatpush.bf16.msra.mxu0 0
        %2025 = vmatpush.bf16.msra.mxu0 0
        %2026 = vmatpush.bf16.msra.mxu0 0
        %2027 = vmatpush.bf16.msra.mxu0 %v2005
        %2028 = vmatmul.bf16.gmra.mxu0 %v1999
        %v2029 = vpop.f32.mrf.mxu0
        %v2030 = vadd.f32 0.0, %v2029
        %v2031 = vpop.f32.mrf.mxu0
        %2032 = vdwg.mxu0
        %v2033 = vadd.f32 %v1984, %v2017
        %v2034 = vadd.f32 %v1985, %v2030
        %s2035 = scalar_lea.vmem %s8, 28
        %v2036 = vld [vmem:[%s2035] sm:$0xf]
        %2037 = vrot.lane.b32.xlu0 %v1258, 112
        %v2038 = vpop.permute.xlu0 %2037
        %2039 = vrot.lane.b32.xlu0 %v1259, 112
        %v2040 = vpop.permute.xlu0 %2039
        %v2041 = vsel %vm1032, %v2038, %v2040
        %v2042 = vsel %vm1032, %v2040, %v2038
        %v2043 = vmul.f32 %v2041, %v1036
        %v2044 = vmul.f32 %v2042, %v1037
        %v2045 = vpack.c.bf16 %v2043, %v2043
        %v2046 = vpack.c.bf16 %v2044, %v2044
        %v2048 = vsel %vm1283, %v2036, 0
        %v2051 = vsel %vm822, %v2045, 0
        %v2054 = vsel %vm822, %v2046, 0
        %2056 = vmatpush.bf16.msra.mxu0 0
        %2057 = vmatpush.bf16.msra.mxu0 0
        %2058 = vmatpush.bf16.msra.mxu0 0
        %2059 = vmatpush.bf16.msra.mxu0 0
        %2060 = vmatpush.bf16.msra.mxu0 0
        %2061 = vmatpush.bf16.msra.mxu0 0
        %2062 = vmatpush.bf16.msra.mxu0 0
        %2063 = vmatpush.bf16.msra.mxu0 %v2051
        %2064 = vmatmul.bf16.gmra.mxu0 %v2048
        %v2065 = vpop.f32.mrf.mxu0
        %v2066 = vadd.f32 0.0, %v2065
        %v2067 = vpop.f32.mrf.mxu0
        %2068 = vdwg.mxu0
        %2069 = vmatpush.bf16.msra.mxu0 0
        %2070 = vmatpush.bf16.msra.mxu0 0
        %2071 = vmatpush.bf16.msra.mxu0 0
        %2072 = vmatpush.bf16.msra.mxu0 0
        %2073 = vmatpush.bf16.msra.mxu0 0
        %2074 = vmatpush.bf16.msra.mxu0 0
        %2075 = vmatpush.bf16.msra.mxu0 0
        %2076 = vmatpush.bf16.msra.mxu0 %v2054
        %2077 = vmatmul.bf16.gmra.mxu0 %v2048
        %v2078 = vpop.f32.mrf.mxu0
        %v2079 = vadd.f32 0.0, %v2078
        %v2080 = vpop.f32.mrf.mxu0
        %2081 = vdwg.mxu0
        %v2082 = vadd.f32 %v2033, %v2066
        %v2083 = vadd.f32 %v2034, %v2079
        %s2084 = scalar_lea.vmem %s8, 32
        %v2085 = vld [vmem:[%s2084] sm:$0xf]
        %2086 = vrot.lane.b32.xlu0 %v1258, 111
        %v2087 = vpop.permute.xlu0 %2086
        %2088 = vrot.lane.b32.xlu0 %v1259, 111
        %v2089 = vpop.permute.xlu0 %2088
        %v2090 = vsel %vm1102, %v2087, %v2089
        %v2091 = vsel %vm1102, %v2089, %v2087
        %v2092 = vmul.f32 %v2090, %v1106
        %v2093 = vmul.f32 %v2091, %v1107
        %v2094 = vpack.c.bf16 %v2092, %v2092
        %v2095 = vpack.c.bf16 %v2093, %v2093
        %v2097 = vsel %vm1283, %v2085, 0
        %v2100 = vsel %vm822, %v2094, 0
        %v2103 = vsel %vm822, %v2095, 0
        %2105 = vmatpush.bf16.msra.mxu0 0
        %2106 = vmatpush.bf16.msra.mxu0 0
        %2107 = vmatpush.bf16.msra.mxu0 0
        %2108 = vmatpush.bf16.msra.mxu0 0
        %2109 = vmatpush.bf16.msra.mxu0 0
        %2110 = vmatpush.bf16.msra.mxu0 0
        %2111 = vmatpush.bf16.msra.mxu0 0
        %2112 = vmatpush.bf16.msra.mxu0 %v2100
        %2113 = vmatmul.bf16.gmra.mxu0 %v2097
        %v2114 = vpop.f32.mrf.mxu0
        %v2115 = vadd.f32 0.0, %v2114
        %v2116 = vpop.f32.mrf.mxu0
        %2117 = vdwg.mxu0
        %2118 = vmatpush.bf16.msra.mxu0 0
        %2119 = vmatpush.bf16.msra.mxu0 0
        %2120 = vmatpush.bf16.msra.mxu0 0
        %2121 = vmatpush.bf16.msra.mxu0 0
        %2122 = vmatpush.bf16.msra.mxu0 0
        %2123 = vmatpush.bf16.msra.mxu0 0
        %2124 = vmatpush.bf16.msra.mxu0 0
        %2125 = vmatpush.bf16.msra.mxu0 %v2103
        %2126 = vmatmul.bf16.gmra.mxu0 %v2097
        %v2127 = vpop.f32.mrf.mxu0
        %v2128 = vadd.f32 0.0, %v2127
        %v2129 = vpop.f32.mrf.mxu0
        %2130 = vdwg.mxu0
        %v2131 = vadd.f32 %v2082, %v2115
        %v2132 = vadd.f32 %v2083, %v2128
        %v2133 = vld [vmem:[%s9] sm:$0xff]
        %2135 = vset.pattern.permute.xlu0 0
        %2136 = vperm.xlu0 %2135, %v2133
        %v2137 = vpop.permute.xlu0 %2136
        %v2139 = vadd.f32 %v2131, %v2137
        %v2140 = vadd.f32 %v2132, %v2137
        %v2141 = vmax.f32 %v2139, 0.0
        %v2142 = vmax.f32 %v2140, 0.0
        %v2143 = vld [vmem:[%s10] sm:$0xf]
        %2144 = vrot.lane.b32.xlu0 %v2141, 17
        %v2145 = vpop.permute.xlu0 %2144
        %2146 = vrot.lane.b32.xlu0 %v2142, 17
        %v2147 = vpop.permute.xlu0 %2146
        %v2148 = vsel %vm553, %v2145, %v2147
        %v2149 = vsel %vm553, %v2147, %v2145
        %v2150 = vmul.f32 %v2149, %v557
        %v2151 = vmul.f32 %v2148, %v558
        %v2152 = vpack.c.bf16 %v2150, %v2150
        %v2153 = vpack.c.bf16 %v2151, %v2151
        %s2154 = scalar_lea.vmem %s10, 4
        %v2155 = vld [vmem:[%s2154] sm:$0xf]
        %2156 = vrot.lane.b32.xlu0 %v2141, 16
        %v2157 = vpop.permute.xlu0 %2156
        %2158 = vrot.lane.b32.xlu0 %v2142, 16
        %v2159 = vpop.permute.xlu0 %2158
        %v2160 = vsel %vm577, %v2157, %v2159
        %v2161 = vsel %vm577, %v2159, %v2157
        %v2162 = vmul.f32 %v2161, %v581
        %v2163 = vmul.f32 %v2160, %v582
        %v2164 = vpack.c.bf16 %v2162, %v2162
        %v2165 = vpack.c.bf16 %v2163, %v2163
        %v2167 = vsel %vm1283, %v2155, 0
        %v2170 = vsel %vm822, %v2164, 0
        %v2173 = vsel %vm822, %v2165, 0
        %2175 = vmatpush.bf16.msra.mxu0 0
        %2176 = vmatpush.bf16.msra.mxu0 0
        %2177 = vmatpush.bf16.msra.mxu0 0
        %2178 = vmatpush.bf16.msra.mxu0 0
        %2179 = vmatpush.bf16.msra.mxu0 0
        %2180 = vmatpush.bf16.msra.mxu0 0
        %2181 = vmatpush.bf16.msra.mxu0 0
        %2182 = vmatpush.bf16.msra.mxu0 %v2170
        %2183 = vmatmul.bf16.gmra.mxu0 %v2167
        %v2184 = vpop.f32.mrf.mxu0
        %v2185 = vadd.f32 0.0, %v2184
        %v2186 = vpop.f32.mrf.mxu0
        %2187 = vdwg.mxu0
        %2188 = vmatpush.bf16.msra.mxu0 0
        %2189 = vmatpush.bf16.msra.mxu0 0
        %2190 = vmatpush.bf16.msra.mxu0 0
        %2191 = vmatpush.bf16.msra.mxu0 0
        %2192 = vmatpush.bf16.msra.mxu0 0
        %2193 = vmatpush.bf16.msra.mxu0 0
        %2194 = vmatpush.bf16.msra.mxu0 0
        %2195 = vmatpush.bf16.msra.mxu0 %v2173
        %2196 = vmatmul.bf16.gmra.mxu0 %v2167
        %v2197 = vpop.f32.mrf.mxu0
        %v2198 = vadd.f32 0.0, %v2197
        %v2199 = vpop.f32.mrf.mxu0
        %2200 = vdwg.mxu0
        %v2202 = vsel %vm1283, %v2143, 0
        %v2205 = vsel %vm822, %v2152, 0
        %v2208 = vsel %vm822, %v2153, 0
        %2210 = vmatpush.bf16.msra.mxu0 0
        %2211 = vmatpush.bf16.msra.mxu0 0
        %2212 = vmatpush.bf16.msra.mxu0 0
        %2213 = vmatpush.bf16.msra.mxu0 0
        %2214 = vmatpush.bf16.msra.mxu0 0
        %2215 = vmatpush.bf16.msra.mxu0 0
        %2216 = vmatpush.bf16.msra.mxu0 0
        %2217 = vmatpush.bf16.msra.mxu0 %v2205
        %2218 = vmatmul.bf16.gmra.mxu0 %v2202
        %v2219 = vpop.f32.mrf.mxu0
        %v2220 = vadd.f32 %v2185, %v2219
        %v2221 = vpop.f32.mrf.mxu0
        %2222 = vdwg.mxu0
        %2223 = vmatpush.bf16.msra.mxu0 0
        %2224 = vmatpush.bf16.msra.mxu0 0
        %2225 = vmatpush.bf16.msra.mxu0 0
        %2226 = vmatpush.bf16.msra.mxu0 0
        %2227 = vmatpush.bf16.msra.mxu0 0
        %2228 = vmatpush.bf16.msra.mxu0 0
        %2229 = vmatpush.bf16.msra.mxu0 0
        %2230 = vmatpush.bf16.msra.mxu0 %v2208
        %2231 = vmatmul.bf16.gmra.mxu0 %v2202
        %v2232 = vpop.f32.mrf.mxu0
        %v2233 = vadd.f32 %v2198, %v2232
        %v2234 = vpop.f32.mrf.mxu0
        %2235 = vdwg.mxu0
        %s2236 = scalar_lea.vmem %s10, 8
        %v2237 = vld [vmem:[%s2236] sm:$0xf]
        %2238 = vrot.lane.b32.xlu0 %v2141, 15
        %v2239 = vpop.permute.xlu0 %2238
        %2240 = vrot.lane.b32.xlu0 %v2142, 15
        %v2241 = vpop.permute.xlu0 %2240
        %v2242 = vsel %vm687, %v2239, %v2241
        %v2243 = vsel %vm687, %v2241, %v2239
        %v2244 = vmul.f32 %v2243, %v691
        %v2245 = vmul.f32 %v2242, %v692
        %v2246 = vpack.c.bf16 %v2244, %v2244
        %v2247 = vpack.c.bf16 %v2245, %v2245
        %v2249 = vsel %vm1283, %v2237, 0
        %v2252 = vsel %vm822, %v2246, 0
        %v2255 = vsel %vm822, %v2247, 0
        %2257 = vmatpush.bf16.msra.mxu0 0
        %2258 = vmatpush.bf16.msra.mxu0 0
        %2259 = vmatpush.bf16.msra.mxu0 0
        %2260 = vmatpush.bf16.msra.mxu0 0
        %2261 = vmatpush.bf16.msra.mxu0 0
        %2262 = vmatpush.bf16.msra.mxu0 0
        %2263 = vmatpush.bf16.msra.mxu0 0
        %2264 = vmatpush.bf16.msra.mxu0 %v2252
        %2265 = vmatmul.bf16.gmra.mxu0 %v2249
        %v2266 = vpop.f32.mrf.mxu0
        %v2267 = vadd.f32 0.0, %v2266
        %v2268 = vpop.f32.mrf.mxu0
        %2269 = vdwg.mxu0
        %2270 = vmatpush.bf16.msra.mxu0 0
        %2271 = vmatpush.bf16.msra.mxu0 0
        %2272 = vmatpush.bf16.msra.mxu0 0
        %2273 = vmatpush.bf16.msra.mxu0 0
        %2274 = vmatpush.bf16.msra.mxu0 0
        %2275 = vmatpush.bf16.msra.mxu0 0
        %2276 = vmatpush.bf16.msra.mxu0 0
        %2277 = vmatpush.bf16.msra.mxu0 %v2255
        %2278 = vmatmul.bf16.gmra.mxu0 %v2249
        %v2279 = vpop.f32.mrf.mxu0
        %v2280 = vadd.f32 0.0, %v2279
        %v2281 = vpop.f32.mrf.mxu0
        %2282 = vdwg.mxu0
        %v2283 = vadd.f32 %v2220, %v2267
        %v2284 = vadd.f32 %v2233, %v2280
        %s2285 = scalar_lea.vmem %s10, 12
        %v2286 = vld [vmem:[%s2285] sm:$0xf]
        %2287 = vrot.lane.b32.xlu0 %v2141, 1
        %v2288 = vpop.permute.xlu0 %2287
        %2289 = vrot.lane.b32.xlu0 %v2142, 1
        %v2290 = vpop.permute.xlu0 %2289
        %v2291 = vsel %vm757, %v2288, %v2290
        %v2292 = vsel %vm757, %v2290, %v2288
        %v2293 = vmul.f32 %v2292, %v761
        %v2294 = vmul.f32 %v2291, %v762
        %v2295 = vpack.c.bf16 %v2293, %v2293
        %v2296 = vpack.c.bf16 %v2294, %v2294
        %v2298 = vsel %vm1283, %v2286, 0
        %v2301 = vsel %vm822, %v2295, 0
        %v2304 = vsel %vm822, %v2296, 0
        %2306 = vmatpush.bf16.msra.mxu0 0
        %2307 = vmatpush.bf16.msra.mxu0 0
        %2308 = vmatpush.bf16.msra.mxu0 0
        %2309 = vmatpush.bf16.msra.mxu0 0
        %2310 = vmatpush.bf16.msra.mxu0 0
        %2311 = vmatpush.bf16.msra.mxu0 0
        %2312 = vmatpush.bf16.msra.mxu0 0
        %2313 = vmatpush.bf16.msra.mxu0 %v2301
        %2314 = vmatmul.bf16.gmra.mxu0 %v2298
        %v2315 = vpop.f32.mrf.mxu0
        %v2316 = vadd.f32 0.0, %v2315
        %v2317 = vpop.f32.mrf.mxu0
        %2318 = vdwg.mxu0
        %2319 = vmatpush.bf16.msra.mxu0 0
        %2320 = vmatpush.bf16.msra.mxu0 0
        %2321 = vmatpush.bf16.msra.mxu0 0
        %2322 = vmatpush.bf16.msra.mxu0 0
        %2323 = vmatpush.bf16.msra.mxu0 0
        %2324 = vmatpush.bf16.msra.mxu0 0
        %2325 = vmatpush.bf16.msra.mxu0 0
        %2326 = vmatpush.bf16.msra.mxu0 %v2304
        %2327 = vmatmul.bf16.gmra.mxu0 %v2298
        %v2328 = vpop.f32.mrf.mxu0
        %v2329 = vadd.f32 0.0, %v2328
        %v2330 = vpop.f32.mrf.mxu0
        %2331 = vdwg.mxu0
        %v2332 = vadd.f32 %v2283, %v2316
        %v2333 = vadd.f32 %v2284, %v2329
        %s2334 = scalar_lea.vmem %s10, 16
        %v2335 = vld [vmem:[%s2334] sm:$0xf]
        %v2336 = vmul.f32 %v2141, %v819
        %v2337 = vmul.f32 %v2142, %v820
        %v2338 = vpack.c.bf16 %v2336, %v2336
        %v2339 = vpack.c.bf16 %v2337, %v2337
        %v2341 = vsel %vm1283, %v2335, 0
        %v2344 = vsel %vm822, %v2338, 0
        %v2347 = vsel %vm822, %v2339, 0
        %2349 = vmatpush.bf16.msra.mxu0 0
        %2350 = vmatpush.bf16.msra.mxu0 0
        %2351 = vmatpush.bf16.msra.mxu0 0
        %2352 = vmatpush.bf16.msra.mxu0 0
        %2353 = vmatpush.bf16.msra.mxu0 0
        %2354 = vmatpush.bf16.msra.mxu0 0
        %2355 = vmatpush.bf16.msra.mxu0 0
        %2356 = vmatpush.bf16.msra.mxu0 %v2344
        %2357 = vmatmul.bf16.gmra.mxu0 %v2341
        %v2358 = vpop.f32.mrf.mxu0
        %v2359 = vadd.f32 0.0, %v2358
        %v2360 = vpop.f32.mrf.mxu0
        %2361 = vdwg.mxu0
        %2362 = vmatpush.bf16.msra.mxu0 0
        %2363 = vmatpush.bf16.msra.mxu0 0
        %2364 = vmatpush.bf16.msra.mxu0 0
        %2365 = vmatpush.bf16.msra.mxu0 0
        %2366 = vmatpush.bf16.msra.mxu0 0
        %2367 = vmatpush.bf16.msra.mxu0 0
        %2368 = vmatpush.bf16.msra.mxu0 0
        %2369 = vmatpush.bf16.msra.mxu0 %v2347
        %2370 = vmatmul.bf16.gmra.mxu0 %v2341
        %v2371 = vpop.f32.mrf.mxu0
        %v2372 = vadd.f32 0.0, %v2371
        %v2373 = vpop.f32.mrf.mxu0
        %2374 = vdwg.mxu0
        %v2375 = vadd.f32 %v2332, %v2359
        %v2376 = vadd.f32 %v2333, %v2372
        %s2377 = scalar_lea.vmem %s10, 20
        %v2378 = vld [vmem:[%s2377] sm:$0xf]
        %2379 = vrot.lane.b32.xlu0 %v2141, 127
        %v2380 = vpop.permute.xlu0 %2379
        %2381 = vrot.lane.b32.xlu0 %v2142, 127
        %v2382 = vpop.permute.xlu0 %2381
        %v2383 = vsel %vm892, %v2380, %v2382
        %v2384 = vsel %vm892, %v2382, %v2380
        %v2385 = vmul.f32 %v2383, %v896
        %v2386 = vmul.f32 %v2384, %v897
        %v2387 = vpack.c.bf16 %v2385, %v2385
        %v2388 = vpack.c.bf16 %v2386, %v2386
        %v2390 = vsel %vm1283, %v2378, 0
        %v2393 = vsel %vm822, %v2387, 0
        %v2396 = vsel %vm822, %v2388, 0
        %2398 = vmatpush.bf16.msra.mxu0 0
        %2399 = vmatpush.bf16.msra.mxu0 0
        %2400 = vmatpush.bf16.msra.mxu0 0
        %2401 = vmatpush.bf16.msra.mxu0 0
        %2402 = vmatpush.bf16.msra.mxu0 0
        %2403 = vmatpush.bf16.msra.mxu0 0
        %2404 = vmatpush.bf16.msra.mxu0 0
        %2405 = vmatpush.bf16.msra.mxu0 %v2393
        %2406 = vmatmul.bf16.gmra.mxu0 %v2390
        %v2407 = vpop.f32.mrf.mxu0
        %v2408 = vadd.f32 0.0, %v2407
        %v2409 = vpop.f32.mrf.mxu0
        %2410 = vdwg.mxu0
        %2411 = vmatpush.bf16.msra.mxu0 0
        %2412 = vmatpush.bf16.msra.mxu0 0
        %2413 = vmatpush.bf16.msra.mxu0 0
        %2414 = vmatpush.bf16.msra.mxu0 0
        %2415 = vmatpush.bf16.msra.mxu0 0
        %2416 = vmatpush.bf16.msra.mxu0 0
        %2417 = vmatpush.bf16.msra.mxu0 0
        %2418 = vmatpush.bf16.msra.mxu0 %v2396
        %2419 = vmatmul.bf16.gmra.mxu0 %v2390
        %v2420 = vpop.f32.mrf.mxu0
        %v2421 = vadd.f32 0.0, %v2420
        %v2422 = vpop.f32.mrf.mxu0
        %2423 = vdwg.mxu0
        %v2424 = vadd.f32 %v2375, %v2408
        %v2425 = vadd.f32 %v2376, %v2421
        %s2426 = scalar_lea.vmem %s10, 24
        %v2427 = vld [vmem:[%s2426] sm:$0xf]
        %2428 = vrot.lane.b32.xlu0 %v2141, 113
        %v2429 = vpop.permute.xlu0 %2428
        %2430 = vrot.lane.b32.xlu0 %v2142, 113
        %v2431 = vpop.permute.xlu0 %2430
        %v2432 = vsel %vm962, %v2429, %v2431
        %v2433 = vsel %vm962, %v2431, %v2429
        %v2434 = vmul.f32 %v2432, %v966
        %v2435 = vmul.f32 %v2433, %v967
        %v2436 = vpack.c.bf16 %v2434, %v2434
        %v2437 = vpack.c.bf16 %v2435, %v2435
        %v2439 = vsel %vm1283, %v2427, 0
        %v2442 = vsel %vm822, %v2436, 0
        %v2445 = vsel %vm822, %v2437, 0
        %2447 = vmatpush.bf16.msra.mxu0 0
        %2448 = vmatpush.bf16.msra.mxu0 0
        %2449 = vmatpush.bf16.msra.mxu0 0
        %2450 = vmatpush.bf16.msra.mxu0 0
        %2451 = vmatpush.bf16.msra.mxu0 0
        %2452 = vmatpush.bf16.msra.mxu0 0
        %2453 = vmatpush.bf16.msra.mxu0 0
        %2454 = vmatpush.bf16.msra.mxu0 %v2442
        %2455 = vmatmul.bf16.gmra.mxu0 %v2439
        %v2456 = vpop.f32.mrf.mxu0
        %v2457 = vadd.f32 0.0, %v2456
        %v2458 = vpop.f32.mrf.mxu0
        %2459 = vdwg.mxu0
        %2460 = vmatpush.bf16.msra.mxu0 0
        %2461 = vmatpush.bf16.msra.mxu0 0
        %2462 = vmatpush.bf16.msra.mxu0 0
        %2463 = vmatpush.bf16.msra.mxu0 0
        %2464 = vmatpush.bf16.msra.mxu0 0
        %2465 = vmatpush.bf16.msra.mxu0 0
        %2466 = vmatpush.bf16.msra.mxu0 0
        %2467 = vmatpush.bf16.msra.mxu0 %v2445
        %2468 = vmatmul.bf16.gmra.mxu0 %v2439
        %v2469 = vpop.f32.mrf.mxu0
        %v2470 = vadd.f32 0.0, %v2469
        %v2471 = vpop.f32.mrf.mxu0
        %2472 = vdwg.mxu0
        %v2473 = vadd.f32 %v2424, %v2457
        %v2474 = vadd.f32 %v2425, %v2470
        %s2475 = scalar_lea.vmem %s10, 28
        %v2476 = vld [vmem:[%s2475] sm:$0xf]
        %2477 = vrot.lane.b32.xlu0 %v2141, 112
        %v2478 = vpop.permute.xlu0 %2477
        %2479 = vrot.lane.b32.xlu0 %v2142, 112
        %v2480 = vpop.permute.xlu0 %2479
        %v2481 = vsel %vm1032, %v2478, %v2480
        %v2482 = vsel %vm1032, %v2480, %v2478
        %v2483 = vmul.f32 %v2481, %v1036
        %v2484 = vmul.f32 %v2482, %v1037
        %v2485 = vpack.c.bf16 %v2483, %v2483
        %v2486 = vpack.c.bf16 %v2484, %v2484
        %v2488 = vsel %vm1283, %v2476, 0
        %v2491 = vsel %vm822, %v2485, 0
        %v2494 = vsel %vm822, %v2486, 0
        %2496 = vmatpush.bf16.msra.mxu0 0
        %2497 = vmatpush.bf16.msra.mxu0 0
        %2498 = vmatpush.bf16.msra.mxu0 0
        %2499 = vmatpush.bf16.msra.mxu0 0
        %2500 = vmatpush.bf16.msra.mxu0 0
        %2501 = vmatpush.bf16.msra.mxu0 0
        %2502 = vmatpush.bf16.msra.mxu0 0
        %2503 = vmatpush.bf16.msra.mxu0 %v2491
        %2504 = vmatmul.bf16.gmra.mxu0 %v2488
        %v2505 = vpop.f32.mrf.mxu0
        %v2506 = vadd.f32 0.0, %v2505
        %v2507 = vpop.f32.mrf.mxu0
        %2508 = vdwg.mxu0
        %2509 = vmatpush.bf16.msra.mxu0 0
        %2510 = vmatpush.bf16.msra.mxu0 0
        %2511 = vmatpush.bf16.msra.mxu0 0
        %2512 = vmatpush.bf16.msra.mxu0 0
        %2513 = vmatpush.bf16.msra.mxu0 0
        %2514 = vmatpush.bf16.msra.mxu0 0
        %2515 = vmatpush.bf16.msra.mxu0 0
        %2516 = vmatpush.bf16.msra.mxu0 %v2494
        %2517 = vmatmul.bf16.gmra.mxu0 %v2488
        %v2518 = vpop.f32.mrf.mxu0
        %v2519 = vadd.f32 0.0, %v2518
        %v2520 = vpop.f32.mrf.mxu0
        %2521 = vdwg.mxu0
        %v2522 = vadd.f32 %v2473, %v2506
        %v2523 = vadd.f32 %v2474, %v2519
        %s2524 = scalar_lea.vmem %s10, 32
        %v2525 = vld [vmem:[%s2524] sm:$0xf]
        %2526 = vrot.lane.b32.xlu0 %v2141, 111
        %v2527 = vpop.permute.xlu0 %2526
        %2528 = vrot.lane.b32.xlu0 %v2142, 111
        %v2529 = vpop.permute.xlu0 %2528
        %v2530 = vsel %vm1102, %v2527, %v2529
        %v2531 = vsel %vm1102, %v2529, %v2527
        %v2532 = vmul.f32 %v2530, %v1106
        %v2533 = vmul.f32 %v2531, %v1107
        %v2534 = vpack.c.bf16 %v2532, %v2532
        %v2535 = vpack.c.bf16 %v2533, %v2533
        %v2537 = vsel %vm1283, %v2525, 0
        %v2540 = vsel %vm822, %v2534, 0
        %v2543 = vsel %vm822, %v2535, 0
        %2545 = vmatpush.bf16.msra.mxu0 0
        %2546 = vmatpush.bf16.msra.mxu0 0
        %2547 = vmatpush.bf16.msra.mxu0 0
        %2548 = vmatpush.bf16.msra.mxu0 0
        %2549 = vmatpush.bf16.msra.mxu0 0
        %2550 = vmatpush.bf16.msra.mxu0 0
        %2551 = vmatpush.bf16.msra.mxu0 0
        %2552 = vmatpush.bf16.msra.mxu0 %v2540
        %2553 = vmatmul.bf16.gmra.mxu0 %v2537
        %v2554 = vpop.f32.mrf.mxu0
        %v2555 = vadd.f32 0.0, %v2554
        %v2556 = vpop.f32.mrf.mxu0
        %2557 = vdwg.mxu0
        %2558 = vmatpush.bf16.msra.mxu0 0
        %2559 = vmatpush.bf16.msra.mxu0 0
        %2560 = vmatpush.bf16.msra.mxu0 0
        %2561 = vmatpush.bf16.msra.mxu0 0
        %2562 = vmatpush.bf16.msra.mxu0 0
        %2563 = vmatpush.bf16.msra.mxu0 0
        %2564 = vmatpush.bf16.msra.mxu0 0
        %2565 = vmatpush.bf16.msra.mxu0 %v2543
        %2566 = vmatmul.bf16.gmra.mxu0 %v2537
        %v2567 = vpop.f32.mrf.mxu0
        %v2568 = vadd.f32 0.0, %v2567
        %v2569 = vpop.f32.mrf.mxu0
        %2570 = vdwg.mxu0
        %v2571 = vadd.f32 %v2522, %v2555
        %v2572 = vadd.f32 %v2523, %v2568
        %v2573 = vld [vmem:[%s11] sm:$0xff]
        %2575 = vset.pattern.permute.xlu0 0
        %2576 = vperm.xlu0 %2575, %v2573
        %v2577 = vpop.permute.xlu0 %2576
        %v2579 = vadd.f32 %v2571, %v2577
        %v2580 = vadd.f32 %v2572, %v2577
        %v2581 = vmax.f32 %v2579, 0.0
        %v2582 = vmax.f32 %v2580, 0.0
        %2583 = vrot.lane.b32.xlu0 %v1176, 17
        %v2584 = vpop.permute.xlu0 %2583
        %2585 = vrot.lane.b32.xlu0 %v1178, 17
        %v2586 = vpop.permute.xlu0 %2585
        %2587 = vrot.lane.b32.xlu0 %v1177, 17
        %v2588 = vpop.permute.xlu0 %2587
        %2589 = vrot.lane.b32.xlu0 %v1179, 17
        %v2590 = vpop.permute.xlu0 %2589
        %v2591 = vsel %vm553, %v2584, %v2588
        %v2592 = vsel %vm553, %v2586, %v2590
        %v2593 = vsel %vm553, %v2588, %v2584
        %v2594 = vsel %vm553, %v2590, %v2586
        %v2595 = vmul.f32 %v2593, %v557
        %v2596 = vmul.f32 %v2591, %v558
        %v2597 = vmul.f32 %v2594, %v557
        %v2598 = vmul.f32 %v2592, %v558
        %2599 = vrot.lane.b32.xlu0 %v1176, 16
        %v2600 = vpop.permute.xlu0 %2599
        %2601 = vrot.lane.b32.xlu0 %v1178, 16
        %v2602 = vpop.permute.xlu0 %2601
        %2603 = vrot.lane.b32.xlu0 %v1177, 16
        %v2604 = vpop.permute.xlu0 %2603
        %2605 = vrot.lane.b32.xlu0 %v1179, 16
        %v2606 = vpop.permute.xlu0 %2605
        %v2607 = vsel %vm577, %v2600, %v2604
        %v2608 = vsel %vm577, %v2602, %v2606
        %v2609 = vsel %vm577, %v2604, %v2600
        %v2610 = vsel %vm577, %v2606, %v2602
        %v2611 = vmul.f32 %v2609, %v581
        %v2612 = vmul.f32 %v2607, %v582
        %v2613 = vmul.f32 %v2610, %v581
        %v2614 = vmul.f32 %v2608, %v582
        %v2615 = vadd.f32 %v2595, %v2611
        %v2616 = vadd.f32 %v2596, %v2612
        %v2617 = vadd.f32 %v2597, %v2613
        %v2618 = vadd.f32 %v2598, %v2614
        %2619 = vrot.lane.b32.xlu0 %v1176, 15
        %v2620 = vpop.permute.xlu0 %2619
        %2621 = vrot.lane.b32.xlu0 %v1178, 15
        %v2622 = vpop.permute.xlu0 %2621
        %2623 = vrot.lane.b32.xlu0 %v1177, 15
        %v2624 = vpop.permute.xlu0 %2623
        %2625 = vrot.lane.b32.xlu0 %v1179, 15
        %v2626 = vpop.permute.xlu0 %2625
        %v2627 = vsel %vm687, %v2620, %v2624
        %v2628 = vsel %vm687, %v2622, %v2626
        %v2629 = vsel %vm687, %v2624, %v2620
        %v2630 = vsel %vm687, %v2626, %v2622
        %v2631 = vmul.f32 %v2629, %v691
        %v2632 = vmul.f32 %v2627, %v692
        %v2633 = vmul.f32 %v2630, %v691
        %v2634 = vmul.f32 %v2628, %v692
        %v2635 = vadd.f32 %v2615, %v2631
        %v2636 = vadd.f32 %v2616, %v2632
        %v2637 = vadd.f32 %v2617, %v2633
        %v2638 = vadd.f32 %v2618, %v2634
        %2639 = vrot.lane.b32.xlu0 %v1176, 1
        %v2640 = vpop.permute.xlu0 %2639
        %2641 = vrot.lane.b32.xlu0 %v1178, 1
        %v2642 = vpop.permute.xlu0 %2641
        %2643 = vrot.lane.b32.xlu0 %v1177, 1
        %v2644 = vpop.permute.xlu0 %2643
        %2645 = vrot.lane.b32.xlu0 %v1179, 1
        %v2646 = vpop.permute.xlu0 %2645
        %v2647 = vsel %vm757, %v2640, %v2644
        %v2648 = vsel %vm757, %v2642, %v2646
        %v2649 = vsel %vm757, %v2644, %v2640
        %v2650 = vsel %vm757, %v2646, %v2642
        %v2651 = vmul.f32 %v2649, %v761
        %v2652 = vmul.f32 %v2647, %v762
        %v2653 = vmul.f32 %v2650, %v761
        %v2654 = vmul.f32 %v2648, %v762
        %v2655 = vadd.f32 %v2635, %v2651
        %v2656 = vadd.f32 %v2636, %v2652
        %v2657 = vadd.f32 %v2637, %v2653
        %v2658 = vadd.f32 %v2638, %v2654
        %v2659 = vmul.f32 %v1176, %v819
        %v2660 = vmul.f32 %v1177, %v820
        %v2661 = vmul.f32 %v1178, %v819
        %v2662 = vmul.f32 %v1179, %v820
        %v2663 = vadd.f32 %v2655, %v2659
        %v2664 = vadd.f32 %v2656, %v2660
        %v2665 = vadd.f32 %v2657, %v2661
        %v2666 = vadd.f32 %v2658, %v2662
        %2667 = vrot.lane.b32.xlu0 %v1176, 127
        %v2668 = vpop.permute.xlu0 %2667
        %2669 = vrot.lane.b32.xlu0 %v1178, 127
        %v2670 = vpop.permute.xlu0 %2669
        %2671 = vrot.lane.b32.xlu0 %v1177, 127
        %v2672 = vpop.permute.xlu0 %2671
        %2673 = vrot.lane.b32.xlu0 %v1179, 127
        %v2674 = vpop.permute.xlu0 %2673
        %v2675 = vsel %vm892, %v2668, %v2672
        %v2676 = vsel %vm892, %v2670, %v2674
        %v2677 = vsel %vm892, %v2672, %v2668
        %v2678 = vsel %vm892, %v2674, %v2670
        %v2679 = vmul.f32 %v2675, %v896
        %v2680 = vmul.f32 %v2677, %v897
        %v2681 = vmul.f32 %v2676, %v896
        %v2682 = vmul.f32 %v2678, %v897
        %v2683 = vadd.f32 %v2663, %v2679
        %v2684 = vadd.f32 %v2664, %v2680
        %v2685 = vadd.f32 %v2665, %v2681
        %v2686 = vadd.f32 %v2666, %v2682
        %2687 = vrot.lane.b32.xlu0 %v1176, 113
        %v2688 = vpop.permute.xlu0 %2687
        %2689 = vrot.lane.b32.xlu0 %v1178, 113
        %v2690 = vpop.permute.xlu0 %2689
        %2691 = vrot.lane.b32.xlu0 %v1177, 113
        %v2692 = vpop.permute.xlu0 %2691
        %2693 = vrot.lane.b32.xlu0 %v1179, 113
        %v2694 = vpop.permute.xlu0 %2693
        %v2695 = vsel %vm962, %v2688, %v2692
        %v2696 = vsel %vm962, %v2690, %v2694
        %v2697 = vsel %vm962, %v2692, %v2688
        %v2698 = vsel %vm962, %v2694, %v2690
        %v2699 = vmul.f32 %v2695, %v966
        %v2700 = vmul.f32 %v2697, %v967
        %v2701 = vmul.f32 %v2696, %v966
        %v2702 = vmul.f32 %v2698, %v967
        %v2703 = vadd.f32 %v2683, %v2699
        %v2704 = vadd.f32 %v2684, %v2700
        %v2705 = vadd.f32 %v2685, %v2701
        %v2706 = vadd.f32 %v2686, %v2702
        %2707 = vrot.lane.b32.xlu0 %v1176, 112
        %v2708 = vpop.permute.xlu0 %2707
        %2709 = vrot.lane.b32.xlu0 %v1178, 112
        %v2710 = vpop.permute.xlu0 %2709
        %2711 = vrot.lane.b32.xlu0 %v1177, 112
        %v2712 = vpop.permute.xlu0 %2711
        %2713 = vrot.lane.b32.xlu0 %v1179, 112
        %v2714 = vpop.permute.xlu0 %2713
        %v2715 = vsel %vm1032, %v2708, %v2712
        %v2716 = vsel %vm1032, %v2710, %v2714
        %v2717 = vsel %vm1032, %v2712, %v2708
        %v2718 = vsel %vm1032, %v2714, %v2710
        %v2719 = vmul.f32 %v2715, %v1036
        %v2720 = vmul.f32 %v2717, %v1037
        %v2721 = vmul.f32 %v2716, %v1036
        %v2722 = vmul.f32 %v2718, %v1037
        %v2723 = vadd.f32 %v2703, %v2719
        %v2724 = vadd.f32 %v2704, %v2720
        %v2725 = vadd.f32 %v2705, %v2721
        %v2726 = vadd.f32 %v2706, %v2722
        %2727 = vrot.lane.b32.xlu0 %v1176, 111
        %v2728 = vpop.permute.xlu0 %2727
        %2729 = vrot.lane.b32.xlu0 %v1178, 111
        %v2730 = vpop.permute.xlu0 %2729
        %2731 = vrot.lane.b32.xlu0 %v1177, 111
        %v2732 = vpop.permute.xlu0 %2731
        %2733 = vrot.lane.b32.xlu0 %v1179, 111
        %v2734 = vpop.permute.xlu0 %2733
        %v2735 = vsel %vm1102, %v2728, %v2732
        %v2736 = vsel %vm1102, %v2730, %v2734
        %v2737 = vsel %vm1102, %v2732, %v2728
        %v2738 = vsel %vm1102, %v2734, %v2730
        %v2739 = vmul.f32 %v2735, %v1106
        %v2740 = vmul.f32 %v2737, %v1107
        %v2741 = vmul.f32 %v2736, %v1106
        %v2742 = vmul.f32 %v2738, %v1107
        %v2743 = vadd.f32 %v2723, %v2739
        %v2744 = vadd.f32 %v2724, %v2740
        %v2745 = vadd.f32 %v2725, %v2741
        %v2746 = vadd.f32 %v2726, %v2742
        %v2747 = vld [vmem:[%s12] sm:$0xf]
        %v2748 = vpack.c.bf16 %v2745, %v2743
        %v2749 = vpack.c.bf16 %v2746, %v2744
        %v2750 = vld [vmem:[%s13] sm:$0xff]
        %2752 = vset.pattern.permute.xlu0 0
        %2753 = vperm.xlu0 %2752, %v2750
        %v2754 = vpop.permute.xlu0 %2753
        %v2757 = vsel %vm1211, %v2747, 0
        %2759 = vmatpush.bf16.msra.mxu0 0
        %2760 = vmatpush.bf16.msra.mxu0 0
        %2761 = vmatpush.bf16.msra.mxu0 0
        %2762 = vmatpush.bf16.msra.mxu0 0
        %2763 = vmatpush.bf16.msra.mxu0 0
        %2764 = vmatpush.bf16.msra.mxu0 0
        %2765 = vmatpush.bf16.msra.mxu0 0
        %2766 = vmatpush.bf16.msra.mxu0 %v2748
        %2767 = vmatmul.bf16.gmra.mxu0 %v2757
        %v2768 = vpop.f32.mrf.mxu0
        %v2769 = vadd.f32 %v2754, %v2768
        %v2770 = vpop.f32.mrf.mxu0
        %2771 = vdwg.mxu0
        %2772 = vmatpush.bf16.msra.mxu0 0
        %2773 = vmatpush.bf16.msra.mxu0 0
        %2774 = vmatpush.bf16.msra.mxu0 0
        %2775 = vmatpush.bf16.msra.mxu0 0
        %2776 = vmatpush.bf16.msra.mxu0 0
        %2777 = vmatpush.bf16.msra.mxu0 0
        %2778 = vmatpush.bf16.msra.mxu0 0
        %2779 = vmatpush.bf16.msra.mxu0 %v2749
        %2780 = vmatmul.bf16.gmra.mxu0 %v2757
        %v2781 = vpop.f32.mrf.mxu0
        %v2782 = vadd.f32 %v2754, %v2781
        %v2783 = vpop.f32.mrf.mxu0
        %2784 = vdwg.mxu0
        %v2785 = vmax.f32 %v2769, 0.0
        %v2786 = vmax.f32 %v2782, 0.0
        %v2787 = vadd.f32 %v1254, %v1255
        %2788 = vadd.xlane.f32.xlu0 %v2787
        %v2789 = vpop.xlane.xlu0 %2788
        %v2790 = vadd.f32 %v1701, %v1702
        %2791 = vadd.xlane.f32.xlu0 %v2790
        %v2792 = vpop.xlane.xlu0 %2791
        %v2793 = vadd.f32 %v2581, %v2582
        %2794 = vadd.xlane.f32.xlu0 %v2793
        %v2795 = vpop.xlane.xlu0 %2794
        %v2796 = vadd.f32 %v2785, %v2786
        %2797 = vadd.xlane.f32.xlu0 %v2796
        %v2798 = vpop.xlane.xlu0 %2797
        %v2799 = vmul.f32 %v2789, 0.00390625
        %v2800 = vmul.f32 %v2792, 0.00390625
        %v2801 = vmul.f32 %v2795, 0.00390625
        %v2802 = vmul.f32 %v2798, 0.00390625
        %v2803 = vld [vmem:[%s14] sm:$0xff]
        %v2804 = vld [vmem:[%s14 + $0x8] sm:$0xff]
        %v2805 = vld [vmem:[%s14 + $0x10] sm:$0xff]
        %v2806 = vld [vmem:[%s14 + $0x18] sm:$0xff]
        %v2807 = vmul.f32 %v2799, %v2803
        %v2808 = vmul.f32 %v2800, %v2804
        %v2809 = vmul.f32 %v2801, %v2805
        %v2810 = vmul.f32 %v2802, %v2806
        %vm2811 = vcmask 80896
        %v2812 = vsel %vm2811, %v2807, 0.0
        %v2813 = vsel %vm2811, %v2808, 0.0
        %v2814 = vadd.f32 %v2812, %v2813
        %v2815 = vsel %vm2811, %v2809, 0.0
        %v2816 = vadd.f32 %v2814, %v2815
        %v2817 = vsel %vm2811, %v2810, 0.0
        %v2818 = vadd.f32 %v2816, %v2817
        %v2819 = vrot.slane %v2818, 4
        %v2820 = vadd.f32 %v2818, %v2819
        %v2821 = vrot.slane %v2820, 2
        %v2822 = vadd.f32 %v2820, %v2821
        %v2823 = vrot.slane %v2822, 1
        %v2824 = vadd.f32 %v2822, %v2823
        %v2825 = vld [vmem:[%s15] sm:$0x1]
        %v2826 = vadd.f32 %v2824, %v2825
        %vm2827 = vcmask 73728
        %2828 = vst.msk [vmem:[%s513] sm:$0x1] %vm2827, %v2826
        %s2829 = sand.u32 %s379, 1
        %s2830 = scalar_lea.sflag [#allocation3], %s2829
        %s2831 = sand.u32 %s379, 1
        %s2832 = scalar_lea.vmem [#allocation2], %s2831
        // Predicated region
        $region85: #{inception_forward.1} parent=83 // pred_check
          %p2833 = pneg %p389
        $region86: #{inception_forward.1} parent=83 // pred_check_branch
          %2835 = sbr.rel (%p2833) target = $region88
        $region87: #{inception_forward.1} parent=83 // pred_region
          %2837 = vsyncadd %s2830, 0
          %s2838 = scalar_lea.hbm %s16, %s30
          %s2840 = sshll.u32 %s2832, 4
          %s2841 = int_to_ptr.vmem [resolvable:$true] %s2840
          %s2842 = sshll.u32 %s2838, 4
          %s2843 = int_to_ptr.hbm [resolvable:$true] %s2842
          %2845 = dma.vmem_to_hbm [thread:$0]  %s2841, 16, %s2843, %s2830
        $region88: #{inception_forward.1} parent=83 // pred_fallthru
          _
      $region84: #{inception_forward.1} parent=5 // pred_fallthru
        _
      %p2846 = scmp.le.s32.totalorder 2, %s25
      // Predicated region
      $region89: #{inception_forward.1} parent=5 // pred_check
        %p2847 = pneg %p2846
      $region90: #{inception_forward.1} parent=5 // pred_check_branch
        %2849 = sbr.rel (%p2847) target = $region92
      $region91: #{inception_forward.1} parent=5 // pred_region
        %s2850 = ssub.s32 %s25, 2
        // Predicated region
        $region93: #{inception_forward.1} parent=91 // pred_check
          %p2851 = pneg %p395
        $region94: #{inception_forward.1} parent=91 // pred_check_branch
          %2853 = sbr.rel (%p2851) target = $region96
        $region95: #{inception_forward.1} parent=91 // pred_region
          %s2854 = sand.u32 %s380, 1
          %s2855 = scalar_lea.sflag [#allocation3], %s2854
          %s2856 = sand.u32 %s380, 1
          %s2857 = scalar_lea.vmem [#allocation2], %s2856
          %2859 = dma.done %s2855, 16
        $region96: #{inception_forward.1} parent=91 // pred_fallthru
          _
      $region92: #{inception_forward.1} parent=5 // pred_fallthru
        _
    $region6: #{inception_forward.1} parent=1 // loop_footer
      %s29 = sadd.s32 1, %s25
    $region7: #{inception_forward.1} parent=1 // loop_footer_branch
      %24 = sbr.rel target = $region3
    $region8: #{inception_forward.1} parent=1 // loop_exit
      _
    %2860 = vsyncpa [#allocation3], 1
    %s2861 = scalar_lea.sflag [#allocation3], 1
    %2862 = vsyncpa %s2861, 1

</llo_original>
